<compile_context>
chip_gen: v5e
topology: v5e:2x2
jax: 0.10.0
libtpu: 0.0.40
codegen_flags: <defaults>
</compile_context>

<pallas_src>
import functools

import jax
import jax.numpy as jnp
from jax.experimental import pallas as pl
from jax.experimental.pallas import tpu as pltpu


# ----------------------------------------------------------------------------- helpers

def _ln_rows(x_f32, gamma_f32, beta_f32, eps):
    """Annotated-transformer LayerNorm on (rows, D), f32: g*(x-mean)/(std_unbiased+eps)+b."""
    d = x_f32.shape[-1]
    mean = jnp.mean(x_f32, axis=-1, keepdims=True)
    diff = x_f32 - mean
    var_unbiased = jnp.sum(diff * diff, axis=-1, keepdims=True) / (d - 1)
    std = jnp.sqrt(var_unbiased)
    # one per-row reciprocal (EUP slot) + VPU multiply instead of a per-element divide
    inv = pl.reciprocal(std + eps, approx=False)
    return gamma_f32 * (diff * inv) + beta_f32


def _mxu_cast(x, mxu_dtype):
    """Cast an MXU operand to the requested matmul dtype (None = keep native/reference dtype)."""
    return x if mxu_dtype is None else x.astype(mxu_dtype)


def _swap01(x):
    """(a, b, d) -> (b, a, d), keeping the minor (lane) dim in place."""
    if hasattr(pltpu, "einshape"):
        return pltpu.einshape("abd->bad", x)   # lane-layout-aware major-dim swap
    return jnp.swapaxes(x, 0, 1)


def _block_m(M, widest_cols, vmem_budget_bytes=16 * 1024 * 1024):
    """Largest row tile dividing M whose double-buffered in/out activation tiles fit the budget."""
    per_row_bytes = 2 * 2 * max(widest_cols, 1) * 4      # in+out tiles, double-buffered, f32
    cap = max(8, vmem_budget_bytes // per_row_bytes)
    if M <= cap:
        return M
    for bm in (2048, 1024, 512, 256, 128, 64, 32, 16, 8):
        if bm <= cap and M % bm == 0:
            return bm
    # TODO(synk): prefer a pl.cdiv grid with padding/masking instead of one giant block here.
    return M


def _compiler_params():
    return pltpu.CompilerParams(
        dimension_semantics=("parallel",),
        vmem_limit_bytes=32 * 1024 * 1024,
    )


def _const_spec(shape):
    return pl.BlockSpec(shape, lambda *_: (0,) * len(shape))


# ----------------------------------------------------------------------------- kernels

def ln_qkv_kernel(eps, mxu_dtype, x_ref, g_ref, b_ref, wqkv_ref, bqkv_ref, qkv_ref):
    # h = LN1(x);  qkv = h @ Wqkv + bqkv    (single (bm,D)x(D,3D) MXU pass, one lane-dense store)
    x = x_ref[...].astype(jnp.float32)                                   # (bm, D)
    h = _ln_rows(x, g_ref[...].astype(jnp.float32), b_ref[...].astype(jnp.float32), eps)
    h = _mxu_cast(h.astype(x_ref.dtype), mxu_dtype)
    w = _mxu_cast(wqkv_ref[...], mxu_dtype)
    qkv = jnp.dot(h, w, preferred_element_type=jnp.float32)              # (bm, 3D) f32 acc
    qkv = qkv + bqkv_ref[...].astype(jnp.float32)
    qkv_ref[...] = qkv.astype(qkv_ref.dtype)                             # single (bm, 3D) store


def attn_outproj_kernel(nhead, mxu_dtype, qkv_ref, wo_ref, bo_ref, res_ref, o_ref):
    # One batch per grid step: x = residual + MultiHead(q, k, v) @ Wo + bo
    qkv = qkv_ref[0]                                                     # (S, 3D), native dtype
    S, D3 = qkv.shape
    D = D3 // 3
    dk = D // nhead
    scale = float(dk) ** -0.5

    # Head-major re-layout once: (S, 3D) -> (S, 3H, dk) -> (3H, S, dk); then cheap leading-axis
    # slices for q/k/v.  No sub-128-lane slicing, no per-head python loop, no lane concat.
    g = _swap01(qkv.reshape(S, 3 * nhead, dk))                           # (3H, S, dk)
    qh = _mxu_cast(g[0 * nhead:1 * nhead], mxu_dtype)                    # (H, S, dk)
    kh = _mxu_cast(g[1 * nhead:2 * nhead], mxu_dtype)
    vh = _mxu_cast(g[2 * nhead:3 * nhead], mxu_dtype)

    # Batched (leading head axis) score / softmax / context — flash-style einsum pattern.
    s = jnp.einsum("hqd,hkd->hqk", qh, kh, preferred_element_type=jnp.float32) * scale
    s = s - jnp.max(s, axis=-1, keepdims=True)
    p = jnp.exp(s)
    p = p * pl.reciprocal(jnp.sum(p, axis=-1, keepdims=True), approx=False)
    ctx = jnp.einsum("hqk,hkd->hqd", p.astype(vh.dtype), vh,
                     preferred_element_type=jnp.float32)                 # (H, S, dk)

    # Fused output projection: Wo pre-reshaped to (H, dk, D); summing over heads keeps the final
    # store a single lane-dense (S, D) write.  attn @ Wo == sum_h ctx_h @ Wo[h].
    wo = _mxu_cast(wo_ref[...], mxu_dtype)                               # (H, dk, D)
    out = jnp.einsum("hqd,hdo->hqo", ctx.astype(wo.dtype), wo,
                     preferred_element_type=jnp.float32)                 # (H, S, D)
    out = jnp.sum(out, axis=0)                                           # (S, D)
    out = out + bo_ref[...].astype(jnp.float32) + res_ref[0].astype(jnp.float32)
    o_ref[0] = out.astype(o_ref.dtype)


def ln_ffn_residual_kernel(eps, mxu_dtype, apply_final_ln,
                           x_ref, g_ref, b_ref, w1_ref, b1_ref, w2_ref, b2_ref, *rest):
    # x = x + W2 @ relu(W1 @ LN2(x) + b1) + b2   (+ fused final LayerNorm on the last layer)
    if apply_final_ln:
        gf_ref, bf_ref, o_ref = rest
    else:
        (o_ref,) = rest
    x = x_ref[...].astype(jnp.float32)                                   # (bm, D)
    h = _ln_rows(x, g_ref[...].astype(jnp.float32), b_ref[...].astype(jnp.float32), eps)
    h = _mxu_cast(h.astype(x_ref.dtype), mxu_dtype)
    w1 = _mxu_cast(w1_ref[...], mxu_dtype)
    hid = jnp.dot(h, w1, preferred_element_type=jnp.float32)             # (bm, F) f32 acc
    hid = jnp.maximum(hid + b1_ref[...].astype(jnp.float32), 0.0)
    w2 = _mxu_cast(w2_ref[...], mxu_dtype)
    hid = hid.astype(w2.dtype)
    out = jnp.dot(hid, w2, preferred_element_type=jnp.float32)
    out = out + b2_ref[...].astype(jnp.float32) + x                      # residual fused
    if apply_final_ln:
        out = _ln_rows(out, gf_ref[...].astype(jnp.float32),
                       bf_ref[...].astype(jnp.float32), eps)
    o_ref[...] = out.astype(o_ref.dtype)


def layernorm_kernel(eps, x_ref, g_ref, b_ref, o_ref):
    # Only used for the degenerate nlayer == 0 case (normally fused into the last FFN kernel).
    x = x_ref[...].astype(jnp.float32)
    y = _ln_rows(x, g_ref[...].astype(jnp.float32), b_ref[...].astype(jnp.float32), eps)
    o_ref[...] = y.astype(o_ref.dtype)


# ----------------------------------------------------------------------------- wrappers

def ln_qkv(x2d, g, b, wqkv, bqkv, eps=1e-6, mxu_dtype=None):
    M, D = x2d.shape
    D3 = wqkv.shape[1]
    bm = _block_m(M, D3)
    return pl.pallas_call(
        functools.partial(ln_qkv_kernel, eps, mxu_dtype),
        out_shape=jax.ShapeDtypeStruct((M, D3), x2d.dtype),
        grid=(M // bm,),
        in_specs=[
            pl.BlockSpec((bm, D), lambda i: (i, 0)),
            _const_spec((1, D)), _const_spec((1, D)),
            _const_spec((D, D3)), _const_spec((1, D3)),
        ],
        out_specs=pl.BlockSpec((bm, D3), lambda i: (i, 0)),
        compiler_params=_compiler_params(),
    )(x2d, g, b, wqkv, bqkv)


def attention_outproj_residual(qkv3, wo_heads, bo, residual3, nhead, mxu_dtype=None):
    B, S, D3 = qkv3.shape
    D = D3 // 3
    H, dk, _ = wo_heads.shape
    # TODO(synk): for v7x with small B, add a parallel q-row / head grid axis; for long S, use a
    #             KV-tiled online-softmax (flash) grid instead of full (S,S) scores per head.
    return pl.pallas_call(
        functools.partial(attn_outproj_kernel, nhead, mxu_dtype),
        out_shape=jax.ShapeDtypeStruct((B, S, D), qkv3.dtype),
        grid=(B,),
        in_specs=[
            pl.BlockSpec((1, S, D3), lambda i: (i, 0, 0)),
            _const_spec((H, dk, D)),
            _const_spec((1, D)),
            pl.BlockSpec((1, S, D), lambda i: (i, 0, 0)),
        ],
        out_specs=pl.BlockSpec((1, S, D), lambda i: (i, 0, 0)),
        compiler_params=_compiler_params(),
    )(qkv3, wo_heads, bo, residual3)


def ln_ffn_residual(x2d, g, b, w1, b1, w2, b2, eps=1e-6, mxu_dtype=None, final_ln=None):
    M, D = x2d.shape
    F = w1.shape[1]
    bm = _block_m(M, max(D, F))
    in_specs = [
        pl.BlockSpec((bm, D), lambda i: (i, 0)),
        _const_spec((1, D)), _const_spec((1, D)),
        _const_spec((D, F)), _const_spec((1, F)),
        _const_spec((F, D)), _const_spec((1, D)),
    ]
    args = [x2d, g, b, w1, b1, w2, b2]
    apply_final = final_ln is not None
    if apply_final:
        in_specs += [_const_spec((1, D)), _const_spec((1, D))]
        args += [final_ln[0], final_ln[1]]
    return pl.pallas_call(
        functools.partial(ln_ffn_residual_kernel, eps, mxu_dtype, apply_final),
        out_shape=jax.ShapeDtypeStruct((M, D), x2d.dtype),
        grid=(M // bm,),
        in_specs=in_specs,
        out_specs=pl.BlockSpec((bm, D), lambda i: (i, 0)),
        compiler_params=_compiler_params(),
    )(*args)


def layernorm(x2d, gamma, beta, eps=1e-6):
    M, D = x2d.shape
    bm = _block_m(M, D)
    return pl.pallas_call(
        functools.partial(layernorm_kernel, eps),
        out_shape=jax.ShapeDtypeStruct((M, D), x2d.dtype),
        grid=(M // bm,),
        in_specs=[pl.BlockSpec((bm, D), lambda i: (i, 0)),
                  _const_spec((1, D)), _const_spec((1, D))],
        out_specs=pl.BlockSpec((bm, D), lambda i: (i, 0)),
        compiler_params=_compiler_params(),
    )(x2d, gamma, beta)


# ----------------------------------------------------------------------------- model

def init_params(key, d_model, nhead, d_ff, nlayer, dtype=jnp.float32):
    dk = d_model // nhead

    def dense(k, fan_in, fan_out):
        kw, kb = jax.random.split(k)
        w = (jax.random.normal(kw, (fan_in, fan_out), jnp.float32) * 0.02).astype(dtype)
        b = (jax.random.normal(kb, (1, fan_out), jnp.float32) * 0.02).astype(dtype)
        return w, b

    layers = []
    for _ in range(nlayer):
        key, *ks = jax.random.split(key, 7)
        wq, bq = dense(ks[0], d_model, d_model)
        wk, bk = dense(ks[1], d_model, d_model)
        wv, bv = dense(ks[2], d_model, d_model)
        wo, bo = dense(ks[3], d_model, d_model)
        w1, b1 = dense(ks[4], d_model, d_ff)
        w2, b2 = dense(ks[5], d_ff, d_model)
        layers.append(dict(
            ln1_g=jnp.ones((1, d_model), dtype), ln1_b=jnp.zeros((1, d_model), dtype),
            ln2_g=jnp.ones((1, d_model), dtype), ln2_b=jnp.zeros((1, d_model), dtype),
            # Q/K/V projections fused into one (D, 3D) weight for a single MXU pass.
            wqkv=jnp.concatenate([wq, wk, wv], axis=1),
            bqkv=jnp.concatenate([bq, bk, bv], axis=1),
            # Output projection pre-reshaped head-major (H, dk, D): free at init, lets the
            # attention kernel fuse it as a sum over heads with a lane-dense (S, D) store.
            wo_heads=wo.reshape(nhead, dk, d_model),
            bo=bo, w1=w1, b1=b1, w2=w2, b2=b2,
        ))
    final = dict(g=jnp.ones((1, d_model), dtype), b=jnp.zeros((1, d_model), dtype))
    return dict(layers=layers, final_ln=final, nhead=nhead)


def spectral_encoder_forward(params, input_embeds, mxu_dtype=None):
    # input_embeds: (B, S, D).  mxu_dtype=None keeps reference f32 numerics; pass jnp.bfloat16
    # for the peak-throughput MXU path (f32 accumulation preserved via preferred_element_type).
    B, S, D = input_embeds.shape
    H = params["nhead"]
    layers = params["layers"]

    x = input_embeds.reshape(B * S, D)          # row-major flatten: free metadata reshape

    for li, p in enumerate(layers):
        # --- sublayer 1: x = x + MHA(LN1(x)) @ Wo + bo   (out-proj + residual fused in-kernel)
        qkv = ln_qkv(x, p["ln1_g"], p["ln1_b"], p["wqkv"], p["bqkv"], mxu_dtype=mxu_dtype)
        x3 = attention_outproj_residual(qkv.reshape(B, S, 3 * D), p["wo_heads"], p["bo"],
                                        x.reshape(B, S, D), H, mxu_dtype=mxu_dtype)
        x = x3.reshape(B * S, D)

        # --- sublayer 2: x = x + FFN(LN2(x))   (+ fused final LayerNorm on the last layer)
        final_ln = None
        if li == len(layers) - 1:
            final_ln = (params["final_ln"]["g"], params["final_ln"]["b"])
        x = ln_ffn_residual(x, p["ln2_g"], p["ln2_b"], p["w1"], p["b1"], p["w2"], p["b2"],
                            mxu_dtype=mxu_dtype, final_ln=final_ln)

    if not layers:  # degenerate nlayer == 0: final LayerNorm was not fused anywhere
        x = layernorm(x, params["final_ln"]["g"], params["final_ln"]["b"])

    return {"hidden_states": x.reshape(B, S, D)}


# ----------------------------------------------------------------------------- main

if __name__ == "__main__":
    # Small, module-consistent shapes: d_model=32, nhead=4, d_ff=64, nlayer=2
    B, S, D, H, FF, NL = 2, 8, 32, 4, 64, 2

    key = jax.random.PRNGKey(0)
    k_params, k_x = jax.random.split(key)
    params = init_params(k_params, d_model=D, nhead=H, d_ff=FF, nlayer=NL)
    input_embeds = jax.random.normal(k_x, (B, S, D), jnp.float32)

    fwd = jax.jit(lambda x: spectral_encoder_forward(params, x, mxu_dtype=None))
    out = fwd(input_embeds)
    hidden = jax.block_until_ready(out["hidden_states"])

    assert hidden.shape == (B, S, D)
    assert bool(jnp.all(jnp.isfinite(hidden)))
    print("KERNEL_OK")
</pallas_src>

<mosaic_0001>
module attributes {stable_mosaic.version = 11 : i64} {
  func.func @ln_qkv_kernel(%arg0: i32, %arg1: memref<16x32xf32, #tpu.memory_space<vmem>>, %arg2: memref<1x32xf32, #tpu.memory_space<vmem>>, %arg3: memref<1x32xf32, #tpu.memory_space<vmem>>, %arg4: memref<32x96xf32, #tpu.memory_space<vmem>>, %arg5: memref<1x96xf32, #tpu.memory_space<vmem>>, %arg6: memref<16x96xf32, #tpu.memory_space<vmem>>) attributes {dimension_semantics = [#tpu.dimension_semantics<parallel>], iteration_bounds = array<i64: 1>, scalar_prefetch = 0 : i64, scratch_operands = 0 : i64, tpu.core_type = #tpu.core_type<tc>, window_params = [{transform_indices = @transform_0, window_bounds = array<i64: 16, 32>}, {pipeline_mode = #tpu.pipeline_mode<synchronous>, transform_indices = @transform_1, window_bounds = array<i64: 1, 32>}, {pipeline_mode = #tpu.pipeline_mode<synchronous>, transform_indices = @transform_2, window_bounds = array<i64: 1, 32>}, {pipeline_mode = #tpu.pipeline_mode<synchronous>, transform_indices = @transform_3, window_bounds = array<i64: 32, 96>}, {pipeline_mode = #tpu.pipeline_mode<synchronous>, transform_indices = @transform_4, window_bounds = array<i64: 1, 96>}, {transform_indices = @transform_5, window_bounds = array<i64: 16, 96>}]} {
    %c0 = arith.constant 0 : index
    %c0_0 = arith.constant 0 : index
    %0 = vector.load %arg1[%c0, %c0_0] : memref<16x32xf32, #tpu.memory_space<vmem>>, vector<16x32xf32>
    %c0_1 = arith.constant 0 : index
    %c0_2 = arith.constant 0 : index
    %1 = vector.load %arg2[%c0_1, %c0_2] : memref<1x32xf32, #tpu.memory_space<vmem>>, vector<1x32xf32>
    %c0_3 = arith.constant 0 : index
    %c0_4 = arith.constant 0 : index
    %2 = vector.load %arg3[%c0_3, %c0_4] : memref<1x32xf32, #tpu.memory_space<vmem>>, vector<1x32xf32>
    %cst = arith.constant dense<0.000000e+00> : vector<16xf32>
    %3 = vector.multi_reduction <add>, %0, %cst [1] : vector<16x32xf32> to vector<16xf32>
    %4 = vector.shape_cast %3 : vector<16xf32> to vector<16x1xf32>
    %cst_5 = arith.constant 3.200000e+01 : f32
    %5 = vector.broadcast %cst_5 : f32 to vector<16x1xf32>
    %6 = arith.divf %4, %5 : vector<16x1xf32>
    %7 = vector.broadcast %6 : vector<16x1xf32> to vector<16x32xf32>
    %8 = arith.subf %0, %7 : vector<16x32xf32>
    %9 = arith.mulf %8, %8 : vector<16x32xf32>
    %cst_6 = arith.constant dense<0.000000e+00> : vector<16xf32>
    %10 = vector.multi_reduction <add>, %9, %cst_6 [1] : vector<16x32xf32> to vector<16xf32>
    %11 = vector.shape_cast %10 : vector<16xf32> to vector<16x1xf32>
    %cst_7 = arith.constant 3.100000e+01 : f32
    %12 = vector.broadcast %cst_7 : f32 to vector<16x1xf32>
    %13 = arith.divf %11, %12 : vector<16x1xf32>
    %14 = math.sqrt %13 : vector<16x1xf32>
    %cst_8 = arith.constant 9.99999997E-7 : f32
    %15 = vector.broadcast %cst_8 : f32 to vector<16x1xf32>
    %16 = arith.addf %14, %15 : vector<16x1xf32>
    %17 = tpu.reciprocal %16 : vector<16x1xf32> -> vector<16x1xf32>
    %18 = vector.broadcast %17 : vector<16x1xf32> to vector<16x32xf32>
    %19 = arith.mulf %8, %18 : vector<16x32xf32>
    %20 = vector.broadcast %1 : vector<1x32xf32> to vector<16x32xf32>
    %21 = arith.mulf %20, %19 : vector<16x32xf32>
    %22 = vector.broadcast %2 : vector<1x32xf32> to vector<16x32xf32>
    %23 = arith.addf %21, %22 : vector<16x32xf32>
    %c0_9 = arith.constant 0 : index
    %c0_10 = arith.constant 0 : index
    %24 = vector.load %arg4[%c0_9, %c0_10] : memref<32x96xf32, #tpu.memory_space<vmem>>, vector<32x96xf32>
    %cst_11 = arith.constant dense<0.000000e+00> : vector<16x96xf32>
    %25 = tpu.matmul %23, %24, %cst_11 {dimension_numbers = #tpu.dot_dimension_numbers<[1], [0], [0], [1], [0, 0, 1, 1], [], []>} : vector<16x32xf32>, vector<32x96xf32>, vector<16x96xf32> -> vector<16x96xf32>
    %c0_12 = arith.constant 0 : index
    %c0_13 = arith.constant 0 : index
    %26 = vector.load %arg5[%c0_12, %c0_13] : memref<1x96xf32, #tpu.memory_space<vmem>>, vector<1x96xf32>
    %27 = vector.broadcast %26 : vector<1x96xf32> to vector<16x96xf32>
    %28 = arith.addf %25, %27 : vector<16x96xf32>
    %c0_14 = arith.constant 0 : index
    %c0_15 = arith.constant 0 : index
    %29 = vector.load %arg6[%c0_14, %c0_15] : memref<16x96xf32, #tpu.memory_space<vmem>>, vector<16x96xf32>
    tpu.vector_store %arg6[%c0_14, %c0_15], %28 {strides = array<i32>} : memref<16x96xf32, #tpu.memory_space<vmem>>, vector<16x96xf32>,
    return
  }
  func.func @transform_0(%arg0: i32) -> (i32, i32) {
    %c0_i32 = arith.constant 0 : i32
    %c0_i32_0 = arith.constant 0 : i32
    return %arg0, %c0_i32 : i32, i32
  }
  func.func @transform_1(%arg0: i32) -> (i32, i32) {
    %c0_i32 = arith.constant 0 : i32
    %c0_i32_0 = arith.constant 0 : i32
    %c0_i32_1 = arith.constant 0 : i32
    return %c0_i32, %c0_i32_0 : i32, i32
  }
  func.func @transform_2(%arg0: i32) -> (i32, i32) {
    %c0_i32 = arith.constant 0 : i32
    %c0_i32_0 = arith.constant 0 : i32
    %c0_i32_1 = arith.constant 0 : i32
    return %c0_i32, %c0_i32_0 : i32, i32
  }
  func.func @transform_3(%arg0: i32) -> (i32, i32) {
    %c0_i32 = arith.constant 0 : i32
    %c0_i32_0 = arith.constant 0 : i32
    %c0_i32_1 = arith.constant 0 : i32
    return %c0_i32, %c0_i32_0 : i32, i32
  }
  func.func @transform_4(%arg0: i32) -> (i32, i32) {
    %c0_i32 = arith.constant 0 : i32
    %c0_i32_0 = arith.constant 0 : i32
    %c0_i32_1 = arith.constant 0 : i32
    return %c0_i32, %c0_i32_0 : i32, i32
  }
  func.func @transform_5(%arg0: i32) -> (i32, i32) {
    %c0_i32 = arith.constant 0 : i32
    %c0_i32_0 = arith.constant 0 : i32
    return %arg0, %c0_i32 : i32, i32
  }
}

module attributes {stable_mosaic.version = 11 : i64} {
  func.func @attn_outproj_kernel(%arg0: i32, %arg1: memref<1x8x96xf32, #tpu.memory_space<vmem>>, %arg2: memref<4x8x32xf32, #tpu.memory_space<vmem>>, %arg3: memref<1x32xf32, #tpu.memory_space<vmem>>, %arg4: memref<1x8x32xf32, #tpu.memory_space<vmem>>, %arg5: memref<1x8x32xf32, #tpu.memory_space<vmem>>) attributes {dimension_semantics = [#tpu.dimension_semantics<parallel>], iteration_bounds = array<i64: 2>, scalar_prefetch = 0 : i64, scratch_operands = 0 : i64, tpu.core_type = #tpu.core_type<tc>, window_params = [{transform_indices = @transform_0, window_bounds = array<i64: 1, 8, 96>}, {pipeline_mode = #tpu.pipeline_mode<synchronous>, transform_indices = @transform_1, window_bounds = array<i64: 4, 8, 32>}, {pipeline_mode = #tpu.pipeline_mode<synchronous>, transform_indices = @transform_2, window_bounds = array<i64: 1, 32>}, {transform_indices = @transform_3, window_bounds = array<i64: 1, 8, 32>}, {transform_indices = @transform_4, window_bounds = array<i64: 1, 8, 32>}]} {
    %c0 = arith.constant 0 : index
    %c0_0 = arith.constant 0 : index
    %c0_1 = arith.constant 0 : index
    %0 = vector.load %arg1[%c0, %c0_0, %c0_1] : memref<1x8x96xf32, #tpu.memory_space<vmem>>, vector<1x8x96xf32>
    %1 = vector.shape_cast %0 : vector<1x8x96xf32> to vector<8x96xf32>
    %2 = vector.shape_cast %1 : vector<8x96xf32> to vector<8x12x8xf32>
    %3 = tpu.transpose %2, [1, 0, 2] : vector<8x12x8xf32> -> vector<12x8x8xf32>
    %4 = vector.extract_strided_slice %3 {offsets = [0, 0, 0], sizes = [4, 8, 8], strides = [1, 1, 1]} : vector<12x8x8xf32> to vector<4x8x8xf32>
    %5 = vector.extract_strided_slice %3 {offsets = [4, 0, 0], sizes = [4, 8, 8], strides = [1, 1, 1]} : vector<12x8x8xf32> to vector<4x8x8xf32>
    %6 = vector.extract_strided_slice %3 {offsets = [8, 0, 0], sizes = [4, 8, 8], strides = [1, 1, 1]} : vector<12x8x8xf32> to vector<4x8x8xf32>
    "tpu.trace_start"() <{level = 10 : i32, message = "hqd,hkd->hqk"}> : () -> ()
    %cst = arith.constant dense<0.000000e+00> : vector<4x8x8xf32>
    %7 = tpu.matmul %4, %5, %cst {dimension_numbers = #tpu.dot_dimension_numbers<[2], [2], [1], [1], [0, 0, 0, 1, 1, 1], [0], [0]>} : vector<4x8x8xf32>, vector<4x8x8xf32>, vector<4x8x8xf32> -> vector<4x8x8xf32>
    "tpu.trace_stop"() : () -> ()
    %cst_2 = arith.constant 0.353553385 : f32
    %8 = vector.broadcast %cst_2 : f32 to vector<4x8x8xf32>
    %9 = arith.mulf %7, %8 : vector<4x8x8xf32>
    %cst_3 = arith.constant dense<0xFF800000> : vector<4x8xf32>
    %10 = vector.multi_reduction <maximumf>, %9, %cst_3 [2] : vector<4x8x8xf32> to vector<4x8xf32>
    %11 = vector.shape_cast %10 : vector<4x8xf32> to vector<4x8x1xf32>
    %12 = vector.broadcast %11 : vector<4x8x1xf32> to vector<4x8x8xf32>
    %13 = arith.subf %9, %12 : vector<4x8x8xf32>
    %14 = math.exp %13 : vector<4x8x8xf32>
    %cst_4 = arith.constant dense<0.000000e+00> : vector<4x8xf32>
    %15 = vector.multi_reduction <add>, %14, %cst_4 [2] : vector<4x8x8xf32> to vector<4x8xf32>
    %16 = vector.shape_cast %15 : vector<4x8xf32> to vector<4x8x1xf32>
    %17 = tpu.reciprocal %16 : vector<4x8x1xf32> -> vector<4x8x1xf32>
    %18 = vector.broadcast %17 : vector<4x8x1xf32> to vector<4x8x8xf32>
    %19 = arith.mulf %14, %18 : vector<4x8x8xf32>
    "tpu.trace_start"() <{level = 10 : i32, message = "hqk,hkd->hqd"}> : () -> ()
    %cst_5 = arith.constant dense<0.000000e+00> : vector<4x8x8xf32>
    %20 = tpu.matmul %19, %6, %cst_5 {dimension_numbers = #tpu.dot_dimension_numbers<[2], [1], [1], [2], [0, 0, 0, 1, 1, 2], [0], [0]>} : vector<4x8x8xf32>, vector<4x8x8xf32>, vector<4x8x8xf32> -> vector<4x8x8xf32>
    "tpu.trace_stop"() : () -> ()
    %c0_6 = arith.constant 0 : index
    %c0_7 = arith.constant 0 : index
    %c0_8 = arith.constant 0 : index
    %21 = vector.load %arg2[%c0_6, %c0_7, %c0_8] : memref<4x8x32xf32, #tpu.memory_space<vmem>>, vector<4x8x32xf32>
    "tpu.trace_start"() <{level = 10 : i32, message = "hqd,hdo->hqo"}> : () -> ()
    %cst_9 = arith.constant dense<0.000000e+00> : vector<4x8x32xf32>
    %22 = tpu.matmul %20, %21, %cst_9 {dimension_numbers = #tpu.dot_dimension_numbers<[2], [1], [1], [2], [0, 0, 0, 1, 1, 2], [0], [0]>} : vector<4x8x8xf32>, vector<4x8x32xf32>, vector<4x8x32xf32> -> vector<4x8x32xf32>
    "tpu.trace_stop"() : () -> ()
    %cst_10 = arith.constant dense<0.000000e+00> : vector<8x32xf32>
    %23 = vector.multi_reduction <add>, %22, %cst_10 [0] : vector<4x8x32xf32> to vector<8x32xf32>
    %c0_11 = arith.constant 0 : index
    %c0_12 = arith.constant 0 : index
    %24 = vector.load %arg3[%c0_11, %c0_12] : memref<1x32xf32, #tpu.memory_space<vmem>>, vector<1x32xf32>
    %25 = vector.broadcast %24 : vector<1x32xf32> to vector<8x32xf32>
    %26 = arith.addf %23, %25 : vector<8x32xf32>
    %c0_13 = arith.constant 0 : index
    %c0_14 = arith.constant 0 : index
    %c0_15 = arith.constant 0 : index
    %27 = vector.load %arg4[%c0_13, %c0_14, %c0_15] : memref<1x8x32xf32, #tpu.memory_space<vmem>>, vector<1x8x32xf32>
    %28 = vector.shape_cast %27 : vector<1x8x32xf32> to vector<8x32xf32>
    %29 = arith.addf %26, %28 : vector<8x32xf32>
    %c0_16 = arith.constant 0 : index
    %c0_17 = arith.constant 0 : index
    %c0_18 = arith.constant 0 : index
    %30 = vector.load %arg5[%c0_16, %c0_17, %c0_18] : memref<1x8x32xf32, #tpu.memory_space<vmem>>, vector<1x8x32xf32>
    %31 = vector.shape_cast %30 : vector<1x8x32xf32> to vector<8x32xf32>
    %32 = vector.shape_cast %29 : vector<8x32xf32> to vector<1x8x32xf32>
    tpu.vector_store %arg5[%c0_16, %c0_17, %c0_18], %32 {strides = array<i32>} : memref<1x8x32xf32, #tpu.memory_space<vmem>>, vector<1x8x32xf32>,
    return
  }
  func.func @transform_0(%arg0: i32) -> (i32, i32, i32) {
    %c0_i32 = arith.constant 0 : i32
    %c0_i32_0 = arith.constant 0 : i32
    %c0_i32_1 = arith.constant 0 : i32
    return %arg0, %c0_i32, %c0_i32_0 : i32, i32, i32
  }
  func.func @transform_1(%arg0: i32) -> (i32, i32, i32) {
    %c0_i32 = arith.constant 0 : i32
    %c0_i32_0 = arith.constant 0 : i32
    %c0_i32_1 = arith.constant 0 : i32
    %c0_i32_2 = arith.constant 0 : i32
    return %c0_i32, %c0_i32_0, %c0_i32_1 : i32, i32, i32
  }
  func.func @transform_2(%arg0: i32) -> (i32, i32) {
    %c0_i32 = arith.constant 0 : i32
    %c0_i32_0 = arith.constant 0 : i32
    %c0_i32_1 = arith.constant 0 : i32
    return %c0_i32, %c0_i32_0 : i32, i32
  }
  func.func @transform_3(%arg0: i32) -> (i32, i32, i32) {
    %c0_i32 = arith.constant 0 : i32
    %c0_i32_0 = arith.constant 0 : i32
    %c0_i32_1 = arith.constant 0 : i32
    return %arg0, %c0_i32, %c0_i32_0 : i32, i32, i32
  }
  func.func @transform_4(%arg0: i32) -> (i32, i32, i32) {
    %c0_i32 = arith.constant 0 : i32
    %c0_i32_0 = arith.constant 0 : i32
    %c0_i32_1 = arith.constant 0 : i32
    return %arg0, %c0_i32, %c0_i32_0 : i32, i32, i32
  }
}

module attributes {stable_mosaic.version = 11 : i64} {
  func.func @ln_ffn_residual_kernel(%arg0: i32, %arg1: memref<16x32xf32, #tpu.memory_space<vmem>>, %arg2: memref<1x32xf32, #tpu.memory_space<vmem>>, %arg3: memref<1x32xf32, #tpu.memory_space<vmem>>, %arg4: memref<32x64xf32, #tpu.memory_space<vmem>>, %arg5: memref<1x64xf32, #tpu.memory_space<vmem>>, %arg6: memref<64x32xf32, #tpu.memory_space<vmem>>, %arg7: memref<1x32xf32, #tpu.memory_space<vmem>>, %arg8: memref<16x32xf32, #tpu.memory_space<vmem>>) attributes {dimension_semantics = [#tpu.dimension_semantics<parallel>], iteration_bounds = array<i64: 1>, scalar_prefetch = 0 : i64, scratch_operands = 0 : i64, tpu.core_type = #tpu.core_type<tc>, window_params = [{transform_indices = @transform_0, window_bounds = array<i64: 16, 32>}, {pipeline_mode = #tpu.pipeline_mode<synchronous>, transform_indices = @transform_1, window_bounds = array<i64: 1, 32>}, {pipeline_mode = #tpu.pipeline_mode<synchronous>, transform_indices = @transform_2, window_bounds = array<i64: 1, 32>}, {pipeline_mode = #tpu.pipeline_mode<synchronous>, transform_indices = @transform_3, window_bounds = array<i64: 32, 64>}, {pipeline_mode = #tpu.pipeline_mode<synchronous>, transform_indices = @transform_4, window_bounds = array<i64: 1, 64>}, {pipeline_mode = #tpu.pipeline_mode<synchronous>, transform_indices = @transform_5, window_bounds = array<i64: 64, 32>}, {pipeline_mode = #tpu.pipeline_mode<synchronous>, transform_indices = @transform_6, window_bounds = array<i64: 1, 32>}, {transform_indices = @transform_7, window_bounds = array<i64: 16, 32>}]} {
    %c0 = arith.constant 0 : index
    %c0_0 = arith.constant 0 : index
    %0 = vector.load %arg1[%c0, %c0_0] : memref<16x32xf32, #tpu.memory_space<vmem>>, vector<16x32xf32>
    %c0_1 = arith.constant 0 : index
    %c0_2 = arith.constant 0 : index
    %1 = vector.load %arg2[%c0_1, %c0_2] : memref<1x32xf32, #tpu.memory_space<vmem>>, vector<1x32xf32>
    %c0_3 = arith.constant 0 : index
    %c0_4 = arith.constant 0 : index
    %2 = vector.load %arg3[%c0_3, %c0_4] : memref<1x32xf32, #tpu.memory_space<vmem>>, vector<1x32xf32>
    %cst = arith.constant dense<0.000000e+00> : vector<16xf32>
    %3 = vector.multi_reduction <add>, %0, %cst [1] : vector<16x32xf32> to vector<16xf32>
    %4 = vector.shape_cast %3 : vector<16xf32> to vector<16x1xf32>
    %cst_5 = arith.constant 3.200000e+01 : f32
    %5 = vector.broadcast %cst_5 : f32 to vector<16x1xf32>
    %6 = arith.divf %4, %5 : vector<16x1xf32>
    %7 = vector.broadcast %6 : vector<16x1xf32> to vector<16x32xf32>
    %8 = arith.subf %0, %7 : vector<16x32xf32>
    %9 = arith.mulf %8, %8 : vector<16x32xf32>
    %cst_6 = arith.constant dense<0.000000e+00> : vector<16xf32>
    %10 = vector.multi_reduction <add>, %9, %cst_6 [1] : vector<16x32xf32> to vector<16xf32>
    %11 = vector.shape_cast %10 : vector<16xf32> to vector<16x1xf32>
    %cst_7 = arith.constant 3.100000e+01 : f32
    %12 = vector.broadcast %cst_7 : f32 to vector<16x1xf32>
    %13 = arith.divf %11, %12 : vector<16x1xf32>
    %14 = math.sqrt %13 : vector<16x1xf32>
    %cst_8 = arith.constant 9.99999997E-7 : f32
    %15 = vector.broadcast %cst_8 : f32 to vector<16x1xf32>
    %16 = arith.addf %14, %15 : vector<16x1xf32>
    %17 = tpu.reciprocal %16 : vector<16x1xf32> -> vector<16x1xf32>
    %18 = vector.broadcast %17 : vector<16x1xf32> to vector<16x32xf32>
    %19 = arith.mulf %8, %18 : vector<16x32xf32>
    %20 = vector.broadcast %1 : vector<1x32xf32> to vector<16x32xf32>
    %21 = arith.mulf %20, %19 : vector<16x32xf32>
    %22 = vector.broadcast %2 : vector<1x32xf32> to vector<16x32xf32>
    %23 = arith.addf %21, %22 : vector<16x32xf32>
    %c0_9 = arith.constant 0 : index
    %c0_10 = arith.constant 0 : index
    %24 = vector.load %arg4[%c0_9, %c0_10] : memref<32x64xf32, #tpu.memory_space<vmem>>, vector<32x64xf32>
    %cst_11 = arith.constant dense<0.000000e+00> : vector<16x64xf32>
    %25 = tpu.matmul %23, %24, %cst_11 {dimension_numbers = #tpu.dot_dimension_numbers<[1], [0], [0], [1], [0, 0, 1, 1], [], []>} : vector<16x32xf32>, vector<32x64xf32>, vector<16x64xf32> -> vector<16x64xf32>
    %c0_12 = arith.constant 0 : index
    %c0_13 = arith.constant 0 : index
    %26 = vector.load %arg5[%c0_12, %c0_13] : memref<1x64xf32, #tpu.memory_space<vmem>>, vector<1x64xf32>
    %27 = vector.broadcast %26 : vector<1x64xf32> to vector<16x64xf32>
    %28 = arith.addf %25, %27 : vector<16x64xf32>
    %cst_14 = arith.constant 0.000000e+00 : f32
    %29 = vector.broadcast %cst_14 : f32 to vector<16x64xf32>
    %30 = arith.maximumf %28, %29 : vector<16x64xf32>
    %c0_15 = arith.constant 0 : index
    %c0_16 = arith.constant 0 : index
    %31 = vector.load %arg6[%c0_15, %c0_16] : memref<64x32xf32, #tpu.memory_space<vmem>>, vector<64x32xf32>
    %cst_17 = arith.constant dense<0.000000e+00> : vector<16x32xf32>
    %32 = tpu.matmul %30, %31, %cst_17 {dimension_numbers = #tpu.dot_dimension_numbers<[1], [0], [0], [1], [0, 0, 1, 1], [], []>} : vector<16x64xf32>, vector<64x32xf32>, vector<16x32xf32> -> vector<16x32xf32>
    %c0_18 = arith.constant 0 : index
    %c0_19 = arith.constant 0 : index
    %33 = vector.load %arg7[%c0_18, %c0_19] : memref<1x32xf32, #tpu.memory_space<vmem>>, vector<1x32xf32>
    %34 = vector.broadcast %33 : vector<1x32xf32> to vector<16x32xf32>
    %35 = arith.addf %32, %34 : vector<16x32xf32>
    %36 = arith.addf %35, %0 : vector<16x32xf32>
    %c0_20 = arith.constant 0 : index
    %c0_21 = arith.constant 0 : index
    %37 = vector.load %arg8[%c0_20, %c0_21] : memref<16x32xf32, #tpu.memory_space<vmem>>, vector<16x32xf32>
    tpu.vector_store %arg8[%c0_20, %c0_21], %36 {strides = array<i32>} : memref<16x32xf32, #tpu.memory_space<vmem>>, vector<16x32xf32>,
    return
  }
  func.func @transform_0(%arg0: i32) -> (i32, i32) {
    %c0_i32 = arith.constant 0 : i32
    %c0_i32_0 = arith.constant 0 : i32
    return %arg0, %c0_i32 : i32, i32
  }
  func.func @transform_1(%arg0: i32) -> (i32, i32) {
    %c0_i32 = arith.constant 0 : i32
    %c0_i32_0 = arith.constant 0 : i32
    %c0_i32_1 = arith.constant 0 : i32
    return %c0_i32, %c0_i32_0 : i32, i32
  }
  func.func @transform_2(%arg0: i32) -> (i32, i32) {
    %c0_i32 = arith.constant 0 : i32
    %c0_i32_0 = arith.constant 0 : i32
    %c0_i32_1 = arith.constant 0 : i32
    return %c0_i32, %c0_i32_0 : i32, i32
  }
  func.func @transform_3(%arg0: i32) -> (i32, i32) {
    %c0_i32 = arith.constant 0 : i32
    %c0_i32_0 = arith.constant 0 : i32
    %c0_i32_1 = arith.constant 0 : i32
    return %c0_i32, %c0_i32_0 : i32, i32
  }
  func.func @transform_4(%arg0: i32) -> (i32, i32) {
    %c0_i32 = arith.constant 0 : i32
    %c0_i32_0 = arith.constant 0 : i32
    %c0_i32_1 = arith.constant 0 : i32
    return %c0_i32, %c0_i32_0 : i32, i32
  }
  func.func @transform_5(%arg0: i32) -> (i32, i32) {
    %c0_i32 = arith.constant 0 : i32
    %c0_i32_0 = arith.constant 0 : i32
    %c0_i32_1 = arith.constant 0 : i32
    return %c0_i32, %c0_i32_0 : i32, i32
  }
  func.func @transform_6(%arg0: i32) -> (i32, i32) {
    %c0_i32 = arith.constant 0 : i32
    %c0_i32_0 = arith.constant 0 : i32
    %c0_i32_1 = arith.constant 0 : i32
    return %c0_i32, %c0_i32_0 : i32, i32
  }
  func.func @transform_7(%arg0: i32) -> (i32, i32) {
    %c0_i32 = arith.constant 0 : i32
    %c0_i32_0 = arith.constant 0 : i32
    return %arg0, %c0_i32 : i32, i32
  }
}

module attributes {stable_mosaic.version = 11 : i64} {
  func.func @ln_qkv_kernel(%arg0: i32, %arg1: memref<16x32xf32, #tpu.memory_space<vmem>>, %arg2: memref<1x32xf32, #tpu.memory_space<vmem>>, %arg3: memref<1x32xf32, #tpu.memory_space<vmem>>, %arg4: memref<32x96xf32, #tpu.memory_space<vmem>>, %arg5: memref<1x96xf32, #tpu.memory_space<vmem>>, %arg6: memref<16x96xf32, #tpu.memory_space<vmem>>) attributes {dimension_semantics = [#tpu.dimension_semantics<parallel>], iteration_bounds = array<i64: 1>, scalar_prefetch = 0 : i64, scratch_operands = 0 : i64, tpu.core_type = #tpu.core_type<tc>, window_params = [{transform_indices = @transform_0, window_bounds = array<i64: 16, 32>}, {pipeline_mode = #tpu.pipeline_mode<synchronous>, transform_indices = @transform_1, window_bounds = array<i64: 1, 32>}, {pipeline_mode = #tpu.pipeline_mode<synchronous>, transform_indices = @transform_2, window_bounds = array<i64: 1, 32>}, {pipeline_mode = #tpu.pipeline_mode<synchronous>, transform_indices = @transform_3, window_bounds = array<i64: 32, 96>}, {pipeline_mode = #tpu.pipeline_mode<synchronous>, transform_indices = @transform_4, window_bounds = array<i64: 1, 96>}, {transform_indices = @transform_5, window_bounds = array<i64: 16, 96>}]} {
    %c0 = arith.constant 0 : index
    %c0_0 = arith.constant 0 : index
    %0 = vector.load %arg1[%c0, %c0_0] : memref<16x32xf32, #tpu.memory_space<vmem>>, vector<16x32xf32>
    %c0_1 = arith.constant 0 : index
    %c0_2 = arith.constant 0 : index
    %1 = vector.load %arg2[%c0_1, %c0_2] : memref<1x32xf32, #tpu.memory_space<vmem>>, vector<1x32xf32>
    %c0_3 = arith.constant 0 : index
    %c0_4 = arith.constant 0 : index
    %2 = vector.load %arg3[%c0_3, %c0_4] : memref<1x32xf32, #tpu.memory_space<vmem>>, vector<1x32xf32>
    %cst = arith.constant dense<0.000000e+00> : vector<16xf32>
    %3 = vector.multi_reduction <add>, %0, %cst [1] : vector<16x32xf32> to vector<16xf32>
    %4 = vector.shape_cast %3 : vector<16xf32> to vector<16x1xf32>
    %cst_5 = arith.constant 3.200000e+01 : f32
    %5 = vector.broadcast %cst_5 : f32 to vector<16x1xf32>
    %6 = arith.divf %4, %5 : vector<16x1xf32>
    %7 = vector.broadcast %6 : vector<16x1xf32> to vector<16x32xf32>
    %8 = arith.subf %0, %7 : vector<16x32xf32>
    %9 = arith.mulf %8, %8 : vector<16x32xf32>
    %cst_6 = arith.constant dense<0.000000e+00> : vector<16xf32>
    %10 = vector.multi_reduction <add>, %9, %cst_6 [1] : vector<16x32xf32> to vector<16xf32>
    %11 = vector.shape_cast %10 : vector<16xf32> to vector<16x1xf32>
    %cst_7 = arith.constant 3.100000e+01 : f32
    %12 = vector.broadcast %cst_7 : f32 to vector<16x1xf32>
    %13 = arith.divf %11, %12 : vector<16x1xf32>
    %14 = math.sqrt %13 : vector<16x1xf32>
    %cst_8 = arith.constant 9.99999997E-7 : f32
    %15 = vector.broadcast %cst_8 : f32 to vector<16x1xf32>
    %16 = arith.addf %14, %15 : vector<16x1xf32>
    %17 = tpu.reciprocal %16 : vector<16x1xf32> -> vector<16x1xf32>
    %18 = vector.broadcast %17 : vector<16x1xf32> to vector<16x32xf32>
    %19 = arith.mulf %8, %18 : vector<16x32xf32>
    %20 = vector.broadcast %1 : vector<1x32xf32> to vector<16x32xf32>
    %21 = arith.mulf %20, %19 : vector<16x32xf32>
    %22 = vector.broadcast %2 : vector<1x32xf32> to vector<16x32xf32>
    %23 = arith.addf %21, %22 : vector<16x32xf32>
    %c0_9 = arith.constant 0 : index
    %c0_10 = arith.constant 0 : index
    %24 = vector.load %arg4[%c0_9, %c0_10] : memref<32x96xf32, #tpu.memory_space<vmem>>, vector<32x96xf32>
    %cst_11 = arith.constant dense<0.000000e+00> : vector<16x96xf32>
    %25 = tpu.matmul %23, %24, %cst_11 {dimension_numbers = #tpu.dot_dimension_numbers<[1], [0], [0], [1], [0, 0, 1, 1], [], []>} : vector<16x32xf32>, vector<32x96xf32>, vector<16x96xf32> -> vector<16x96xf32>
    %c0_12 = arith.constant 0 : index
    %c0_13 = arith.constant 0 : index
    %26 = vector.load %arg5[%c0_12, %c0_13] : memref<1x96xf32, #tpu.memory_space<vmem>>, vector<1x96xf32>
    %27 = vector.broadcast %26 : vector<1x96xf32> to vector<16x96xf32>
    %28 = arith.addf %25, %27 : vector<16x96xf32>
    %c0_14 = arith.constant 0 : index
    %c0_15 = arith.constant 0 : index
    %29 = vector.load %arg6[%c0_14, %c0_15] : memref<16x96xf32, #tpu.memory_space<vmem>>, vector<16x96xf32>
    tpu.vector_store %arg6[%c0_14, %c0_15], %28 {strides = array<i32>} : memref<16x96xf32, #tpu.memory_space<vmem>>, vector<16x96xf32>,
    return
  }
  func.func @transform_0(%arg0: i32) -> (i32, i32) {
    %c0_i32 = arith.constant 0 : i32
    %c0_i32_0 = arith.constant 0 : i32
    return %arg0, %c0_i32 : i32, i32
  }
  func.func @transform_1(%arg0: i32) -> (i32, i32) {
    %c0_i32 = arith.constant 0 : i32
    %c0_i32_0 = arith.constant 0 : i32
    %c0_i32_1 = arith.constant 0 : i32
    return %c0_i32, %c0_i32_0 : i32, i32
  }
  func.func @transform_2(%arg0: i32) -> (i32, i32) {
    %c0_i32 = arith.constant 0 : i32
    %c0_i32_0 = arith.constant 0 : i32
    %c0_i32_1 = arith.constant 0 : i32
    return %c0_i32, %c0_i32_0 : i32, i32
  }
  func.func @transform_3(%arg0: i32) -> (i32, i32) {
    %c0_i32 = arith.constant 0 : i32
    %c0_i32_0 = arith.constant 0 : i32
    %c0_i32_1 = arith.constant 0 : i32
    return %c0_i32, %c0_i32_0 : i32, i32
  }
  func.func @transform_4(%arg0: i32) -> (i32, i32) {
    %c0_i32 = arith.constant 0 : i32
    %c0_i32_0 = arith.constant 0 : i32
    %c0_i32_1 = arith.constant 0 : i32
    return %c0_i32, %c0_i32_0 : i32, i32
  }
  func.func @transform_5(%arg0: i32) -> (i32, i32) {
    %c0_i32 = arith.constant 0 : i32
    %c0_i32_0 = arith.constant 0 : i32
    return %arg0, %c0_i32 : i32, i32
  }
}

module attributes {stable_mosaic.version = 11 : i64} {
  func.func @ln_ffn_residual_kernel(%arg0: i32, %arg1: memref<16x32xf32, #tpu.memory_space<vmem>>, %arg2: memref<1x32xf32, #tpu.memory_space<vmem>>, %arg3: memref<1x32xf32, #tpu.memory_space<vmem>>, %arg4: memref<32x64xf32, #tpu.memory_space<vmem>>, %arg5: memref<1x64xf32, #tpu.memory_space<vmem>>, %arg6: memref<64x32xf32, #tpu.memory_space<vmem>>, %arg7: memref<1x32xf32, #tpu.memory_space<vmem>>, %arg8: memref<1x32xf32, #tpu.memory_space<vmem>>, %arg9: memref<1x32xf32, #tpu.memory_space<vmem>>, %arg10: memref<16x32xf32, #tpu.memory_space<vmem>>) attributes {dimension_semantics = [#tpu.dimension_semantics<parallel>], iteration_bounds = array<i64: 1>, scalar_prefetch = 0 : i64, scratch_operands = 0 : i64, tpu.core_type = #tpu.core_type<tc>, window_params = [{transform_indices = @transform_0, window_bounds = array<i64: 16, 32>}, {pipeline_mode = #tpu.pipeline_mode<synchronous>, transform_indices = @transform_1, window_bounds = array<i64: 1, 32>}, {pipeline_mode = #tpu.pipeline_mode<synchronous>, transform_indices = @transform_2, window_bounds = array<i64: 1, 32>}, {pipeline_mode = #tpu.pipeline_mode<synchronous>, transform_indices = @transform_3, window_bounds = array<i64: 32, 64>}, {pipeline_mode = #tpu.pipeline_mode<synchronous>, transform_indices = @transform_4, window_bounds = array<i64: 1, 64>}, {pipeline_mode = #tpu.pipeline_mode<synchronous>, transform_indices = @transform_5, window_bounds = array<i64: 64, 32>}, {pipeline_mode = #tpu.pipeline_mode<synchronous>, transform_indices = @transform_6, window_bounds = array<i64: 1, 32>}, {pipeline_mode = #tpu.pipeline_mode<synchronous>, transform_indices = @transform_7, window_bounds = array<i64: 1, 32>}, {pipeline_mode = #tpu.pipeline_mode<synchronous>, transform_indices = @transform_8, window_bounds = array<i64: 1, 32>}, {transform_indices = @transform_9, window_bounds = array<i64: 16, 32>}]} {
    %c0 = arith.constant 0 : index
    %c0_0 = arith.constant 0 : index
    %0 = vector.load %arg1[%c0, %c0_0] : memref<16x32xf32, #tpu.memory_space<vmem>>, vector<16x32xf32>
    %c0_1 = arith.constant 0 : index
    %c0_2 = arith.constant 0 : index
    %1 = vector.load %arg2[%c0_1, %c0_2] : memref<1x32xf32, #tpu.memory_space<vmem>>, vector<1x32xf32>
    %c0_3 = arith.constant 0 : index
    %c0_4 = arith.constant 0 : index
    %2 = vector.load %arg3[%c0_3, %c0_4] : memref<1x32xf32, #tpu.memory_space<vmem>>, vector<1x32xf32>
    %cst = arith.constant dense<0.000000e+00> : vector<16xf32>
    %3 = vector.multi_reduction <add>, %0, %cst [1] : vector<16x32xf32> to vector<16xf32>
    %4 = vector.shape_cast %3 : vector<16xf32> to vector<16x1xf32>
    %cst_5 = arith.constant 3.200000e+01 : f32
    %5 = vector.broadcast %cst_5 : f32 to vector<16x1xf32>
    %6 = arith.divf %4, %5 : vector<16x1xf32>
    %7 = vector.broadcast %6 : vector<16x1xf32> to vector<16x32xf32>
    %8 = arith.subf %0, %7 : vector<16x32xf32>
    %9 = arith.mulf %8, %8 : vector<16x32xf32>
    %cst_6 = arith.constant dense<0.000000e+00> : vector<16xf32>
    %10 = vector.multi_reduction <add>, %9, %cst_6 [1] : vector<16x32xf32> to vector<16xf32>
    %11 = vector.shape_cast %10 : vector<16xf32> to vector<16x1xf32>
    %cst_7 = arith.constant 3.100000e+01 : f32
    %12 = vector.broadcast %cst_7 : f32 to vector<16x1xf32>
    %13 = arith.divf %11, %12 : vector<16x1xf32>
    %14 = math.sqrt %13 : vector<16x1xf32>
    %cst_8 = arith.constant 9.99999997E-7 : f32
    %15 = vector.broadcast %cst_8 : f32 to vector<16x1xf32>
    %16 = arith.addf %14, %15 : vector<16x1xf32>
    %17 = tpu.reciprocal %16 : vector<16x1xf32> -> vector<16x1xf32>
    %18 = vector.broadcast %17 : vector<16x1xf32> to vector<16x32xf32>
    %19 = arith.mulf %8, %18 : vector<16x32xf32>
    %20 = vector.broadcast %1 : vector<1x32xf32> to vector<16x32xf32>
    %21 = arith.mulf %20, %19 : vector<16x32xf32>
    %22 = vector.broadcast %2 : vector<1x32xf32> to vector<16x32xf32>
    %23 = arith.addf %21, %22 : vector<16x32xf32>
    %c0_9 = arith.constant 0 : index
    %c0_10 = arith.constant 0 : index
    %24 = vector.load %arg4[%c0_9, %c0_10] : memref<32x64xf32, #tpu.memory_space<vmem>>, vector<32x64xf32>
    %cst_11 = arith.constant dense<0.000000e+00> : vector<16x64xf32>
    %25 = tpu.matmul %23, %24, %cst_11 {dimension_numbers = #tpu.dot_dimension_numbers<[1], [0], [0], [1], [0, 0, 1, 1], [], []>} : vector<16x32xf32>, vector<32x64xf32>, vector<16x64xf32> -> vector<16x64xf32>
    %c0_12 = arith.constant 0 : index
    %c0_13 = arith.constant 0 : index
    %26 = vector.load %arg5[%c0_12, %c0_13] : memref<1x64xf32, #tpu.memory_space<vmem>>, vector<1x64xf32>
    %27 = vector.broadcast %26 : vector<1x64xf32> to vector<16x64xf32>
    %28 = arith.addf %25, %27 : vector<16x64xf32>
    %cst_14 = arith.constant 0.000000e+00 : f32
    %29 = vector.broadcast %cst_14 : f32 to vector<16x64xf32>
    %30 = arith.maximumf %28, %29 : vector<16x64xf32>
    %c0_15 = arith.constant 0 : index
    %c0_16 = arith.constant 0 : index
    %31 = vector.load %arg6[%c0_15, %c0_16] : memref<64x32xf32, #tpu.memory_space<vmem>>, vector<64x32xf32>
    %cst_17 = arith.constant dense<0.000000e+00> : vector<16x32xf32>
    %32 = tpu.matmul %30, %31, %cst_17 {dimension_numbers = #tpu.dot_dimension_numbers<[1], [0], [0], [1], [0, 0, 1, 1], [], []>} : vector<16x64xf32>, vector<64x32xf32>, vector<16x32xf32> -> vector<16x32xf32>
    %c0_18 = arith.constant 0 : index
    %c0_19 = arith.constant 0 : index
    %33 = vector.load %arg7[%c0_18, %c0_19] : memref<1x32xf32, #tpu.memory_space<vmem>>, vector<1x32xf32>
    %34 = vector.broadcast %33 : vector<1x32xf32> to vector<16x32xf32>
    %35 = arith.addf %32, %34 : vector<16x32xf32>
    %36 = arith.addf %35, %0 : vector<16x32xf32>
    %c0_20 = arith.constant 0 : index
    %c0_21 = arith.constant 0 : index
    %37 = vector.load %arg8[%c0_20, %c0_21] : memref<1x32xf32, #tpu.memory_space<vmem>>, vector<1x32xf32>
    %c0_22 = arith.constant 0 : index
    %c0_23 = arith.constant 0 : index
    %38 = vector.load %arg9[%c0_22, %c0_23] : memref<1x32xf32, #tpu.memory_space<vmem>>, vector<1x32xf32>
    %cst_24 = arith.constant dense<0.000000e+00> : vector<16xf32>
    %39 = vector.multi_reduction <add>, %36, %cst_24 [1] : vector<16x32xf32> to vector<16xf32>
    %40 = vector.shape_cast %39 : vector<16xf32> to vector<16x1xf32>
    %cst_25 = arith.constant 3.200000e+01 : f32
    %41 = vector.broadcast %cst_25 : f32 to vector<16x1xf32>
    %42 = arith.divf %40, %41 : vector<16x1xf32>
    %43 = vector.broadcast %42 : vector<16x1xf32> to vector<16x32xf32>
    %44 = arith.subf %36, %43 : vector<16x32xf32>
    %45 = arith.mulf %44, %44 : vector<16x32xf32>
    %cst_26 = arith.constant dense<0.000000e+00> : vector<16xf32>
    %46 = vector.multi_reduction <add>, %45, %cst_26 [1] : vector<16x32xf32> to vector<16xf32>
    %47 = vector.shape_cast %46 : vector<16xf32> to vector<16x1xf32>
    %cst_27 = arith.constant 3.100000e+01 : f32
    %48 = vector.broadcast %cst_27 : f32 to vector<16x1xf32>
    %49 = arith.divf %47, %48 : vector<16x1xf32>
    %50 = math.sqrt %49 : vector<16x1xf32>
    %cst_28 = arith.constant 9.99999997E-7 : f32
    %51 = vector.broadcast %cst_28 : f32 to vector<16x1xf32>
    %52 = arith.addf %50, %51 : vector<16x1xf32>
    %53 = tpu.reciprocal %52 : vector<16x1xf32> -> vector<16x1xf32>
    %54 = vector.broadcast %53 : vector<16x1xf32> to vector<16x32xf32>
    %55 = arith.mulf %44, %54 : vector<16x32xf32>
    %56 = vector.broadcast %37 : vector<1x32xf32> to vector<16x32xf32>
    %57 = arith.mulf %56, %55 : vector<16x32xf32>
    %58 = vector.broadcast %38 : vector<1x32xf32> to vector<16x32xf32>
    %59 = arith.addf %57, %58 : vector<16x32xf32>
    %c0_29 = arith.constant 0 : index
    %c0_30 = arith.constant 0 : index
    %60 = vector.load %arg10[%c0_29, %c0_30] : memref<16x32xf32, #tpu.memory_space<vmem>>, vector<16x32xf32>
    tpu.vector_store %arg10[%c0_29, %c0_30], %59 {strides = array<i32>} : memref<16x32xf32, #tpu.memory_space<vmem>>, vector<16x32xf32>,
    return
  }
  func.func @transform_0(%arg0: i32) -> (i32, i32) {
    %c0_i32 = arith.constant 0 : i32
    %c0_i32_0 = arith.constant 0 : i32
    return %arg0, %c0_i32 : i32, i32
  }
  func.func @transform_1(%arg0: i32) -> (i32, i32) {
    %c0_i32 = arith.constant 0 : i32
    %c0_i32_0 = arith.constant 0 : i32
    %c0_i32_1 = arith.constant 0 : i32
    return %c0_i32, %c0_i32_0 : i32, i32
  }
  func.func @transform_2(%arg0: i32) -> (i32, i32) {
    %c0_i32 = arith.constant 0 : i32
    %c0_i32_0 = arith.constant 0 : i32
    %c0_i32_1 = arith.constant 0 : i32
    return %c0_i32, %c0_i32_0 : i32, i32
  }
  func.func @transform_3(%arg0: i32) -> (i32, i32) {
    %c0_i32 = arith.constant 0 : i32
    %c0_i32_0 = arith.constant 0 : i32
    %c0_i32_1 = arith.constant 0 : i32
    return %c0_i32, %c0_i32_0 : i32, i32
  }
  func.func @transform_4(%arg0: i32) -> (i32, i32) {
    %c0_i32 = arith.constant 0 : i32
    %c0_i32_0 = arith.constant 0 : i32
    %c0_i32_1 = arith.constant 0 : i32
    return %c0_i32, %c0_i32_0 : i32, i32
  }
  func.func @transform_5(%arg0: i32) -> (i32, i32) {
    %c0_i32 = arith.constant 0 : i32
    %c0_i32_0 = arith.constant 0 : i32
    %c0_i32_1 = arith.constant 0 : i32
    return %c0_i32, %c0_i32_0 : i32, i32
  }
  func.func @transform_6(%arg0: i32) -> (i32, i32) {
    %c0_i32 = arith.constant 0 : i32
    %c0_i32_0 = arith.constant 0 : i32
    %c0_i32_1 = arith.constant 0 : i32
    return %c0_i32, %c0_i32_0 : i32, i32
  }
  func.func @transform_7(%arg0: i32) -> (i32, i32) {
    %c0_i32 = arith.constant 0 : i32
    %c0_i32_0 = arith.constant 0 : i32
    %c0_i32_1 = arith.constant 0 : i32
    return %c0_i32, %c0_i32_0 : i32, i32
  }
  func.func @transform_8(%arg0: i32) -> (i32, i32) {
    %c0_i32 = arith.constant 0 : i32
    %c0_i32_0 = arith.constant 0 : i32
    %c0_i32_1 = arith.constant 0 : i32
    return %c0_i32, %c0_i32_0 : i32, i32
  }
  func.func @transform_9(%arg0: i32) -> (i32, i32) {
    %c0_i32 = arith.constant 0 : i32
    %c0_i32_0 = arith.constant 0 : i32
    return %arg0, %c0_i32 : i32, i32
  }
}

module attributes {stable_mosaic.version = 11 : i64} {
  func.func @attn_outproj_kernel(%arg0: i32, %arg1: memref<1x8x96xf32, #tpu.memory_space<vmem>>, %arg2: memref<4x8x32xf32, #tpu.memory_space<vmem>>, %arg3: memref<1x32xf32, #tpu.memory_space<vmem>>, %arg4: memref<1x8x32xf32, #tpu.memory_space<vmem>>, %arg5: memref<1x8x32xf32, #tpu.memory_space<vmem>>) attributes {dimension_semantics = [#tpu.dimension_semantics<parallel>], iteration_bounds = array<i64: 2>, scalar_prefetch = 0 : i64, scratch_operands = 0 : i64, tpu.core_type = #tpu.core_type<tc>, window_params = [{transform_indices = @transform_0, window_bounds = array<i64: 1, 8, 96>}, {pipeline_mode = #tpu.pipeline_mode<synchronous>, transform_indices = @transform_1, window_bounds = array<i64: 4, 8, 32>}, {pipeline_mode = #tpu.pipeline_mode<synchronous>, transform_indices = @transform_2, window_bounds = array<i64: 1, 32>}, {transform_indices = @transform_3, window_bounds = array<i64: 1, 8, 32>}, {transform_indices = @transform_4, window_bounds = array<i64: 1, 8, 32>}]} {
    %c0 = arith.constant 0 : index
    %c0_0 = arith.constant 0 : index
    %c0_1 = arith.constant 0 : index
    %0 = vector.load %arg1[%c0, %c0_0, %c0_1] : memref<1x8x96xf32, #tpu.memory_space<vmem>>, vector<1x8x96xf32>
    %1 = vector.shape_cast %0 : vector<1x8x96xf32> to vector<8x96xf32>
    %2 = vector.shape_cast %1 : vector<8x96xf32> to vector<8x12x8xf32>
    %3 = tpu.transpose %2, [1, 0, 2] : vector<8x12x8xf32> -> vector<12x8x8xf32>
    %4 = vector.extract_strided_slice %3 {offsets = [0, 0, 0], sizes = [4, 8, 8], strides = [1, 1, 1]} : vector<12x8x8xf32> to vector<4x8x8xf32>
    %5 = vector.extract_strided_slice %3 {offsets = [4, 0, 0], sizes = [4, 8, 8], strides = [1, 1, 1]} : vector<12x8x8xf32> to vector<4x8x8xf32>
    %6 = vector.extract_strided_slice %3 {offsets = [8, 0, 0], sizes = [4, 8, 8], strides = [1, 1, 1]} : vector<12x8x8xf32> to vector<4x8x8xf32>
    "tpu.trace_start"() <{level = 10 : i32, message = "hqd,hkd->hqk"}> : () -> ()
    %cst = arith.constant dense<0.000000e+00> : vector<4x8x8xf32>
    %7 = tpu.matmul %4, %5, %cst {dimension_numbers = #tpu.dot_dimension_numbers<[2], [2], [1], [1], [0, 0, 0, 1, 1, 1], [0], [0]>} : vector<4x8x8xf32>, vector<4x8x8xf32>, vector<4x8x8xf32> -> vector<4x8x8xf32>
    "tpu.trace_stop"() : () -> ()
    %cst_2 = arith.constant 0.353553385 : f32
    %8 = vector.broadcast %cst_2 : f32 to vector<4x8x8xf32>
    %9 = arith.mulf %7, %8 : vector<4x8x8xf32>
    %cst_3 = arith.constant dense<0xFF800000> : vector<4x8xf32>
    %10 = vector.multi_reduction <maximumf>, %9, %cst_3 [2] : vector<4x8x8xf32> to vector<4x8xf32>
    %11 = vector.shape_cast %10 : vector<4x8xf32> to vector<4x8x1xf32>
    %12 = vector.broadcast %11 : vector<4x8x1xf32> to vector<4x8x8xf32>
    %13 = arith.subf %9, %12 : vector<4x8x8xf32>
    %14 = math.exp %13 : vector<4x8x8xf32>
    %cst_4 = arith.constant dense<0.000000e+00> : vector<4x8xf32>
    %15 = vector.multi_reduction <add>, %14, %cst_4 [2] : vector<4x8x8xf32> to vector<4x8xf32>
    %16 = vector.shape_cast %15 : vector<4x8xf32> to vector<4x8x1xf32>
    %17 = tpu.reciprocal %16 : vector<4x8x1xf32> -> vector<4x8x1xf32>
    %18 = vector.broadcast %17 : vector<4x8x1xf32> to vector<4x8x8xf32>
    %19 = arith.mulf %14, %18 : vector<4x8x8xf32>
    "tpu.trace_start"() <{level = 10 : i32, message = "hqk,hkd->hqd"}> : () -> ()
    %cst_5 = arith.constant dense<0.000000e+00> : vector<4x8x8xf32>
    %20 = tpu.matmul %19, %6, %cst_5 {dimension_numbers = #tpu.dot_dimension_numbers<[2], [1], [1], [2], [0, 0, 0, 1, 1, 2], [0], [0]>} : vector<4x8x8xf32>, vector<4x8x8xf32>, vector<4x8x8xf32> -> vector<4x8x8xf32>
    "tpu.trace_stop"() : () -> ()
    %c0_6 = arith.constant 0 : index
    %c0_7 = arith.constant 0 : index
    %c0_8 = arith.constant 0 : index
    %21 = vector.load %arg2[%c0_6, %c0_7, %c0_8] : memref<4x8x32xf32, #tpu.memory_space<vmem>>, vector<4x8x32xf32>
    "tpu.trace_start"() <{level = 10 : i32, message = "hqd,hdo->hqo"}> : () -> ()
    %cst_9 = arith.constant dense<0.000000e+00> : vector<4x8x32xf32>
    %22 = tpu.matmul %20, %21, %cst_9 {dimension_numbers = #tpu.dot_dimension_numbers<[2], [1], [1], [2], [0, 0, 0, 1, 1, 2], [0], [0]>} : vector<4x8x8xf32>, vector<4x8x32xf32>, vector<4x8x32xf32> -> vector<4x8x32xf32>
    "tpu.trace_stop"() : () -> ()
    %cst_10 = arith.constant dense<0.000000e+00> : vector<8x32xf32>
    %23 = vector.multi_reduction <add>, %22, %cst_10 [0] : vector<4x8x32xf32> to vector<8x32xf32>
    %c0_11 = arith.constant 0 : index
    %c0_12 = arith.constant 0 : index
    %24 = vector.load %arg3[%c0_11, %c0_12] : memref<1x32xf32, #tpu.memory_space<vmem>>, vector<1x32xf32>
    %25 = vector.broadcast %24 : vector<1x32xf32> to vector<8x32xf32>
    %26 = arith.addf %23, %25 : vector<8x32xf32>
    %c0_13 = arith.constant 0 : index
    %c0_14 = arith.constant 0 : index
    %c0_15 = arith.constant 0 : index
    %27 = vector.load %arg4[%c0_13, %c0_14, %c0_15] : memref<1x8x32xf32, #tpu.memory_space<vmem>>, vector<1x8x32xf32>
    %28 = vector.shape_cast %27 : vector<1x8x32xf32> to vector<8x32xf32>
    %29 = arith.addf %26, %28 : vector<8x32xf32>
    %c0_16 = arith.constant 0 : index
    %c0_17 = arith.constant 0 : index
    %c0_18 = arith.constant 0 : index
    %30 = vector.load %arg5[%c0_16, %c0_17, %c0_18] : memref<1x8x32xf32, #tpu.memory_space<vmem>>, vector<1x8x32xf32>
    %31 = vector.shape_cast %30 : vector<1x8x32xf32> to vector<8x32xf32>
    %32 = vector.shape_cast %29 : vector<8x32xf32> to vector<1x8x32xf32>
    tpu.vector_store %arg5[%c0_16, %c0_17, %c0_18], %32 {strides = array<i32>} : memref<1x8x32xf32, #tpu.memory_space<vmem>>, vector<1x8x32xf32>,
    return
  }
  func.func @transform_0(%arg0: i32) -> (i32, i32, i32) {
    %c0_i32 = arith.constant 0 : i32
    %c0_i32_0 = arith.constant 0 : i32
    %c0_i32_1 = arith.constant 0 : i32
    return %arg0, %c0_i32, %c0_i32_0 : i32, i32, i32
  }
  func.func @transform_1(%arg0: i32) -> (i32, i32, i32) {
    %c0_i32 = arith.constant 0 : i32
    %c0_i32_0 = arith.constant 0 : i32
    %c0_i32_1 = arith.constant 0 : i32
    %c0_i32_2 = arith.constant 0 : i32
    return %c0_i32, %c0_i32_0, %c0_i32_1 : i32, i32, i32
  }
  func.func @transform_2(%arg0: i32) -> (i32, i32) {
    %c0_i32 = arith.constant 0 : i32
    %c0_i32_0 = arith.constant 0 : i32
    %c0_i32_1 = arith.constant 0 : i32
    return %c0_i32, %c0_i32_0 : i32, i32
  }
  func.func @transform_3(%arg0: i32) -> (i32, i32, i32) {
    %c0_i32 = arith.constant 0 : i32
    %c0_i32_0 = arith.constant 0 : i32
    %c0_i32_1 = arith.constant 0 : i32
    return %arg0, %c0_i32, %c0_i32_0 : i32, i32, i32
  }
  func.func @transform_4(%arg0: i32) -> (i32, i32, i32) {
    %c0_i32 = arith.constant 0 : i32
    %c0_i32_0 = arith.constant 0 : i32
    %c0_i32_1 = arith.constant 0 : i32
    return %arg0, %c0_i32, %c0_i32_0 : i32, i32, i32
  }
}

</mosaic_0001>

<llo_original>
// kernel: _lambda_.8
$region0: #{_lambda_.8}
  #allocation0 [shape = 'u32[]', space=smem, size = 0x4, offset = 0x4, fixed_abs, tag = 'smem constant byte address 0x4 - core index']
  #allocation1 [shape = 'u32[72,128]{1,0:T(1,128)}', space=vmem, size = 0x9000, scoped, tag = 'internal scratch']
  %s0 = inlined_call_operand.vmem [shape: f32[16,32], index: 0, kind: input, shape index: {}]
  %s1 = inlined_call_operand.vmem [shape: f32[1,32], index: 1, kind: input, shape index: {}]
  %s2 = inlined_call_operand.vmem [shape: f32[1,32], index: 2, kind: input, shape index: {}]
  %s3 = inlined_call_operand.hbm [shape: f32[32,64], index: 3, kind: input, shape index: {}]
  %s4 = inlined_call_operand.vmem [shape: f32[1,64], index: 4, kind: input, shape index: {}]
  %s5 = inlined_call_operand.hbm [shape: f32[64,32], index: 5, kind: input, shape index: {}]
  %s6 = inlined_call_operand.vmem [shape: f32[1,32], index: 6, kind: input, shape index: {}]
  %s7 = inlined_call_operand.vmem [shape: f32[16,32], index: 7, kind: output, shape index: {}]
  %s8 = sld [smem:[#allocation0]]
  $region46: #{_lambda_.8} parent=0
    _
  %s10 = ssub.s32 1, %s8
  %s11 = scalar_select 0, %s10, %s8
  $region1: #{_lambda_.8} parent=0
    #allocation2 [shape = 'u8[16384]{0}', space=vmem, size = 0x4000, scoped, tag = 'input window, operand 3, single buffered']
    #allocation3 [shape = 's32[1]{0}', space=sflag, size = 0x4, scoped, tag = 'scoped memory for _lambda_.8']
    #allocation4 [shape = 'u8[32768]{0}', space=vmem, size = 0x8000, scoped, tag = 'input window, operand 5, single buffered']
    #allocation5 [shape = 's32[1]{0}', space=sflag, size = 0x4, scoped, tag = 'scoped memory for _lambda_.8']
    %12 = vsyncpa [#allocation3], 0
    %13 = vsyncpa [#allocation5], 0
    // Predicated region
    $region2: #{_lambda_.8} parent=1 // pred_check
      _
    $region3: #{_lambda_.8} parent=1 // pred_check_branch
      %15 = sbr.rel (0) target = $region5
    $region4: #{_lambda_.8} parent=1 // pred_region
      _
    $region5: #{_lambda_.8} parent=1 // pred_fallthru
      _
    // Predicated region
    $region6: #{_lambda_.8} parent=1 // pred_check
      _
    $region7: #{_lambda_.8} parent=1 // pred_check_branch
      %17 = sbr.rel (0) target = $region9
    $region8: #{_lambda_.8} parent=1 // pred_region
      _
    $region9: #{_lambda_.8} parent=1 // pred_fallthru
      _
    // Predicated region
    $region10: #{_lambda_.8} parent=1 // pred_check
      _
    $region11: #{_lambda_.8} parent=1 // pred_check_branch
      %19 = sbr.rel (0) target = $region13
    $region12: #{_lambda_.8} parent=1 // pred_region
      _
    $region13: #{_lambda_.8} parent=1 // pred_fallthru
      _
    // Predicated region
    $region14: #{_lambda_.8} parent=1 // pred_check
      _
    $region15: #{_lambda_.8} parent=1 // pred_check_branch
      %21 = sbr.rel (0) target = $region17
    $region16: #{_lambda_.8} parent=1 // pred_region
      %23 = vsyncadd [#allocation3], 0
      %s24 = sshll.u32 %s3, 4
      %s25 = int_to_ptr.hbm [resolvable:$true] %s24
      %s26 = sshll.u32 [#allocation2], 4
      %s27 = int_to_ptr.vmem [resolvable:$true] %s26
      %32 = dma.hbm_to_vmem [thread:$0]  %s25, 512, %s27, [#allocation3], 128, 128, 8
    $region17: #{_lambda_.8} parent=1 // pred_fallthru
      _
    // Predicated region
    $region18: #{_lambda_.8} parent=1 // pred_check
      _
    $region19: #{_lambda_.8} parent=1 // pred_check_branch
      %34 = sbr.rel (0) target = $region21
    $region20: #{_lambda_.8} parent=1 // pred_region
      _
    $region21: #{_lambda_.8} parent=1 // pred_fallthru
      _
    // Predicated region
    $region22: #{_lambda_.8} parent=1 // pred_check
      _
    $region23: #{_lambda_.8} parent=1 // pred_check_branch
      %36 = sbr.rel (0) target = $region25
    $region24: #{_lambda_.8} parent=1 // pred_region
      %38 = vsyncadd [#allocation5], 0
      %s39 = sshll.u32 %s5, 4
      %s40 = int_to_ptr.hbm [resolvable:$true] %s39
      %s41 = sshll.u32 [#allocation4], 4
      %s42 = int_to_ptr.vmem [resolvable:$true] %s41
      %47 = dma.hbm_to_vmem [thread:$0]  %s40, 1024, %s42, [#allocation5], 128, 128, 8
    $region25: #{_lambda_.8} parent=1 // pred_fallthru
      _
    // Predicated region
    $region26: #{_lambda_.8} parent=1 // pred_check
      _
    $region27: #{_lambda_.8} parent=1 // pred_check_branch
      %49 = sbr.rel (0) target = $region29
    $region28: #{_lambda_.8} parent=1 // pred_region
      _
    $region29: #{_lambda_.8} parent=1 // pred_fallthru
      _
    // Predicated region
    $region30: #{_lambda_.8} parent=1 // pred_check
      _
    $region31: #{_lambda_.8} parent=1 // pred_check_branch
      %51 = sbr.rel (0) target = $region33
    $region32: #{_lambda_.8} parent=1 // pred_region
      %53 = dma.done [#allocation3], 512
    $region33: #{_lambda_.8} parent=1 // pred_fallthru
      _
    // Predicated region
    $region34: #{_lambda_.8} parent=1 // pred_check
      _
    $region35: #{_lambda_.8} parent=1 // pred_check_branch
      %55 = sbr.rel (0) target = $region37
    $region36: #{_lambda_.8} parent=1 // pred_region
      %57 = dma.done [#allocation5], 1024
    $region37: #{_lambda_.8} parent=1 // pred_fallthru
      _
    %v58 = vld [vmem:[%s0] sm:$0xff]
    %v59 = vld [vmem:[%s0 + $0x8] sm:$0xff]
    %v60 = vld [vmem:[%s1] sm:$0x1]
    %v61 = vld [vmem:[%s2] sm:$0x1]
    %vm62 = vcmask 261120
    %v63 = vsel %vm62, %v58, 0.0
    %64 = vadd.xlane.f32.xlu0 %v63
    %v65 = vpop.xlane.xlu0 %64
    %v66 = vsel %vm62, %v59, 0.0
    %67 = vadd.xlane.f32.xlu0 %v66
    %v68 = vpop.xlane.xlu0 %67
    %v69 = vrcp.pop 32.0
    %v70 = vmul.f32 32.0, %v69
    %v71 = vsub.f32 1.0, %v70
    %v72 = vmul.f32 %v69, %v71
    %v73 = vadd.f32 %v69, %v72
    %vm74 = vweird.f32 %v69
    %v75 = vsel %vm74, %v69, %v73
    %v76 = vmul.f32 %v65, %v75
    %v77 = vmul.f32 %v68, %v75
    %v78 = vsub.f32 %v58, %v76
    %v79 = vsub.f32 %v59, %v77
    %v80 = vmul.f32 %v78, %v78
    %v81 = vmul.f32 %v79, %v79
    %v82 = vsel %vm62, %v80, 0.0
    %83 = vadd.xlane.f32.xlu0 %v82
    %v84 = vpop.xlane.xlu0 %83
    %v85 = vsel %vm62, %v81, 0.0
    %86 = vadd.xlane.f32.xlu0 %v85
    %v87 = vpop.xlane.xlu0 %86
    %v88 = vrcp.pop 31.0
    %v89 = vmul.f32 31.0, %v88
    %v90 = vsub.f32 1.0, %v89
    %v91 = vmul.f32 %v88, %v90
    %v92 = vadd.f32 %v88, %v91
    %vm93 = vweird.f32 %v88
    %v94 = vsel %vm93, %v88, %v92
    %v95 = vmul.f32 %v84, %v94
    %v96 = vmul.f32 %v87, %v94
    %v97 = vrsqrt.pop %v95
    %v98 = vmul.f32 %v97, %v95
    %v99 = vmul.f32 %v98, %v97
    %v100 = vmul.f32 0.5, %v99
    %v101 = vsub.f32 1.5, %v100
    %v102 = vmul.f32 %v97, %v101
    %v103 = vmul.f32 %v95, %v102
    %vm104 = vcmp.eq.f32.partialorder %v95, inf
    %v105 = vsel %vm104, %v95, %v103
    %vm106 = vcmp.eq.f32.partialorder %v95, 0.0
    %v107 = vand.u32 %v95, 2147483648
    %v108 = vsel %vm106, %v107, %v105
    %v109 = vrsqrt.pop %v96
    %v110 = vmul.f32 %v109, %v96
    %v111 = vmul.f32 %v110, %v109
    %v112 = vmul.f32 0.5, %v111
    %v113 = vsub.f32 1.5, %v112
    %v114 = vmul.f32 %v109, %v113
    %v115 = vmul.f32 %v96, %v114
    %vm116 = vcmp.eq.f32.partialorder %v96, inf
    %v117 = vsel %vm116, %v96, %v115
    %vm118 = vcmp.eq.f32.partialorder %v96, 0.0
    %v119 = vand.u32 %v96, 2147483648
    %v120 = vsel %vm118, %v119, %v117
    %v121 = vadd.f32 %v108, 1e-06
    %v122 = vadd.f32 %v120, 1e-06
    %v123 = vrcp.pop %v121
    %v124 = vmul.f32 %v121, %v123
    %v125 = vsub.f32 1.0, %v124
    %v126 = vmul.f32 %v123, %v125
    %v127 = vadd.f32 %v123, %v126
    %vm128 = vweird.f32 %v121
    %vm129 = vweird.f32 %v123
    %vm130 = vmor %vm128, %vm129
    %v131 = vsel %vm130, %v123, %v127
    %v132 = vand.u32 2147483647, %v121
    %vm133 = vcmp.eq.f32.partialorder %v132, 8.507059e+37
    %v134 = vand.u32 %v121, 2147483648
    %v135 = vor.u32 1.1754944e-38, %v134
    %v136 = vsel %vm133, %v135, %v131
    %v137 = vrcp.pop %v122
    %v138 = vmul.f32 %v122, %v137
    %v139 = vsub.f32 1.0, %v138
    %v140 = vmul.f32 %v137, %v139
    %v141 = vadd.f32 %v137, %v140
    %vm142 = vweird.f32 %v122
    %vm143 = vweird.f32 %v137
    %vm144 = vmor %vm142, %vm143
    %v145 = vsel %vm144, %v137, %v141
    %v146 = vand.u32 2147483647, %v122
    %vm147 = vcmp.eq.f32.partialorder %v146, 8.507059e+37
    %v148 = vand.u32 %v122, 2147483648
    %v149 = vor.u32 1.1754944e-38, %v148
    %v150 = vsel %vm147, %v149, %v145
    %v151 = vmul.f32 %v78, %v136
    %v152 = vmul.f32 %v79, %v150
    %v154 = vperm.slane %v60, 0
    %v156 = vmul.f32 %v154, %v151
    %v157 = vmul.f32 %v154, %v152
    %v159 = vperm.slane %v61, 0
    %v161 = vadd.f32 %v156, %v159
    %v162 = vadd.f32 %v157, %v159
    %v163 = vld [vmem:[#allocation2] sm:$0xff]
    %v164 = vld [vmem:[#allocation2 + $0x8] sm:$0xff]
    %v165 = vld [vmem:[#allocation2 + $0x10] sm:$0xff]
    %v166 = vld [vmem:[#allocation2 + $0x18] sm:$0xff]
    %v167 = vld [vmem:[%s4] sm:$0x1]
    %v169 = vperm.slane %v167, 0
    %v172 = vsel %vm62, %v161, 0
    %v175 = vsel %vm62, %v162, 0
    %177 = vmatpush.msra.mxu0 0.0
    %178 = vmatpush.msra.mxu0 0.0
    %179 = vmatpush.msra.mxu0 0.0
    %180 = vmatpush.msra.mxu0 0.0
    %181 = vmatpush.msra.mxu0 0.0
    %182 = vmatpush.msra.mxu0 0.0
    %183 = vmatpush.msra.mxu0 0.0
    %184 = vmatpush.msra.mxu0 0.0
    %185 = vmatpush.msra.mxu0 0.0
    %186 = vmatpush.msra.mxu0 0.0
    %187 = vmatpush.msra.mxu0 0.0
    %188 = vmatpush.msra.mxu0 0.0
    %189 = vmatpush.msra.mxu0 %v166
    %190 = vmatpush.msra.mxu0 %v165
    %191 = vmatpush.msra.mxu0 %v164
    %192 = vmatpush.msra.mxu0 %v163
    %193 = vmatmul.f32.gmra.mxu0 %v172
    %v194 = vpop.f32.mrf.mxu0
    %v195 = vadd.f32 %v169, %v194
    %196 = vmatmul.f32.gmra.mxu0 %v175
    %v197 = vpop.f32.mrf.mxu0
    %v198 = vadd.f32 %v169, %v197
    %199 = vdwg.mxu0
    %v200 = vmax.f32 %v195, 0.0
    %v201 = vmax.f32 %v198, 0.0
    %v202 = vld [vmem:[#allocation4] sm:$0xff]
    %v203 = vld [vmem:[#allocation4 + $0x8] sm:$0xff]
    %v204 = vld [vmem:[#allocation4 + $0x10] sm:$0xff]
    %v205 = vld [vmem:[#allocation4 + $0x18] sm:$0xff]
    %v206 = vld [vmem:[#allocation4 + $0x20] sm:$0xff]
    %v207 = vld [vmem:[#allocation4 + $0x28] sm:$0xff]
    %v208 = vld [vmem:[#allocation4 + $0x30] sm:$0xff]
    %v209 = vld [vmem:[#allocation4 + $0x38] sm:$0xff]
    %v210 = vld [vmem:[%s6] sm:$0x1]
    %v212 = vperm.slane %v210, 0
    %vm214 = vcmask 523264
    %v216 = vsel %vm214, %v200, 0
    %v219 = vsel %vm214, %v201, 0
    %221 = vmatpush.msra.mxu0 0.0
    %222 = vmatpush.msra.mxu0 0.0
    %223 = vmatpush.msra.mxu0 0.0
    %224 = vmatpush.msra.mxu0 0.0
    %225 = vmatpush.msra.mxu0 0.0
    %226 = vmatpush.msra.mxu0 0.0
    %227 = vmatpush.msra.mxu0 0.0
    %228 = vmatpush.msra.mxu0 0.0
    %229 = vmatpush.msra.mxu0 %v209
    %230 = vmatpush.msra.mxu0 %v208
    %231 = vmatpush.msra.mxu0 %v207
    %232 = vmatpush.msra.mxu0 %v206
    %233 = vmatpush.msra.mxu0 %v205
    %234 = vmatpush.msra.mxu0 %v204
    %235 = vmatpush.msra.mxu0 %v203
    %236 = vmatpush.msra.mxu0 %v202
    %237 = vmatmul.f32.gmra.mxu0 %v216
    %v238 = vpop.f32.mrf.mxu0
    %v239 = vadd.f32 %v212, %v238
    %240 = vmatmul.f32.gmra.mxu0 %v219
    %v241 = vpop.f32.mrf.mxu0
    %v242 = vadd.f32 %v212, %v241
    %243 = vdwg.mxu0
    %v244 = vadd.f32 %v239, %v58
    %v245 = vadd.f32 %v242, %v59
    %246 = vst.msk [vmem:[%s7] sm:$0xff] %vm62, %v244
    %247 = vst.msk [vmem:[%s7 + $0x8] sm:$0xff] %vm62, %v245
    // Predicated region
    $region38: #{_lambda_.8} parent=1 // pred_check
      _
    $region39: #{_lambda_.8} parent=1 // pred_check_branch
      %249 = sbr.rel (0) target = $region41
    $region40: #{_lambda_.8} parent=1 // pred_region
      _
    $region41: #{_lambda_.8} parent=1 // pred_fallthru
      _
    // Predicated region
    $region42: #{_lambda_.8} parent=1 // pred_check
      _
    $region43: #{_lambda_.8} parent=1 // pred_check_branch
      %251 = sbr.rel (0) target = $region45
    $region44: #{_lambda_.8} parent=1 // pred_region
      _
    $region45: #{_lambda_.8} parent=1 // pred_fallthru
      _
    %252 = vsyncpa [#allocation3], 1
    %253 = vsyncpa [#allocation5], 1

// kernel: _lambda_.6
$region0: #{_lambda_.6}
  #allocation0 [shape = 'u32[]', space=smem, size = 0x4, offset = 0x4, fixed_abs, tag = 'smem constant byte address 0x4 - core index']
  #allocation1 [shape = 'u32[72,128]{1,0:T(1,128)}', space=vmem, size = 0x9000, scoped, tag = 'internal scratch']
  %s0 = inlined_call_operand.hbm [shape: f32[16,32], index: 0, kind: input, shape index: {}]
  %s1 = inlined_call_operand.vmem [shape: f32[1,32], index: 1, kind: input, shape index: {}]
  %s2 = inlined_call_operand.vmem [shape: f32[1,32], index: 2, kind: input, shape index: {}]
  %s3 = inlined_call_operand.hbm [shape: f32[32,96], index: 3, kind: input, shape index: {}]
  %s4 = inlined_call_operand.vmem [shape: f32[1,96], index: 4, kind: input, shape index: {}]
  %s5 = inlined_call_operand.vmem [shape: f32[16,96], index: 5, kind: output, shape index: {}]
  %s6 = sld [smem:[#allocation0]]
  $region38: #{_lambda_.6} parent=0
    _
  %s8 = ssub.s32 1, %s6
  %s9 = scalar_select 0, %s8, %s6
  $region1: #{_lambda_.6} parent=0
    #allocation2 [shape = 'u8[8192]{0}', space=vmem, size = 0x2000, scoped, tag = 'input window, operand 0, single buffered']
    #allocation3 [shape = 's32[1]{0}', space=sflag, size = 0x4, scoped, tag = 'scoped memory for _lambda_.6']
    #allocation4 [shape = 'u8[16384]{0}', space=vmem, size = 0x4000, scoped, tag = 'input window, operand 3, single buffered']
    #allocation5 [shape = 's32[1]{0}', space=sflag, size = 0x4, scoped, tag = 'scoped memory for _lambda_.6']
    %10 = vsyncpa [#allocation3], 0
    %11 = vsyncpa [#allocation5], 0
    // Predicated region
    $region2: #{_lambda_.6} parent=1 // pred_check
      _
    $region3: #{_lambda_.6} parent=1 // pred_check_branch
      %13 = sbr.rel (0) target = $region5
    $region4: #{_lambda_.6} parent=1 // pred_region
      %15 = vsyncadd [#allocation3], 0
      %s16 = sshll.u32 %s0, 4
      %s17 = int_to_ptr.hbm [resolvable:$true] %s16
      %s18 = sshll.u32 [#allocation2], 4
      %s19 = int_to_ptr.vmem [resolvable:$true] %s18
      %24 = dma.hbm_to_vmem [thread:$0]  %s17, 256, %s19, [#allocation3], 128, 128, 8
    $region5: #{_lambda_.6} parent=1 // pred_fallthru
      _
    // Predicated region
    $region6: #{_lambda_.6} parent=1 // pred_check
      _
    $region7: #{_lambda_.6} parent=1 // pred_check_branch
      %26 = sbr.rel (0) target = $region9
    $region8: #{_lambda_.6} parent=1 // pred_region
      _
    $region9: #{_lambda_.6} parent=1 // pred_fallthru
      _
    // Predicated region
    $region10: #{_lambda_.6} parent=1 // pred_check
      _
    $region11: #{_lambda_.6} parent=1 // pred_check_branch
      %28 = sbr.rel (0) target = $region13
    $region12: #{_lambda_.6} parent=1 // pred_region
      _
    $region13: #{_lambda_.6} parent=1 // pred_fallthru
      _
    // Predicated region
    $region14: #{_lambda_.6} parent=1 // pred_check
      _
    $region15: #{_lambda_.6} parent=1 // pred_check_branch
      %30 = sbr.rel (0) target = $region17
    $region16: #{_lambda_.6} parent=1 // pred_region
      %32 = vsyncadd [#allocation5], 0
      %s33 = sshll.u32 %s3, 4
      %s34 = int_to_ptr.hbm [resolvable:$true] %s33
      %s35 = sshll.u32 [#allocation4], 4
      %s36 = int_to_ptr.vmem [resolvable:$true] %s35
      %41 = dma.hbm_to_vmem [thread:$0]  %s34, 512, %s36, [#allocation5], 128, 128, 8
    $region17: #{_lambda_.6} parent=1 // pred_fallthru
      _
    // Predicated region
    $region18: #{_lambda_.6} parent=1 // pred_check
      _
    $region19: #{_lambda_.6} parent=1 // pred_check_branch
      %43 = sbr.rel (0) target = $region21
    $region20: #{_lambda_.6} parent=1 // pred_region
      _
    $region21: #{_lambda_.6} parent=1 // pred_fallthru
      _
    // Predicated region
    $region22: #{_lambda_.6} parent=1 // pred_check
      _
    $region23: #{_lambda_.6} parent=1 // pred_check_branch
      %45 = sbr.rel (0) target = $region25
    $region24: #{_lambda_.6} parent=1 // pred_region
      %47 = dma.done [#allocation3], 256
    $region25: #{_lambda_.6} parent=1 // pred_fallthru
      _
    // Predicated region
    $region26: #{_lambda_.6} parent=1 // pred_check
      _
    $region27: #{_lambda_.6} parent=1 // pred_check_branch
      %49 = sbr.rel (0) target = $region29
    $region28: #{_lambda_.6} parent=1 // pred_region
      %51 = dma.done [#allocation5], 512
    $region29: #{_lambda_.6} parent=1 // pred_fallthru
      _
    %v52 = vld [vmem:[#allocation2] sm:$0xff]
    %v53 = vld [vmem:[#allocation2 + $0x8] sm:$0xff]
    %v54 = vld [vmem:[%s1] sm:$0x1]
    %v55 = vld [vmem:[%s2] sm:$0x1]
    %vm56 = vcmask 261120
    %v57 = vsel %vm56, %v52, 0.0
    %58 = vadd.xlane.f32.xlu0 %v57
    %v59 = vpop.xlane.xlu0 %58
    %v60 = vsel %vm56, %v53, 0.0
    %61 = vadd.xlane.f32.xlu0 %v60
    %v62 = vpop.xlane.xlu0 %61
    %v63 = vrcp.pop 32.0
    %v64 = vmul.f32 32.0, %v63
    %v65 = vsub.f32 1.0, %v64
    %v66 = vmul.f32 %v63, %v65
    %v67 = vadd.f32 %v63, %v66
    %vm68 = vweird.f32 %v63
    %v69 = vsel %vm68, %v63, %v67
    %v70 = vmul.f32 %v59, %v69
    %v71 = vmul.f32 %v62, %v69
    %v72 = vsub.f32 %v52, %v70
    %v73 = vsub.f32 %v53, %v71
    %v74 = vmul.f32 %v72, %v72
    %v75 = vmul.f32 %v73, %v73
    %v76 = vsel %vm56, %v74, 0.0
    %77 = vadd.xlane.f32.xlu0 %v76
    %v78 = vpop.xlane.xlu0 %77
    %v79 = vsel %vm56, %v75, 0.0
    %80 = vadd.xlane.f32.xlu0 %v79
    %v81 = vpop.xlane.xlu0 %80
    %v82 = vrcp.pop 31.0
    %v83 = vmul.f32 31.0, %v82
    %v84 = vsub.f32 1.0, %v83
    %v85 = vmul.f32 %v82, %v84
    %v86 = vadd.f32 %v82, %v85
    %vm87 = vweird.f32 %v82
    %v88 = vsel %vm87, %v82, %v86
    %v89 = vmul.f32 %v78, %v88
    %v90 = vmul.f32 %v81, %v88
    %v91 = vrsqrt.pop %v89
    %v92 = vmul.f32 %v91, %v89
    %v93 = vmul.f32 %v92, %v91
    %v94 = vmul.f32 0.5, %v93
    %v95 = vsub.f32 1.5, %v94
    %v96 = vmul.f32 %v91, %v95
    %v97 = vmul.f32 %v89, %v96
    %vm98 = vcmp.eq.f32.partialorder %v89, inf
    %v99 = vsel %vm98, %v89, %v97
    %vm100 = vcmp.eq.f32.partialorder %v89, 0.0
    %v101 = vand.u32 %v89, 2147483648
    %v102 = vsel %vm100, %v101, %v99
    %v103 = vrsqrt.pop %v90
    %v104 = vmul.f32 %v103, %v90
    %v105 = vmul.f32 %v104, %v103
    %v106 = vmul.f32 0.5, %v105
    %v107 = vsub.f32 1.5, %v106
    %v108 = vmul.f32 %v103, %v107
    %v109 = vmul.f32 %v90, %v108
    %vm110 = vcmp.eq.f32.partialorder %v90, inf
    %v111 = vsel %vm110, %v90, %v109
    %vm112 = vcmp.eq.f32.partialorder %v90, 0.0
    %v113 = vand.u32 %v90, 2147483648
    %v114 = vsel %vm112, %v113, %v111
    %v115 = vadd.f32 %v102, 1e-06
    %v116 = vadd.f32 %v114, 1e-06
    %v117 = vrcp.pop %v115
    %v118 = vmul.f32 %v115, %v117
    %v119 = vsub.f32 1.0, %v118
    %v120 = vmul.f32 %v117, %v119
    %v121 = vadd.f32 %v117, %v120
    %vm122 = vweird.f32 %v115
    %vm123 = vweird.f32 %v117
    %vm124 = vmor %vm122, %vm123
    %v125 = vsel %vm124, %v117, %v121
    %v126 = vand.u32 2147483647, %v115
    %vm127 = vcmp.eq.f32.partialorder %v126, 8.507059e+37
    %v128 = vand.u32 %v115, 2147483648
    %v129 = vor.u32 1.1754944e-38, %v128
    %v130 = vsel %vm127, %v129, %v125
    %v131 = vrcp.pop %v116
    %v132 = vmul.f32 %v116, %v131
    %v133 = vsub.f32 1.0, %v132
    %v134 = vmul.f32 %v131, %v133
    %v135 = vadd.f32 %v131, %v134
    %vm136 = vweird.f32 %v116
    %vm137 = vweird.f32 %v131
    %vm138 = vmor %vm136, %vm137
    %v139 = vsel %vm138, %v131, %v135
    %v140 = vand.u32 2147483647, %v116
    %vm141 = vcmp.eq.f32.partialorder %v140, 8.507059e+37
    %v142 = vand.u32 %v116, 2147483648
    %v143 = vor.u32 1.1754944e-38, %v142
    %v144 = vsel %vm141, %v143, %v139
    %v145 = vmul.f32 %v72, %v130
    %v146 = vmul.f32 %v73, %v144
    %v148 = vperm.slane %v54, 0
    %v150 = vmul.f32 %v148, %v145
    %v151 = vmul.f32 %v148, %v146
    %v153 = vperm.slane %v55, 0
    %v155 = vadd.f32 %v150, %v153
    %v156 = vadd.f32 %v151, %v153
    %v157 = vld [vmem:[#allocation4] sm:$0xff]
    %v158 = vld [vmem:[#allocation4 + $0x8] sm:$0xff]
    %v159 = vld [vmem:[#allocation4 + $0x10] sm:$0xff]
    %v160 = vld [vmem:[#allocation4 + $0x18] sm:$0xff]
    %v161 = vld [vmem:[%s4] sm:$0x1]
    %v163 = vperm.slane %v161, 0
    %v166 = vsel %vm56, %v155, 0
    %v169 = vsel %vm56, %v156, 0
    %171 = vmatpush.msra.mxu0 0.0
    %172 = vmatpush.msra.mxu0 0.0
    %173 = vmatpush.msra.mxu0 0.0
    %174 = vmatpush.msra.mxu0 0.0
    %175 = vmatpush.msra.mxu0 0.0
    %176 = vmatpush.msra.mxu0 0.0
    %177 = vmatpush.msra.mxu0 0.0
    %178 = vmatpush.msra.mxu0 0.0
    %179 = vmatpush.msra.mxu0 0.0
    %180 = vmatpush.msra.mxu0 0.0
    %181 = vmatpush.msra.mxu0 0.0
    %182 = vmatpush.msra.mxu0 0.0
    %183 = vmatpush.msra.mxu0 %v160
    %184 = vmatpush.msra.mxu0 %v159
    %185 = vmatpush.msra.mxu0 %v158
    %186 = vmatpush.msra.mxu0 %v157
    %187 = vmatmul.f32.gmra.mxu0 %v166
    %v188 = vpop.f32.mrf.mxu0
    %v189 = vadd.f32 %v163, %v188
    %190 = vmatmul.f32.gmra.mxu0 %v169
    %v191 = vpop.f32.mrf.mxu0
    %v192 = vadd.f32 %v163, %v191
    %193 = vdwg.mxu0
    %vm194 = vcmask 785408
    %195 = vst.msk [vmem:[%s5] sm:$0xff] %vm194, %v189
    %196 = vst.msk [vmem:[%s5 + $0x8] sm:$0xff] %vm194, %v192
    // Predicated region
    $region30: #{_lambda_.6} parent=1 // pred_check
      _
    $region31: #{_lambda_.6} parent=1 // pred_check_branch
      %198 = sbr.rel (0) target = $region33
    $region32: #{_lambda_.6} parent=1 // pred_region
      _
    $region33: #{_lambda_.6} parent=1 // pred_fallthru
      _
    // Predicated region
    $region34: #{_lambda_.6} parent=1 // pred_check
      _
    $region35: #{_lambda_.6} parent=1 // pred_check_branch
      %200 = sbr.rel (0) target = $region37
    $region36: #{_lambda_.6} parent=1 // pred_region
      _
    $region37: #{_lambda_.6} parent=1 // pred_fallthru
      _
    %201 = vsyncpa [#allocation3], 1
    %202 = vsyncpa [#allocation5], 1

// kernel: _lambda_.9
$region0: #{_lambda_.9}
  #allocation0 [shape = 'u32[]', space=smem, size = 0x4, offset = 0x4, fixed_abs, tag = 'smem constant byte address 0x4 - core index']
  #allocation1 [shape = 'u32[72,128]{1,0:T(1,128)}', space=vmem, size = 0x9000, scoped, tag = 'internal scratch']
  %s0 = inlined_call_operand.vmem [shape: f32[16,32], index: 0, kind: input, shape index: {}]
  %s1 = inlined_call_operand.vmem [shape: f32[1,32], index: 1, kind: input, shape index: {}]
  %s2 = inlined_call_operand.vmem [shape: f32[1,32], index: 2, kind: input, shape index: {}]
  %s3 = inlined_call_operand.hbm [shape: f32[32,96], index: 3, kind: input, shape index: {}]
  %s4 = inlined_call_operand.vmem [shape: f32[1,96], index: 4, kind: input, shape index: {}]
  %s5 = inlined_call_operand.vmem [shape: f32[16,96], index: 5, kind: output, shape index: {}]
  %s6 = sld [smem:[#allocation0]]
  $region34: #{_lambda_.9} parent=0
    _
  %s8 = ssub.s32 1, %s6
  %s9 = scalar_select 0, %s8, %s6
  $region1: #{_lambda_.9} parent=0
    #allocation2 [shape = 'u8[16384]{0}', space=vmem, size = 0x4000, scoped, tag = 'input window, operand 3, single buffered']
    #allocation3 [shape = 's32[1]{0}', space=sflag, size = 0x4, scoped, tag = 'scoped memory for _lambda_.9']
    %10 = vsyncpa [#allocation3], 0
    // Predicated region
    $region2: #{_lambda_.9} parent=1 // pred_check
      _
    $region3: #{_lambda_.9} parent=1 // pred_check_branch
      %12 = sbr.rel (0) target = $region5
    $region4: #{_lambda_.9} parent=1 // pred_region
      _
    $region5: #{_lambda_.9} parent=1 // pred_fallthru
      _
    // Predicated region
    $region6: #{_lambda_.9} parent=1 // pred_check
      _
    $region7: #{_lambda_.9} parent=1 // pred_check_branch
      %14 = sbr.rel (0) target = $region9
    $region8: #{_lambda_.9} parent=1 // pred_region
      _
    $region9: #{_lambda_.9} parent=1 // pred_fallthru
      _
    // Predicated region
    $region10: #{_lambda_.9} parent=1 // pred_check
      _
    $region11: #{_lambda_.9} parent=1 // pred_check_branch
      %16 = sbr.rel (0) target = $region13
    $region12: #{_lambda_.9} parent=1 // pred_region
      _
    $region13: #{_lambda_.9} parent=1 // pred_fallthru
      _
    // Predicated region
    $region14: #{_lambda_.9} parent=1 // pred_check
      _
    $region15: #{_lambda_.9} parent=1 // pred_check_branch
      %18 = sbr.rel (0) target = $region17
    $region16: #{_lambda_.9} parent=1 // pred_region
      %20 = vsyncadd [#allocation3], 0
      %s21 = sshll.u32 %s3, 4
      %s22 = int_to_ptr.hbm [resolvable:$true] %s21
      %s23 = sshll.u32 [#allocation2], 4
      %s24 = int_to_ptr.vmem [resolvable:$true] %s23
      %29 = dma.hbm_to_vmem [thread:$0]  %s22, 512, %s24, [#allocation3], 128, 128, 8
    $region17: #{_lambda_.9} parent=1 // pred_fallthru
      _
    // Predicated region
    $region18: #{_lambda_.9} parent=1 // pred_check
      _
    $region19: #{_lambda_.9} parent=1 // pred_check_branch
      %31 = sbr.rel (0) target = $region21
    $region20: #{_lambda_.9} parent=1 // pred_region
      _
    $region21: #{_lambda_.9} parent=1 // pred_fallthru
      _
    // Predicated region
    $region22: #{_lambda_.9} parent=1 // pred_check
      _
    $region23: #{_lambda_.9} parent=1 // pred_check_branch
      %33 = sbr.rel (0) target = $region25
    $region24: #{_lambda_.9} parent=1 // pred_region
      %35 = dma.done [#allocation3], 512
    $region25: #{_lambda_.9} parent=1 // pred_fallthru
      _
    %v36 = vld [vmem:[%s0] sm:$0xff]
    %v37 = vld [vmem:[%s0 + $0x8] sm:$0xff]
    %v38 = vld [vmem:[%s1] sm:$0x1]
    %v39 = vld [vmem:[%s2] sm:$0x1]
    %vm40 = vcmask 261120
    %v41 = vsel %vm40, %v36, 0.0
    %42 = vadd.xlane.f32.xlu0 %v41
    %v43 = vpop.xlane.xlu0 %42
    %v44 = vsel %vm40, %v37, 0.0
    %45 = vadd.xlane.f32.xlu0 %v44
    %v46 = vpop.xlane.xlu0 %45
    %v47 = vrcp.pop 32.0
    %v48 = vmul.f32 32.0, %v47
    %v49 = vsub.f32 1.0, %v48
    %v50 = vmul.f32 %v47, %v49
    %v51 = vadd.f32 %v47, %v50
    %vm52 = vweird.f32 %v47
    %v53 = vsel %vm52, %v47, %v51
    %v54 = vmul.f32 %v43, %v53
    %v55 = vmul.f32 %v46, %v53
    %v56 = vsub.f32 %v36, %v54
    %v57 = vsub.f32 %v37, %v55
    %v58 = vmul.f32 %v56, %v56
    %v59 = vmul.f32 %v57, %v57
    %v60 = vsel %vm40, %v58, 0.0
    %61 = vadd.xlane.f32.xlu0 %v60
    %v62 = vpop.xlane.xlu0 %61
    %v63 = vsel %vm40, %v59, 0.0
    %64 = vadd.xlane.f32.xlu0 %v63
    %v65 = vpop.xlane.xlu0 %64
    %v66 = vrcp.pop 31.0
    %v67 = vmul.f32 31.0, %v66
    %v68 = vsub.f32 1.0, %v67
    %v69 = vmul.f32 %v66, %v68
    %v70 = vadd.f32 %v66, %v69
    %vm71 = vweird.f32 %v66
    %v72 = vsel %vm71, %v66, %v70
    %v73 = vmul.f32 %v62, %v72
    %v74 = vmul.f32 %v65, %v72
    %v75 = vrsqrt.pop %v73
    %v76 = vmul.f32 %v75, %v73
    %v77 = vmul.f32 %v76, %v75
    %v78 = vmul.f32 0.5, %v77
    %v79 = vsub.f32 1.5, %v78
    %v80 = vmul.f32 %v75, %v79
    %v81 = vmul.f32 %v73, %v80
    %vm82 = vcmp.eq.f32.partialorder %v73, inf
    %v83 = vsel %vm82, %v73, %v81
    %vm84 = vcmp.eq.f32.partialorder %v73, 0.0
    %v85 = vand.u32 %v73, 2147483648
    %v86 = vsel %vm84, %v85, %v83
    %v87 = vrsqrt.pop %v74
    %v88 = vmul.f32 %v87, %v74
    %v89 = vmul.f32 %v88, %v87
    %v90 = vmul.f32 0.5, %v89
    %v91 = vsub.f32 1.5, %v90
    %v92 = vmul.f32 %v87, %v91
    %v93 = vmul.f32 %v74, %v92
    %vm94 = vcmp.eq.f32.partialorder %v74, inf
    %v95 = vsel %vm94, %v74, %v93
    %vm96 = vcmp.eq.f32.partialorder %v74, 0.0
    %v97 = vand.u32 %v74, 2147483648
    %v98 = vsel %vm96, %v97, %v95
    %v99 = vadd.f32 %v86, 1e-06
    %v100 = vadd.f32 %v98, 1e-06
    %v101 = vrcp.pop %v99
    %v102 = vmul.f32 %v99, %v101
    %v103 = vsub.f32 1.0, %v102
    %v104 = vmul.f32 %v101, %v103
    %v105 = vadd.f32 %v101, %v104
    %vm106 = vweird.f32 %v99
    %vm107 = vweird.f32 %v101
    %vm108 = vmor %vm106, %vm107
    %v109 = vsel %vm108, %v101, %v105
    %v110 = vand.u32 2147483647, %v99
    %vm111 = vcmp.eq.f32.partialorder %v110, 8.507059e+37
    %v112 = vand.u32 %v99, 2147483648
    %v113 = vor.u32 1.1754944e-38, %v112
    %v114 = vsel %vm111, %v113, %v109
    %v115 = vrcp.pop %v100
    %v116 = vmul.f32 %v100, %v115
    %v117 = vsub.f32 1.0, %v116
    %v118 = vmul.f32 %v115, %v117
    %v119 = vadd.f32 %v115, %v118
    %vm120 = vweird.f32 %v100
    %vm121 = vweird.f32 %v115
    %vm122 = vmor %vm120, %vm121
    %v123 = vsel %vm122, %v115, %v119
    %v124 = vand.u32 2147483647, %v100
    %vm125 = vcmp.eq.f32.partialorder %v124, 8.507059e+37
    %v126 = vand.u32 %v100, 2147483648
    %v127 = vor.u32 1.1754944e-38, %v126
    %v128 = vsel %vm125, %v127, %v123
    %v129 = vmul.f32 %v56, %v114
    %v130 = vmul.f32 %v57, %v128
    %v132 = vperm.slane %v38, 0
    %v134 = vmul.f32 %v132, %v129
    %v135 = vmul.f32 %v132, %v130
    %v137 = vperm.slane %v39, 0
    %v139 = vadd.f32 %v134, %v137
    %v140 = vadd.f32 %v135, %v137
    %v141 = vld [vmem:[#allocation2] sm:$0xff]
    %v142 = vld [vmem:[#allocation2 + $0x8] sm:$0xff]
    %v143 = vld [vmem:[#allocation2 + $0x10] sm:$0xff]
    %v144 = vld [vmem:[#allocation2 + $0x18] sm:$0xff]
    %v145 = vld [vmem:[%s4] sm:$0x1]
    %v147 = vperm.slane %v145, 0
    %v150 = vsel %vm40, %v139, 0
    %v153 = vsel %vm40, %v140, 0
    %155 = vmatpush.msra.mxu0 0.0
    %156 = vmatpush.msra.mxu0 0.0
    %157 = vmatpush.msra.mxu0 0.0
    %158 = vmatpush.msra.mxu0 0.0
    %159 = vmatpush.msra.mxu0 0.0
    %160 = vmatpush.msra.mxu0 0.0
    %161 = vmatpush.msra.mxu0 0.0
    %162 = vmatpush.msra.mxu0 0.0
    %163 = vmatpush.msra.mxu0 0.0
    %164 = vmatpush.msra.mxu0 0.0
    %165 = vmatpush.msra.mxu0 0.0
    %166 = vmatpush.msra.mxu0 0.0
    %167 = vmatpush.msra.mxu0 %v144
    %168 = vmatpush.msra.mxu0 %v143
    %169 = vmatpush.msra.mxu0 %v142
    %170 = vmatpush.msra.mxu0 %v141
    %171 = vmatmul.f32.gmra.mxu0 %v150
    %v172 = vpop.f32.mrf.mxu0
    %v173 = vadd.f32 %v147, %v172
    %174 = vmatmul.f32.gmra.mxu0 %v153
    %v175 = vpop.f32.mrf.mxu0
    %v176 = vadd.f32 %v147, %v175
    %177 = vdwg.mxu0
    %vm178 = vcmask 785408
    %179 = vst.msk [vmem:[%s5] sm:$0xff] %vm178, %v173
    %180 = vst.msk [vmem:[%s5 + $0x8] sm:$0xff] %vm178, %v176
    // Predicated region
    $region26: #{_lambda_.9} parent=1 // pred_check
      _
    $region27: #{_lambda_.9} parent=1 // pred_check_branch
      %182 = sbr.rel (0) target = $region29
    $region28: #{_lambda_.9} parent=1 // pred_region
      _
    $region29: #{_lambda_.9} parent=1 // pred_fallthru
      _
    // Predicated region
    $region30: #{_lambda_.9} parent=1 // pred_check
      _
    $region31: #{_lambda_.9} parent=1 // pred_check_branch
      %184 = sbr.rel (0) target = $region33
    $region32: #{_lambda_.9} parent=1 // pred_region
      _
    $region33: #{_lambda_.9} parent=1 // pred_fallthru
      _
    %185 = vsyncpa [#allocation3], 1

// kernel: _lambda_.7
$region0: #{_lambda_.7}
  #allocation0 [shape = 'u32[]', space=smem, size = 0x4, offset = 0x4, fixed_abs, tag = 'smem constant byte address 0x4 - core index']
  #allocation1 [shape = 'u32[72,128]{1,0:T(1,128)}', space=vmem, size = 0x9000, scoped, tag = 'internal scratch']
  %s0 = inlined_call_operand.vmem [shape: f32[2,8,96], index: 0, kind: input, shape index: {}]
  %s1 = inlined_call_operand.hbm [shape: f32[4,8,32], index: 1, kind: input, shape index: {}]
  %s2 = inlined_call_operand.vmem [shape: f32[1,32], index: 2, kind: input, shape index: {}]
  %s3 = inlined_call_operand.hbm [shape: f32[2,8,32], index: 3, kind: input, shape index: {}]
  %s4 = inlined_call_operand.vmem [shape: f32[2,8,32], index: 4, kind: output, shape index: {}]
  %s5 = sld [smem:[#allocation0]]
  $region57: #{_lambda_.7} parent=0
    _
  %s7 = ssub.s32 1, %s5
  %s8 = scalar_select 0, %s7, %s5
  $region1: #{_lambda_.7} parent=0
    #allocation2 [shape = 'u8[16384]{0}', space=vmem, size = 0x4000, scoped, tag = 'input window, operand 1, single buffered']
    #allocation3 [shape = 's32[2]{0}', space=sflag, size = 0x8, scoped, tag = 'scoped memory for _lambda_.7']
    #allocation4 [shape = 'u8[8192]{0}', space=vmem, size = 0x2000, scoped, tag = 'input window, operand 3']
    #allocation5 [shape = 's32[2]{0}', space=sflag, size = 0x8, scoped, tag = 'scoped memory for _lambda_.7']
    %9 = vsyncpa [#allocation3], 0
    %10 = vsyncpa [#allocation5], 0
    %s11 = scalar_lea.sflag [#allocation5], 1
    %12 = vsyncpa %s11, 0
    loop: start=0, step=1, limit=4
    $region2: #{_lambda_.7} parent=1 // loop_pre_header
      _
    $region3: #{_lambda_.7} parent=1 // loop_header
      %s14 = sphi 0, %s18
      %p15 = scmp.ge.s32.totalorder %s14, 4
      %s24 = sphi 0, %s26
      %s27 = sphi 0, %s24
      %s28 = sphi 0, %s27
      %s44 = sphi 0, %s28
      %s48 = sphi 0, %s48
      %s50 = sphi 0, %s48
      %s51 = sphi 0, %s50
      %s65 = sphi 0, %s51
      %s69 = sphi 0, %s69
      %s71 = sphi 0, %s69
      %s72 = sphi 0, %s71
      %s86 = sphi 0, %s72
      %s92 = sphi 0, %s94
      %s95 = sphi 0, %s92
      %s96 = sphi 0, %s95
      %s112 = sphi 0, %s96
      %s118 = sphi 0, %s120
      %s121 = sphi 0, %s118
      %s122 = sphi 0, %s121
      %s138 = sphi 0, %s122
    $region4: #{_lambda_.7} parent=1 // loop_header_branch
      %17 = sbr.rel (%p15) target = $region8
    $region5: #{_lambda_.7} parent=1 // loop_body
      %s19 = ssub.s32 %s14, 1
      %s20 = ssub.s32 %s14, 2
      %s21 = sadd.s32 %s14, 1
      %s22 = ssub.s32 %s14, %s21
      %p23 = scmp.eq.s32.totalorder %s22, 0
      %s25 = sadd.s32 %s24, 1
      %s26 = scalar_select %p23, %s24, %s25
      %p29 = pneg %p23
      %p30 = scmp.eq.s32.totalorder %s14, 1
      %p31 = por %p29, %p30
      %p32 = scmp.ne.s32.totalorder %s24, %s27
      %p33 = scmp.eq.s32.totalorder %s14, 0
      %p34 = por %p32, %p33
      %p35 = scmp.ne.s32.totalorder %s24, %s27
      %p36 = scmp.eq.s32.totalorder %s19, 1
      %p37 = por %p35, %p36
      %p38 = scmp.ne.s32.totalorder %s27, %s28
      %p39 = scmp.eq.s32.totalorder %s19, 0
      %p40 = por %p38, %p39
      %p41 = scmp.ne.s32.totalorder %s27, %s28
      %p42 = scmp.eq.s32.totalorder %s20, 1
      %p43 = por %p41, %p42
      %p45 = scmp.ne.s32.totalorder %s28, %s44
      %p46 = scmp.eq.s32.totalorder %s20, 0
      %p47 = por %p45, %p46
      %s49 = sadd.s32 %s48, 1
      %p52 = scmp.eq.s32.totalorder %s14, 1
      %p53 = scmp.ne.s32.totalorder %s48, %s50
      %p54 = scmp.eq.s32.totalorder %s14, 0
      %p55 = por %p53, %p54
      %p56 = scmp.ne.s32.totalorder %s48, %s50
      %p57 = scmp.eq.s32.totalorder %s19, 1
      %p58 = por %p56, %p57
      %p59 = scmp.ne.s32.totalorder %s50, %s51
      %p60 = scmp.eq.s32.totalorder %s19, 0
      %p61 = por %p59, %p60
      %p62 = scmp.ne.s32.totalorder %s50, %s51
      %p63 = scmp.eq.s32.totalorder %s20, 1
      %p64 = por %p62, %p63
      %p66 = scmp.ne.s32.totalorder %s51, %s65
      %p67 = scmp.eq.s32.totalorder %s20, 0
      %p68 = por %p66, %p67
      %s70 = sadd.s32 %s69, 1
      %p73 = scmp.eq.s32.totalorder %s14, 1
      %p74 = scmp.ne.s32.totalorder %s69, %s71
      %p75 = scmp.eq.s32.totalorder %s14, 0
      %p76 = por %p74, %p75
      %p77 = scmp.ne.s32.totalorder %s69, %s71
      %p78 = scmp.eq.s32.totalorder %s19, 1
      %p79 = por %p77, %p78
      %p80 = scmp.ne.s32.totalorder %s71, %s72
      %p81 = scmp.eq.s32.totalorder %s19, 0
      %p82 = por %p80, %p81
      %p83 = scmp.ne.s32.totalorder %s71, %s72
      %p84 = scmp.eq.s32.totalorder %s20, 1
      %p85 = por %p83, %p84
      %p87 = scmp.ne.s32.totalorder %s72, %s86
      %p88 = scmp.eq.s32.totalorder %s20, 0
      %p89 = por %p87, %p88
      %s90 = ssub.s32 %s14, %s21
      %p91 = scmp.eq.s32.totalorder %s90, 0
      %s93 = sadd.s32 %s92, 1
      %s94 = scalar_select %p91, %s92, %s93
      %p97 = pneg %p91
      %p98 = scmp.eq.s32.totalorder %s14, 1
      %p99 = por %p97, %p98
      %p100 = scmp.ne.s32.totalorder %s92, %s95
      %p101 = scmp.eq.s32.totalorder %s14, 0
      %p102 = por %p100, %p101
      %p103 = scmp.ne.s32.totalorder %s92, %s95
      %p104 = scmp.eq.s32.totalorder %s19, 1
      %p105 = por %p103, %p104
      %p106 = scmp.ne.s32.totalorder %s95, %s96
      %p107 = scmp.eq.s32.totalorder %s19, 0
      %p108 = por %p106, %p107
      %p109 = scmp.ne.s32.totalorder %s95, %s96
      %p110 = scmp.eq.s32.totalorder %s20, 1
      %p111 = por %p109, %p110
      %p113 = scmp.ne.s32.totalorder %s96, %s112
      %p114 = scmp.eq.s32.totalorder %s20, 0
      %p115 = por %p113, %p114
      %s116 = ssub.s32 %s14, %s21
      %p117 = scmp.eq.s32.totalorder %s116, 0
      %s119 = sadd.s32 %s118, 1
      %s120 = scalar_select %p117, %s118, %s119
      %p123 = pneg %p117
      %p124 = scmp.eq.s32.totalorder %s14, 1
      %p125 = por %p123, %p124
      %p126 = scmp.ne.s32.totalorder %s118, %s121
      %p127 = scmp.eq.s32.totalorder %s14, 0
      %p128 = por %p126, %p127
      %p129 = scmp.ne.s32.totalorder %s118, %s121
      %p130 = scmp.eq.s32.totalorder %s19, 1
      %p131 = por %p129, %p130
      %p132 = scmp.ne.s32.totalorder %s121, %s122
      %p133 = scmp.eq.s32.totalorder %s19, 0
      %p134 = por %p132, %p133
      %p135 = scmp.ne.s32.totalorder %s121, %s122
      %p136 = scmp.eq.s32.totalorder %s20, 1
      %p137 = por %p135, %p136
      %p139 = scmp.ne.s32.totalorder %s122, %s138
      %p140 = scmp.eq.s32.totalorder %s20, 0
      %p141 = por %p139, %p140
      %p142 = scmp.le.s32.totalorder 1, %s14
      %p143 = scmp.lt.s32.totalorder %s14, 3
      %p144 = pnand %p142, %p143
      %p145 = pneg %p144
      // Predicated region
      $region9: #{_lambda_.7} parent=5 // pred_check
        _
      $region10: #{_lambda_.7} parent=5 // pred_check_branch
        %147 = sbr.rel (%p144) target = $region12
      $region11: #{_lambda_.7} parent=5 // pred_region
        %s148 = ssub.s32 %s14, 1
        // Predicated region
        $region13: #{_lambda_.7} parent=11 // pred_check
          %p149 = pneg %p61
        $region14: #{_lambda_.7} parent=11 // pred_check_branch
          %151 = sbr.rel (%p149) target = $region16
        $region15: #{_lambda_.7} parent=11 // pred_region
          %153 = vsyncadd [#allocation3], 0
          %s154 = sshll.u32 %s1, 4
          %s155 = int_to_ptr.hbm [resolvable:$true] %s154
          %s156 = sshll.u32 [#allocation2], 4
          %s157 = int_to_ptr.vmem [resolvable:$true] %s156
          %162 = dma.hbm_to_vmem [thread:$0]  %s155, 512, %s157, [#allocation3], 128, 128, 8
        $region16: #{_lambda_.7} parent=11 // pred_fallthru
          _
        // Predicated region
        $region17: #{_lambda_.7} parent=11 // pred_check
          %p163 = pneg %p82
        $region18: #{_lambda_.7} parent=11 // pred_check_branch
          %165 = sbr.rel (%p163) target = $region20
        $region19: #{_lambda_.7} parent=11 // pred_region
          _
        $region20: #{_lambda_.7} parent=11 // pred_fallthru
          _
      $region12: #{_lambda_.7} parent=5 // pred_fallthru
        _
      %p166 = scmp.lt.s32.totalorder %s14, 2
      // Predicated region
      $region21: #{_lambda_.7} parent=5 // pred_check
        %p167 = pneg %p166
      $region22: #{_lambda_.7} parent=5 // pred_check_branch
        %169 = sbr.rel (%p167) target = $region24
      $region23: #{_lambda_.7} parent=5 // pred_region
        // Predicated region
        $region25: #{_lambda_.7} parent=23 // pred_check
          %p170 = pneg %p34
        $region26: #{_lambda_.7} parent=23 // pred_check_branch
          %172 = sbr.rel (%p170) target = $region28
        $region27: #{_lambda_.7} parent=23 // pred_region
          %p173 = scmp.lt.s32.totalorder %s14, 1
          %s174 = scalar_select %p173, %s14, 1
          %s175 = smul.addr %s174, 8
          %s176 = scalar_lea.vmem %s0, %s175
        $region28: #{_lambda_.7} parent=23 // pred_fallthru
          _
        // Predicated region
        $region29: #{_lambda_.7} parent=23 // pred_check
          %p177 = pneg %p102
        $region30: #{_lambda_.7} parent=23 // pred_check_branch
          %179 = sbr.rel (%p177) target = $region32
        $region31: #{_lambda_.7} parent=23 // pred_region
          %s180 = sand.u32 %s92, 1
          %s181 = scalar_lea.sflag [#allocation5], %s180
          %s182 = sand.u32 %s92, 1
          %s183 = smul.addr %s182, 8
          %s184 = scalar_lea.vmem [#allocation4], %s183
          %186 = vsyncadd %s181, 0
          %s187 = smul.addr %s14, 8
          %s188 = scalar_lea.hbm %s3, %s187
          %s190 = sshll.u32 %s188, 4
          %s191 = int_to_ptr.hbm [resolvable:$true] %s190
          %s192 = sshll.u32 %s184, 4
          %s193 = int_to_ptr.vmem [resolvable:$true] %s192
          %195 = dma.hbm_to_vmem [thread:$0]  %s191, 128, %s193, %s181
        $region32: #{_lambda_.7} parent=23 // pred_fallthru
          _
      $region24: #{_lambda_.7} parent=5 // pred_fallthru
        _
      %p196 = scmp.le.s32.totalorder 1, %s14
      %p197 = scmp.lt.s32.totalorder %s14, 3
      %p198 = pnand %p196, %p197
      %p199 = pneg %p198
      // Predicated region
      $region33: #{_lambda_.7} parent=5 // pred_check
        _
      $region34: #{_lambda_.7} parent=5 // pred_check_branch
        %201 = sbr.rel (%p198) target = $region36
      $region35: #{_lambda_.7} parent=5 // pred_region
        %s202 = ssub.s32 %s14, 1
        // Predicated region
        $region37: #{_lambda_.7} parent=35 // pred_check
          %p203 = pneg %p61
        $region38: #{_lambda_.7} parent=35 // pred_check_branch
          %205 = sbr.rel (%p203) target = $region40
        $region39: #{_lambda_.7} parent=35 // pred_region
          %207 = dma.done [#allocation3], 512
        $region40: #{_lambda_.7} parent=35 // pred_fallthru
          _
        %s208 = sand.u32 %s95, 1
        %s209 = scalar_lea.sflag [#allocation5], %s208
        %s210 = sand.u32 %s95, 1
        %s211 = smul.addr %s210, 8
        %s212 = scalar_lea.vmem [#allocation4], %s211
        // Predicated region
        $region41: #{_lambda_.7} parent=35 // pred_check
          %p213 = pneg %p108
        $region42: #{_lambda_.7} parent=35 // pred_check_branch
          %215 = sbr.rel (%p213) target = $region44
        $region43: #{_lambda_.7} parent=35 // pred_region
          %217 = dma.done %s209, 128
        $region44: #{_lambda_.7} parent=35 // pred_fallthru
          _
        %p218 = scmp.lt.s32.totalorder %s19, 1
        %s219 = scalar_select %p218, %s19, 1
        %s220 = smul.addr %s219, 8
        %s221 = scalar_lea.vmem %s0, %s220
        %p222 = pneg %p40
        %p223 = pneg %p37
        %p224 = pneg %p61
        %p225 = pneg %p58
        %p226 = pneg %p82
        %p227 = pneg %p79
        %s228 = sand.u32 %s95, 1
        %s229 = scalar_lea.sflag [#allocation5], %s228
        %s230 = sand.u32 %s95, 1
        %s231 = smul.addr %s230, 8
        %s232 = scalar_lea.vmem [#allocation4], %s231
        %p233 = pneg %p108
        %p234 = pneg %p105
        %p235 = pneg %p134
        %p236 = pneg %p131
        %p237 = scmp.lt.s32.totalorder %s19, 1
        %s238 = scalar_select %p237, %s19, 1
        %s239 = smul.addr %s238, 8
        %s240 = scalar_lea.vmem %s4, %s239
        %p241 = scmp.lt.s32.totalorder %s19, 1
        %s242 = scalar_select %p241, %s19, 1
        %s243 = smul.addr %s242, 8
        %s244 = scalar_lea.vmem %s0, %s243
        %p245 = scmp.lt.s32.totalorder %s19, 1
        %s246 = scalar_select %p245, %s19, 1
        %s247 = smul.addr %s246, 8
        %s248 = scalar_lea.vmem %s4, %s247
        %v249 = vld [vmem:[%s244] sm:$0xff]
        %251 = vrot.lane.b32.xlu0 %v249, 120
        %v252 = vpop.permute.xlu0 %251
        %254 = vrot.lane.b32.xlu0 %v249, 112
        %v255 = vpop.permute.xlu0 %254
        %257 = vrot.lane.b32.xlu0 %v249, 104
        %v258 = vpop.permute.xlu0 %257
        %260 = vrot.lane.b32.xlu0 %v249, 96
        %v261 = vpop.permute.xlu0 %260
        %263 = vrot.lane.b32.xlu0 %v249, 88
        %v264 = vpop.permute.xlu0 %263
        %266 = vrot.lane.b32.xlu0 %v249, 80
        %v267 = vpop.permute.xlu0 %266
        %269 = vrot.lane.b32.xlu0 %v249, 72
        %v270 = vpop.permute.xlu0 %269
        %272 = vrot.lane.b32.xlu0 %v249, 64
        %v273 = vpop.permute.xlu0 %272
        %275 = vrot.lane.b32.xlu0 %v249, 56
        %v276 = vpop.permute.xlu0 %275
        %278 = vrot.lane.b32.xlu0 %v249, 48
        %v279 = vpop.permute.xlu0 %278
        %281 = vrot.lane.b32.xlu0 %v249, 40
        %v282 = vpop.permute.xlu0 %281
        %v284 = vrot.slane %v255, 4
        %vm285 = vcmask 1047556
        %v286 = vsel %vm285, %v284, %v249
        %v287 = vrot.slane %v249, 4
        %v288 = vsel %vm285, %v255, %v287
        %v290 = vunpack.c.l.s4 1983009808
        %v291 = vunpack.c.0.s8 %v290
        %v292 = vperm.slane %v286, %v291
        %v294 = vunpack.c.l.s4 1983009808
        %v295 = vunpack.c.0.s8 %v294
        %v296 = vperm.slane %v288, %v295
        %v297 = vrot.slane %v258, 4
        %v298 = vsel %vm285, %v297, %v252
        %v299 = vrot.slane %v252, 4
        %v300 = vsel %vm285, %v258, %v299
        %v302 = vunpack.c.l.s4 1983009808
        %v303 = vunpack.c.0.s8 %v302
        %v304 = vperm.slane %v298, %v303
        %v306 = vunpack.c.l.s4 1983009808
        %v307 = vunpack.c.0.s8 %v306
        %v308 = vperm.slane %v300, %v307
        %v309 = vrot.slane %v267, 4
        %v310 = vsel %vm285, %v309, %v261
        %v311 = vrot.slane %v261, 4
        %v312 = vsel %vm285, %v267, %v311
        %v314 = vunpack.c.l.s4 1983009808
        %v315 = vunpack.c.0.s8 %v314
        %v316 = vperm.slane %v310, %v315
        %v318 = vunpack.c.l.s4 1983009808
        %v319 = vunpack.c.0.s8 %v318
        %v320 = vperm.slane %v312, %v319
        %v321 = vrot.slane %v270, 4
        %v322 = vsel %vm285, %v321, %v264
        %v323 = vrot.slane %v264, 4
        %v324 = vsel %vm285, %v270, %v323
        %v326 = vunpack.c.l.s4 1983009808
        %v327 = vunpack.c.0.s8 %v326
        %v328 = vperm.slane %v322, %v327
        %v330 = vunpack.c.l.s4 1983009808
        %v331 = vunpack.c.0.s8 %v330
        %v332 = vperm.slane %v324, %v331
        %v333 = vrot.slane %v304, 4
        %v334 = vsel %vm285, %v333, %v292
        %v335 = vrot.slane %v292, 4
        %v336 = vsel %vm285, %v304, %v335
        %v338 = vunpack.c.l.s4 1934713408
        %v339 = vunpack.c.0.s8 %v338
        %v340 = vperm.slane %v334, %v339
        %v342 = vunpack.c.l.s4 1934713408
        %v343 = vunpack.c.0.s8 %v342
        %v344 = vperm.slane %v336, %v343
        %v345 = vrot.slane %v308, 4
        %v346 = vsel %vm285, %v345, %v296
        %v347 = vrot.slane %v296, 4
        %v348 = vsel %vm285, %v308, %v347
        %v350 = vunpack.c.l.s4 1934713408
        %v351 = vunpack.c.0.s8 %v350
        %v352 = vperm.slane %v346, %v351
        %v354 = vunpack.c.l.s4 1934713408
        %v355 = vunpack.c.0.s8 %v354
        %v356 = vperm.slane %v348, %v355
        %v357 = vrot.slane %v328, 4
        %v358 = vsel %vm285, %v357, %v316
        %v359 = vrot.slane %v316, 4
        %v360 = vsel %vm285, %v328, %v359
        %v362 = vunpack.c.l.s4 1934713408
        %v363 = vunpack.c.0.s8 %v362
        %v364 = vperm.slane %v358, %v363
        %v366 = vunpack.c.l.s4 1934713408
        %v367 = vunpack.c.0.s8 %v366
        %v368 = vperm.slane %v360, %v367
        %v369 = vrot.slane %v332, 4
        %v370 = vsel %vm285, %v369, %v320
        %v371 = vrot.slane %v320, 4
        %v372 = vsel %vm285, %v332, %v371
        %v374 = vunpack.c.l.s4 1934713408
        %v375 = vunpack.c.0.s8 %v374
        %v376 = vperm.slane %v370, %v375
        %v378 = vunpack.c.l.s4 1934713408
        %v379 = vunpack.c.0.s8 %v378
        %v380 = vperm.slane %v372, %v379
        %v381 = vrot.slane %v364, 4
        %v382 = vsel %vm285, %v381, %v340
        %v383 = vrot.slane %v340, 4
        %v384 = vsel %vm285, %v364, %v383
        %v385 = vrot.slane %v368, 4
        %v386 = vsel %vm285, %v385, %v344
        %v387 = vrot.slane %v344, 4
        %v388 = vsel %vm285, %v368, %v387
        %v389 = vrot.slane %v376, 4
        %v390 = vsel %vm285, %v389, %v352
        %v391 = vrot.slane %v352, 4
        %v392 = vsel %vm285, %v376, %v391
        %v393 = vrot.slane %v380, 4
        %v394 = vsel %vm285, %v393, %v356
        %v395 = vrot.slane %v356, 4
        %v396 = vsel %vm285, %v380, %v395
        %v397 = vrot.slane %v279, 4
        %v398 = vsel %vm285, %v397, %v273
        %v399 = vrot.slane %v273, 4
        %v400 = vsel %vm285, %v279, %v399
        %v402 = vunpack.c.l.s4 1983009808
        %v403 = vunpack.c.0.s8 %v402
        %v404 = vperm.slane %v398, %v403
        %v406 = vunpack.c.l.s4 1983009808
        %v407 = vunpack.c.0.s8 %v406
        %v408 = vperm.slane %v400, %v407
        %v409 = vrot.slane %v282, 4
        %v410 = vsel %vm285, %v409, %v276
        %v411 = vrot.slane %v276, 4
        %v412 = vsel %vm285, %v282, %v411
        %v414 = vunpack.c.l.s4 1983009808
        %v415 = vunpack.c.0.s8 %v414
        %v416 = vperm.slane %v410, %v415
        %v418 = vunpack.c.l.s4 1983009808
        %v419 = vunpack.c.0.s8 %v418
        %v420 = vperm.slane %v412, %v419
        %v421 = vrot.slane %v416, 4
        %v422 = vsel %vm285, %v421, %v404
        %v423 = vrot.slane %v404, 4
        %v424 = vsel %vm285, %v416, %v423
        %v426 = vunpack.c.l.s4 1934713408
        %v427 = vunpack.c.0.s8 %v426
        %v428 = vperm.slane %v422, %v427
        %v430 = vunpack.c.l.s4 1934713408
        %v431 = vunpack.c.0.s8 %v430
        %v432 = vperm.slane %v424, %v431
        %v433 = vrot.slane %v420, 4
        %v434 = vsel %vm285, %v433, %v408
        %v435 = vrot.slane %v408, 4
        %v436 = vsel %vm285, %v420, %v435
        %v438 = vunpack.c.l.s4 1934713408
        %v439 = vunpack.c.0.s8 %v438
        %v440 = vperm.slane %v434, %v439
        %v442 = vunpack.c.l.s4 1934713408
        %v443 = vunpack.c.0.s8 %v442
        %v444 = vperm.slane %v436, %v443
        %v445 = vrot.slane %v428, 4
        %v446 = vsel %vm285, 0.0, %v445
        %v447 = vrot.slane %v432, 4
        %v448 = vsel %vm285, 0.0, %v447
        %v449 = vrot.slane %v440, 4
        %v450 = vsel %vm285, 0.0, %v449
        %v451 = vrot.slane %v444, 4
        %v452 = vsel %vm285, 0.0, %v451
        %v453 = vrot.slane %v386, 4
        %v454 = vsel %vm285, %v453, %v382
        %v455 = vrot.slane %v382, 4
        %v456 = vsel %vm285, %v386, %v455
        %v458 = vunpack.c.l.s4 1983009808
        %v459 = vunpack.c.0.s8 %v458
        %v460 = vperm.slane %v454, %v459
        %v462 = vunpack.c.l.s4 1983009808
        %v463 = vunpack.c.0.s8 %v462
        %v464 = vperm.slane %v456, %v463
        %v465 = vrot.slane %v388, 4
        %v466 = vsel %vm285, %v465, %v384
        %v467 = vrot.slane %v384, 4
        %v468 = vsel %vm285, %v388, %v467
        %v470 = vunpack.c.l.s4 1983009808
        %v471 = vunpack.c.0.s8 %v470
        %v472 = vperm.slane %v466, %v471
        %v474 = vunpack.c.l.s4 1983009808
        %v475 = vunpack.c.0.s8 %v474
        %v476 = vperm.slane %v468, %v475
        %v477 = vrot.slane %v394, 4
        %v478 = vsel %vm285, %v477, %v390
        %v479 = vrot.slane %v390, 4
        %v480 = vsel %vm285, %v394, %v479
        %v482 = vunpack.c.l.s4 1983009808
        %v483 = vunpack.c.0.s8 %v482
        %v484 = vperm.slane %v478, %v483
        %v486 = vunpack.c.l.s4 1983009808
        %v487 = vunpack.c.0.s8 %v486
        %v488 = vperm.slane %v480, %v487
        %v489 = vrot.slane %v396, 4
        %v490 = vsel %vm285, %v489, %v392
        %v491 = vrot.slane %v392, 4
        %v492 = vsel %vm285, %v396, %v491
        %v494 = vunpack.c.l.s4 1983009808
        %v495 = vunpack.c.0.s8 %v494
        %v496 = vperm.slane %v490, %v495
        %v498 = vunpack.c.l.s4 1983009808
        %v499 = vunpack.c.0.s8 %v498
        %v500 = vperm.slane %v492, %v499
        %v501 = vrot.slane %v472, 4
        %v502 = vsel %vm285, %v501, %v460
        %v503 = vrot.slane %v460, 4
        %v504 = vsel %vm285, %v472, %v503
        %v506 = vunpack.c.l.s4 1934713408
        %v507 = vunpack.c.0.s8 %v506
        %v508 = vperm.slane %v502, %v507
        %v510 = vunpack.c.l.s4 1934713408
        %v511 = vunpack.c.0.s8 %v510
        %v512 = vperm.slane %v504, %v511
        %v513 = vrot.slane %v476, 4
        %v514 = vsel %vm285, %v513, %v464
        %v515 = vrot.slane %v464, 4
        %v516 = vsel %vm285, %v476, %v515
        %v518 = vunpack.c.l.s4 1934713408
        %v519 = vunpack.c.0.s8 %v518
        %v520 = vperm.slane %v514, %v519
        %v522 = vunpack.c.l.s4 1934713408
        %v523 = vunpack.c.0.s8 %v522
        %v524 = vperm.slane %v516, %v523
        %v525 = vrot.slane %v496, 4
        %v526 = vsel %vm285, %v525, %v484
        %v527 = vrot.slane %v484, 4
        %v528 = vsel %vm285, %v496, %v527
        %v530 = vunpack.c.l.s4 1934713408
        %v531 = vunpack.c.0.s8 %v530
        %v532 = vperm.slane %v526, %v531
        %v534 = vunpack.c.l.s4 1934713408
        %v535 = vunpack.c.0.s8 %v534
        %v536 = vperm.slane %v528, %v535
        %v537 = vrot.slane %v500, 4
        %v538 = vsel %vm285, %v537, %v488
        %v539 = vrot.slane %v488, 4
        %v540 = vsel %vm285, %v500, %v539
        %v542 = vunpack.c.l.s4 1934713408
        %v543 = vunpack.c.0.s8 %v542
        %v544 = vperm.slane %v538, %v543
        %v546 = vunpack.c.l.s4 1934713408
        %v547 = vunpack.c.0.s8 %v546
        %v548 = vperm.slane %v540, %v547
        %v549 = vrot.slane %v532, 4
        %v550 = vsel %vm285, %v549, %v508
        %v551 = vrot.slane %v508, 4
        %v552 = vsel %vm285, %v532, %v551
        %v553 = vrot.slane %v536, 4
        %v554 = vsel %vm285, %v553, %v512
        %v555 = vrot.slane %v512, 4
        %v556 = vsel %vm285, %v536, %v555
        %v557 = vrot.slane %v544, 4
        %v558 = vsel %vm285, %v557, %v520
        %v559 = vrot.slane %v520, 4
        %v560 = vsel %vm285, %v544, %v559
        %v561 = vrot.slane %v548, 4
        %v562 = vsel %vm285, %v561, %v524
        %v563 = vrot.slane %v524, 4
        %v564 = vsel %vm285, %v548, %v563
        %v565 = vsel %vm285, %v447, %v428
        %v567 = vunpack.c.l.s4 1983009808
        %v568 = vunpack.c.0.s8 %v567
        %v569 = vperm.slane %v565, %v568
        %v570 = vrot.slane %v448, 4
        %v571 = vsel %vm285, %v570, %v446
        %v573 = vunpack.c.l.s4 1983009808
        %v574 = vunpack.c.0.s8 %v573
        %v575 = vperm.slane %v571, %v574
        %v576 = vsel %vm285, %v451, %v440
        %v578 = vunpack.c.l.s4 1983009808
        %v579 = vunpack.c.0.s8 %v578
        %v580 = vperm.slane %v576, %v579
        %v581 = vrot.slane %v452, 4
        %v582 = vsel %vm285, %v581, %v450
        %v584 = vunpack.c.l.s4 1983009808
        %v585 = vunpack.c.0.s8 %v584
        %v586 = vperm.slane %v582, %v585
        %v587 = vrot.slane %v575, 4
        %v588 = vsel %vm285, %v587, %v569
        %v589 = vrot.slane %v569, 4
        %v590 = vsel %vm285, %v575, %v589
        %v592 = vunpack.c.l.s4 1934713408
        %v593 = vunpack.c.0.s8 %v592
        %v594 = vperm.slane %v588, %v593
        %v596 = vunpack.c.l.s4 1934713408
        %v597 = vunpack.c.0.s8 %v596
        %v598 = vperm.slane %v590, %v597
        %v599 = vrot.slane %v586, 4
        %v600 = vsel %vm285, %v599, %v580
        %v601 = vrot.slane %v580, 4
        %v602 = vsel %vm285, %v586, %v601
        %v604 = vunpack.c.l.s4 1934713408
        %v605 = vunpack.c.0.s8 %v604
        %v606 = vperm.slane %v600, %v605
        %v608 = vunpack.c.l.s4 1934713408
        %v609 = vunpack.c.0.s8 %v608
        %v610 = vperm.slane %v602, %v609
        %v611 = vrot.slane %v606, 4
        %v612 = vsel %vm285, %v611, %v594
        %v613 = vrot.slane %v594, 4
        %v614 = vsel %vm285, %v606, %v613
        %v615 = vrot.slane %v610, 4
        %v616 = vsel %vm285, %v615, %v598
        %v617 = vrot.slane %v598, 4
        %v618 = vsel %vm285, %v610, %v617
        %vm619 = vcmask 64512
        %v621 = vsel %vm619, %v550, 0
        %v624 = vsel %vm619, %v558, 0
        %626 = vmatpush.xpose.msra.mxu0 0.0
        %627 = vmatpush.xpose.msra.mxu0 0.0
        %628 = vmatpush.xpose.msra.mxu0 0.0
        %629 = vmatpush.xpose.msra.mxu0 0.0
        %630 = vmatpush.xpose.msra.mxu0 0.0
        %631 = vmatpush.xpose.msra.mxu0 0.0
        %632 = vmatpush.xpose.msra.mxu0 0.0
        %633 = vmatpush.xpose.msra.mxu0 0.0
        %634 = vmatpush.xpose.msra.mxu0 0.0
        %635 = vmatpush.xpose.msra.mxu0 0.0
        %636 = vmatpush.xpose.msra.mxu0 0.0
        %637 = vmatpush.xpose.msra.mxu0 0.0
        %638 = vmatpush.xpose.msra.mxu0 0.0
        %639 = vmatpush.xpose.msra.mxu0 0.0
        %640 = vmatpush.xpose.msra.mxu0 0.0
        %641 = vmatpush.xpose.msra.mxu0 %v624
        %642 = vmatmul.f32.gmra.mxu0 %v621
        %v643 = vpop.f32.mrf.mxu0
        %v644 = vadd.f32 0.0, %v643
        %645 = vdwg.mxu0
        %v647 = vsel %vm619, %v552, 0
        %v650 = vsel %vm619, %v560, 0
        %652 = vmatpush.xpose.msra.mxu0 0.0
        %653 = vmatpush.xpose.msra.mxu0 0.0
        %654 = vmatpush.xpose.msra.mxu0 0.0
        %655 = vmatpush.xpose.msra.mxu0 0.0
        %656 = vmatpush.xpose.msra.mxu0 0.0
        %657 = vmatpush.xpose.msra.mxu0 0.0
        %658 = vmatpush.xpose.msra.mxu0 0.0
        %659 = vmatpush.xpose.msra.mxu0 0.0
        %660 = vmatpush.xpose.msra.mxu0 0.0
        %661 = vmatpush.xpose.msra.mxu0 0.0
        %662 = vmatpush.xpose.msra.mxu0 0.0
        %663 = vmatpush.xpose.msra.mxu0 0.0
        %664 = vmatpush.xpose.msra.mxu0 0.0
        %665 = vmatpush.xpose.msra.mxu0 0.0
        %666 = vmatpush.xpose.msra.mxu0 0.0
        %667 = vmatpush.xpose.msra.mxu0 %v650
        %668 = vmatmul.f32.gmra.mxu0 %v647
        %v669 = vpop.f32.mrf.mxu0
        %v670 = vadd.f32 0.0, %v669
        %671 = vdwg.mxu0
        %v673 = vsel %vm619, %v554, 0
        %v676 = vsel %vm619, %v562, 0
        %678 = vmatpush.xpose.msra.mxu0 0.0
        %679 = vmatpush.xpose.msra.mxu0 0.0
        %680 = vmatpush.xpose.msra.mxu0 0.0
        %681 = vmatpush.xpose.msra.mxu0 0.0
        %682 = vmatpush.xpose.msra.mxu0 0.0
        %683 = vmatpush.xpose.msra.mxu0 0.0
        %684 = vmatpush.xpose.msra.mxu0 0.0
        %685 = vmatpush.xpose.msra.mxu0 0.0
        %686 = vmatpush.xpose.msra.mxu0 0.0
        %687 = vmatpush.xpose.msra.mxu0 0.0
        %688 = vmatpush.xpose.msra.mxu0 0.0
        %689 = vmatpush.xpose.msra.mxu0 0.0
        %690 = vmatpush.xpose.msra.mxu0 0.0
        %691 = vmatpush.xpose.msra.mxu0 0.0
        %692 = vmatpush.xpose.msra.mxu0 0.0
        %693 = vmatpush.xpose.msra.mxu0 %v676
        %694 = vmatmul.f32.gmra.mxu0 %v673
        %v695 = vpop.f32.mrf.mxu0
        %v696 = vadd.f32 0.0, %v695
        %697 = vdwg.mxu0
        %v699 = vsel %vm619, %v556, 0
        %v702 = vsel %vm619, %v564, 0
        %704 = vmatpush.xpose.msra.mxu0 0.0
        %705 = vmatpush.xpose.msra.mxu0 0.0
        %706 = vmatpush.xpose.msra.mxu0 0.0
        %707 = vmatpush.xpose.msra.mxu0 0.0
        %708 = vmatpush.xpose.msra.mxu0 0.0
        %709 = vmatpush.xpose.msra.mxu0 0.0
        %710 = vmatpush.xpose.msra.mxu0 0.0
        %711 = vmatpush.xpose.msra.mxu0 0.0
        %712 = vmatpush.xpose.msra.mxu0 0.0
        %713 = vmatpush.xpose.msra.mxu0 0.0
        %714 = vmatpush.xpose.msra.mxu0 0.0
        %715 = vmatpush.xpose.msra.mxu0 0.0
        %716 = vmatpush.xpose.msra.mxu0 0.0
        %717 = vmatpush.xpose.msra.mxu0 0.0
        %718 = vmatpush.xpose.msra.mxu0 0.0
        %719 = vmatpush.xpose.msra.mxu0 %v702
        %720 = vmatmul.f32.gmra.mxu0 %v699
        %v721 = vpop.f32.mrf.mxu0
        %v722 = vadd.f32 0.0, %v721
        %723 = vdwg.mxu0
        %v724 = vmul.f32 %v644, 0.35355338
        %v725 = vmul.f32 %v670, 0.35355338
        %v726 = vmul.f32 %v696, 0.35355338
        %v727 = vmul.f32 %v722, 0.35355338
        %v728 = vsel %vm619, %v724, -inf
        %729 = vmax.xlane.f32.xlu0 %v728
        %v730 = vpop.xlane.xlu0 %729
        %v731 = vsel %vm619, %v725, -inf
        %732 = vmax.xlane.f32.xlu0 %v731
        %v733 = vpop.xlane.xlu0 %732
        %v734 = vsel %vm619, %v726, -inf
        %735 = vmax.xlane.f32.xlu0 %v734
        %v736 = vpop.xlane.xlu0 %735
        %v737 = vsel %vm619, %v727, -inf
        %738 = vmax.xlane.f32.xlu0 %v737
        %v739 = vpop.xlane.xlu0 %738
        %v740 = vsub.f32 %v724, %v730
        %v741 = vsub.f32 %v725, %v733
        %v742 = vsub.f32 %v726, %v736
        %v743 = vsub.f32 %v727, %v739
        %v744 = vmul.f32 %v740, 1.442695
        %v745 = vpow.pop %v744
        %v746 = vmul.f32 %v741, 1.442695
        %v747 = vpow.pop %v746
        %v748 = vmul.f32 %v742, 1.442695
        %v749 = vpow.pop %v748
        %v750 = vmul.f32 %v743, 1.442695
        %v751 = vpow.pop %v750
        %v752 = vsel %vm619, %v745, 0.0
        %753 = vadd.xlane.f32.xlu0 %v752
        %v754 = vpop.xlane.xlu0 %753
        %v755 = vsel %vm619, %v747, 0.0
        %756 = vadd.xlane.f32.xlu0 %v755
        %v757 = vpop.xlane.xlu0 %756
        %v758 = vsel %vm619, %v749, 0.0
        %759 = vadd.xlane.f32.xlu0 %v758
        %v760 = vpop.xlane.xlu0 %759
        %v761 = vsel %vm619, %v751, 0.0
        %762 = vadd.xlane.f32.xlu0 %v761
        %v763 = vpop.xlane.xlu0 %762
        %v764 = vrcp.pop %v754
        %v765 = vmul.f32 %v754, %v764
        %v766 = vsub.f32 1.0, %v765
        %v767 = vmul.f32 %v764, %v766
        %v768 = vadd.f32 %v764, %v767
        %vm769 = vweird.f32 %v754
        %vm770 = vweird.f32 %v764
        %vm771 = vmor %vm769, %vm770
        %v772 = vsel %vm771, %v764, %v768
        %v773 = vand.u32 2147483647, %v754
        %vm774 = vcmp.eq.f32.partialorder %v773, 8.507059e+37
        %v775 = vand.u32 %v754, 2147483648
        %v776 = vor.u32 1.1754944e-38, %v775
        %v777 = vsel %vm774, %v776, %v772
        %v778 = vrcp.pop %v757
        %v779 = vmul.f32 %v757, %v778
        %v780 = vsub.f32 1.0, %v779
        %v781 = vmul.f32 %v778, %v780
        %v782 = vadd.f32 %v778, %v781
        %vm783 = vweird.f32 %v757
        %vm784 = vweird.f32 %v778
        %vm785 = vmor %vm783, %vm784
        %v786 = vsel %vm785, %v778, %v782
        %v787 = vand.u32 2147483647, %v757
        %vm788 = vcmp.eq.f32.partialorder %v787, 8.507059e+37
        %v789 = vand.u32 %v757, 2147483648
        %v790 = vor.u32 1.1754944e-38, %v789
        %v791 = vsel %vm788, %v790, %v786
        %v792 = vrcp.pop %v760
        %v793 = vmul.f32 %v760, %v792
        %v794 = vsub.f32 1.0, %v793
        %v795 = vmul.f32 %v792, %v794
        %v796 = vadd.f32 %v792, %v795
        %vm797 = vweird.f32 %v760
        %vm798 = vweird.f32 %v792
        %vm799 = vmor %vm797, %vm798
        %v800 = vsel %vm799, %v792, %v796
        %v801 = vand.u32 2147483647, %v760
        %vm802 = vcmp.eq.f32.partialorder %v801, 8.507059e+37
        %v803 = vand.u32 %v760, 2147483648
        %v804 = vor.u32 1.1754944e-38, %v803
        %v805 = vsel %vm802, %v804, %v800
        %v806 = vrcp.pop %v763
        %v807 = vmul.f32 %v763, %v806
        %v808 = vsub.f32 1.0, %v807
        %v809 = vmul.f32 %v806, %v808
        %v810 = vadd.f32 %v806, %v809
        %vm811 = vweird.f32 %v763
        %vm812 = vweird.f32 %v806
        %vm813 = vmor %vm811, %vm812
        %v814 = vsel %vm813, %v806, %v810
        %v815 = vand.u32 2147483647, %v763
        %vm816 = vcmp.eq.f32.partialorder %v815, 8.507059e+37
        %v817 = vand.u32 %v763, 2147483648
        %v818 = vor.u32 1.1754944e-38, %v817
        %v819 = vsel %vm816, %v818, %v814
        %v820 = vmul.f32 %v745, %v777
        %v821 = vmul.f32 %v747, %v791
        %v822 = vmul.f32 %v749, %v805
        %v823 = vmul.f32 %v751, %v819
        %v825 = vsel %vm619, %v820, 0
        %827 = vmatpush.msra.mxu0 0.0
        %828 = vmatpush.msra.mxu0 0.0
        %829 = vmatpush.msra.mxu0 0.0
        %830 = vmatpush.msra.mxu0 0.0
        %831 = vmatpush.msra.mxu0 0.0
        %832 = vmatpush.msra.mxu0 0.0
        %833 = vmatpush.msra.mxu0 0.0
        %834 = vmatpush.msra.mxu0 0.0
        %835 = vmatpush.msra.mxu0 0.0
        %836 = vmatpush.msra.mxu0 0.0
        %837 = vmatpush.msra.mxu0 0.0
        %838 = vmatpush.msra.mxu0 0.0
        %839 = vmatpush.msra.mxu0 0.0
        %840 = vmatpush.msra.mxu0 0.0
        %841 = vmatpush.msra.mxu0 0.0
        %842 = vmatpush.msra.mxu0 %v612
        %843 = vmatmul.f32.gmra.mxu0 %v825
        %v844 = vpop.f32.mrf.mxu0
        %v845 = vadd.f32 0.0, %v844
        %846 = vdwg.mxu0
        %v848 = vsel %vm619, %v821, 0
        %850 = vmatpush.msra.mxu0 0.0
        %851 = vmatpush.msra.mxu0 0.0
        %852 = vmatpush.msra.mxu0 0.0
        %853 = vmatpush.msra.mxu0 0.0
        %854 = vmatpush.msra.mxu0 0.0
        %855 = vmatpush.msra.mxu0 0.0
        %856 = vmatpush.msra.mxu0 0.0
        %857 = vmatpush.msra.mxu0 0.0
        %858 = vmatpush.msra.mxu0 0.0
        %859 = vmatpush.msra.mxu0 0.0
        %860 = vmatpush.msra.mxu0 0.0
        %861 = vmatpush.msra.mxu0 0.0
        %862 = vmatpush.msra.mxu0 0.0
        %863 = vmatpush.msra.mxu0 0.0
        %864 = vmatpush.msra.mxu0 0.0
        %865 = vmatpush.msra.mxu0 %v614
        %866 = vmatmul.f32.gmra.mxu0 %v848
        %v867 = vpop.f32.mrf.mxu0
        %v868 = vadd.f32 0.0, %v867
        %869 = vdwg.mxu0
        %v871 = vsel %vm619, %v822, 0
        %873 = vmatpush.msra.mxu0 0.0
        %874 = vmatpush.msra.mxu0 0.0
        %875 = vmatpush.msra.mxu0 0.0
        %876 = vmatpush.msra.mxu0 0.0
        %877 = vmatpush.msra.mxu0 0.0
        %878 = vmatpush.msra.mxu0 0.0
        %879 = vmatpush.msra.mxu0 0.0
        %880 = vmatpush.msra.mxu0 0.0
        %881 = vmatpush.msra.mxu0 0.0
        %882 = vmatpush.msra.mxu0 0.0
        %883 = vmatpush.msra.mxu0 0.0
        %884 = vmatpush.msra.mxu0 0.0
        %885 = vmatpush.msra.mxu0 0.0
        %886 = vmatpush.msra.mxu0 0.0
        %887 = vmatpush.msra.mxu0 0.0
        %888 = vmatpush.msra.mxu0 %v616
        %889 = vmatmul.f32.gmra.mxu0 %v871
        %v890 = vpop.f32.mrf.mxu0
        %v891 = vadd.f32 0.0, %v890
        %892 = vdwg.mxu0
        %v894 = vsel %vm619, %v823, 0
        %896 = vmatpush.msra.mxu0 0.0
        %897 = vmatpush.msra.mxu0 0.0
        %898 = vmatpush.msra.mxu0 0.0
        %899 = vmatpush.msra.mxu0 0.0
        %900 = vmatpush.msra.mxu0 0.0
        %901 = vmatpush.msra.mxu0 0.0
        %902 = vmatpush.msra.mxu0 0.0
        %903 = vmatpush.msra.mxu0 0.0
        %904 = vmatpush.msra.mxu0 0.0
        %905 = vmatpush.msra.mxu0 0.0
        %906 = vmatpush.msra.mxu0 0.0
        %907 = vmatpush.msra.mxu0 0.0
        %908 = vmatpush.msra.mxu0 0.0
        %909 = vmatpush.msra.mxu0 0.0
        %910 = vmatpush.msra.mxu0 0.0
        %911 = vmatpush.msra.mxu0 %v618
        %912 = vmatmul.f32.gmra.mxu0 %v894
        %v913 = vpop.f32.mrf.mxu0
        %v914 = vadd.f32 0.0, %v913
        %915 = vdwg.mxu0
        %v916 = vld [vmem:[#allocation2] sm:$0xff]
        %v917 = vld [vmem:[#allocation2 + $0x8] sm:$0xff]
        %v918 = vld [vmem:[#allocation2 + $0x10] sm:$0xff]
        %v919 = vld [vmem:[#allocation2 + $0x18] sm:$0xff]
        %v921 = vsel %vm619, %v845, 0
        %923 = vmatpush.msra.mxu0 0.0
        %924 = vmatpush.msra.mxu0 0.0
        %925 = vmatpush.msra.mxu0 0.0
        %926 = vmatpush.msra.mxu0 0.0
        %927 = vmatpush.msra.mxu0 0.0
        %928 = vmatpush.msra.mxu0 0.0
        %929 = vmatpush.msra.mxu0 0.0
        %930 = vmatpush.msra.mxu0 0.0
        %931 = vmatpush.msra.mxu0 0.0
        %932 = vmatpush.msra.mxu0 0.0
        %933 = vmatpush.msra.mxu0 0.0
        %934 = vmatpush.msra.mxu0 0.0
        %935 = vmatpush.msra.mxu0 0.0
        %936 = vmatpush.msra.mxu0 0.0
        %937 = vmatpush.msra.mxu0 0.0
        %938 = vmatpush.msra.mxu0 %v916
        %939 = vmatmul.f32.gmra.mxu0 %v921
        %v940 = vpop.f32.mrf.mxu0
        %v941 = vadd.f32 0.0, %v940
        %942 = vdwg.mxu0
        %v944 = vsel %vm619, %v868, 0
        %946 = vmatpush.msra.mxu0 0.0
        %947 = vmatpush.msra.mxu0 0.0
        %948 = vmatpush.msra.mxu0 0.0
        %949 = vmatpush.msra.mxu0 0.0
        %950 = vmatpush.msra.mxu0 0.0
        %951 = vmatpush.msra.mxu0 0.0
        %952 = vmatpush.msra.mxu0 0.0
        %953 = vmatpush.msra.mxu0 0.0
        %954 = vmatpush.msra.mxu0 0.0
        %955 = vmatpush.msra.mxu0 0.0
        %956 = vmatpush.msra.mxu0 0.0
        %957 = vmatpush.msra.mxu0 0.0
        %958 = vmatpush.msra.mxu0 0.0
        %959 = vmatpush.msra.mxu0 0.0
        %960 = vmatpush.msra.mxu0 0.0
        %961 = vmatpush.msra.mxu0 %v917
        %962 = vmatmul.f32.gmra.mxu0 %v944
        %v963 = vpop.f32.mrf.mxu0
        %v964 = vadd.f32 0.0, %v963
        %965 = vdwg.mxu0
        %v967 = vsel %vm619, %v891, 0
        %969 = vmatpush.msra.mxu0 0.0
        %970 = vmatpush.msra.mxu0 0.0
        %971 = vmatpush.msra.mxu0 0.0
        %972 = vmatpush.msra.mxu0 0.0
        %973 = vmatpush.msra.mxu0 0.0
        %974 = vmatpush.msra.mxu0 0.0
        %975 = vmatpush.msra.mxu0 0.0
        %976 = vmatpush.msra.mxu0 0.0
        %977 = vmatpush.msra.mxu0 0.0
        %978 = vmatpush.msra.mxu0 0.0
        %979 = vmatpush.msra.mxu0 0.0
        %980 = vmatpush.msra.mxu0 0.0
        %981 = vmatpush.msra.mxu0 0.0
        %982 = vmatpush.msra.mxu0 0.0
        %983 = vmatpush.msra.mxu0 0.0
        %984 = vmatpush.msra.mxu0 %v918
        %985 = vmatmul.f32.gmra.mxu0 %v967
        %v986 = vpop.f32.mrf.mxu0
        %v987 = vadd.f32 0.0, %v986
        %988 = vdwg.mxu0
        %v990 = vsel %vm619, %v914, 0
        %992 = vmatpush.msra.mxu0 0.0
        %993 = vmatpush.msra.mxu0 0.0
        %994 = vmatpush.msra.mxu0 0.0
        %995 = vmatpush.msra.mxu0 0.0
        %996 = vmatpush.msra.mxu0 0.0
        %997 = vmatpush.msra.mxu0 0.0
        %998 = vmatpush.msra.mxu0 0.0
        %999 = vmatpush.msra.mxu0 0.0
        %1000 = vmatpush.msra.mxu0 0.0
        %1001 = vmatpush.msra.mxu0 0.0
        %1002 = vmatpush.msra.mxu0 0.0
        %1003 = vmatpush.msra.mxu0 0.0
        %1004 = vmatpush.msra.mxu0 0.0
        %1005 = vmatpush.msra.mxu0 0.0
        %1006 = vmatpush.msra.mxu0 0.0
        %1007 = vmatpush.msra.mxu0 %v919
        %1008 = vmatmul.f32.gmra.mxu0 %v990
        %v1009 = vpop.f32.mrf.mxu0
        %v1010 = vadd.f32 0.0, %v1009
        %1011 = vdwg.mxu0
        %vm1012 = vcmask 261120
        %v1013 = vsel %vm1012, %v941, 0.0
        %v1014 = vsel %vm1012, %v964, 0.0
        %v1015 = vadd.f32 %v1013, %v1014
        %v1016 = vsel %vm1012, %v987, 0.0
        %v1017 = vadd.f32 %v1015, %v1016
        %v1018 = vsel %vm1012, %v1010, 0.0
        %v1019 = vadd.f32 %v1017, %v1018
        %v1020 = vld [vmem:[%s2] sm:$0x1]
        %v1022 = vperm.slane %v1020, 0
        %v1024 = vadd.f32 %v1019, %v1022
        %v1025 = vld [vmem:[%s212] sm:$0xff]
        %v1026 = vadd.f32 %v1024, %v1025
        %1027 = vst.msk [vmem:[%s248] sm:$0xff] %vm1012, %v1026
        %p1028 = scmp.lt.s32.totalorder %s19, 1
        %s1029 = scalar_select %p1028, %s19, 1
        %s1030 = smul.addr %s1029, 8
        %s1031 = scalar_lea.vmem %s4, %s1030
        // Predicated region
        $region45: #{_lambda_.7} parent=35 // pred_check
          %p1032 = pneg %p131
        $region46: #{_lambda_.7} parent=35 // pred_check_branch
          %1034 = sbr.rel (%p1032) target = $region48
        $region47: #{_lambda_.7} parent=35 // pred_region
          _
        $region48: #{_lambda_.7} parent=35 // pred_fallthru
          _
      $region36: #{_lambda_.7} parent=5 // pred_fallthru
        _
      %p1035 = scmp.le.s32.totalorder 2, %s14
      // Predicated region
      $region49: #{_lambda_.7} parent=5 // pred_check
        %p1036 = pneg %p1035
      $region50: #{_lambda_.7} parent=5 // pred_check_branch
        %1038 = sbr.rel (%p1036) target = $region52
      $region51: #{_lambda_.7} parent=5 // pred_region
        %s1039 = ssub.s32 %s14, 2
        // Predicated region
        $region53: #{_lambda_.7} parent=51 // pred_check
          %p1040 = pneg %p137
        $region54: #{_lambda_.7} parent=51 // pred_check_branch
          %1042 = sbr.rel (%p1040) target = $region56
        $region55: #{_lambda_.7} parent=51 // pred_region
          %p1043 = scmp.lt.s32.totalorder %s20, 1
          %s1044 = scalar_select %p1043, %s20, 1
          %s1045 = smul.addr %s1044, 8
          %s1046 = scalar_lea.vmem %s4, %s1045
        $region56: #{_lambda_.7} parent=51 // pred_fallthru
          _
      $region52: #{_lambda_.7} parent=5 // pred_fallthru
        _
    $region6: #{_lambda_.7} parent=1 // loop_footer
      %s18 = sadd.s32 1, %s14
    $region7: #{_lambda_.7} parent=1 // loop_footer_branch
      %13 = sbr.rel target = $region3
    $region8: #{_lambda_.7} parent=1 // loop_exit
      _
    %1047 = vsyncpa [#allocation3], 1
    %s1048 = scalar_lea.sflag [#allocation3], 1
    %1049 = vsyncpa %s1048, 1
    %1050 = vsyncpa [#allocation5], 1
    %s1051 = scalar_lea.sflag [#allocation5], 1
    %1052 = vsyncpa %s1051, 1

// kernel: _lambda_.11
$region0: #{_lambda_.11}
  #allocation0 [shape = 'u32[]', space=smem, size = 0x4, offset = 0x4, fixed_abs, tag = 'smem constant byte address 0x4 - core index']
  #allocation1 [shape = 'u32[72,128]{1,0:T(1,128)}', space=vmem, size = 0x9000, scoped, tag = 'internal scratch']
  %s0 = inlined_call_operand.vmem [shape: f32[16,32], index: 0, kind: input, shape index: {}]
  %s1 = inlined_call_operand.vmem [shape: f32[1,32], index: 1, kind: input, shape index: {}, may-alias: {1,7}]
  %s2 = inlined_call_operand.vmem [shape: f32[1,32], index: 2, kind: input, shape index: {}, may-alias: {2,8}]
  %s3 = inlined_call_operand.hbm [shape: f32[32,64], index: 3, kind: input, shape index: {}]
  %s4 = inlined_call_operand.vmem [shape: f32[1,64], index: 4, kind: input, shape index: {}]
  %s5 = inlined_call_operand.hbm [shape: f32[64,32], index: 5, kind: input, shape index: {}]
  %s6 = inlined_call_operand.vmem [shape: f32[1,32], index: 6, kind: input, shape index: {}]
  %s7 = inlined_call_operand.vmem [shape: f32[1,32], index: 7, kind: input, shape index: {}, may-alias: {1,7}]
  %s8 = inlined_call_operand.vmem [shape: f32[1,32], index: 8, kind: input, shape index: {}, may-alias: {2,8}]
  %s9 = inlined_call_operand.hbm [shape: f32[16,32], index: 9, kind: output, shape index: {}]
  %s10 = sld [smem:[#allocation0]]
  $region54: #{_lambda_.11} parent=0
    _
  %s12 = ssub.s32 1, %s10
  %s13 = scalar_select 0, %s12, %s10
  $region1: #{_lambda_.11} parent=0
    #allocation2 [shape = 'u8[16384]{0}', space=vmem, size = 0x4000, scoped, tag = 'input window, operand 3, single buffered']
    #allocation3 [shape = 's32[1]{0}', space=sflag, size = 0x4, scoped, tag = 'scoped memory for _lambda_.11']
    #allocation4 [shape = 's32[1]{0}', space=sflag, size = 0x4, scoped, tag = 'scoped memory for _lambda_.11']
    #allocation5 [shape = 'u8[32768]{0}', space=vmem, size = 0x8000, scoped, tag = 'input window, operand 5, single buffered']
    #allocation6 [shape = 's32[1]{0}', space=sflag, size = 0x4, scoped, tag = 'scoped memory for _lambda_.11']
    #allocation7 [shape = 'u8[8192]{0}', space=vmem, size = 0x2000, scoped, tag = 'output window, operand 0, single buffered']
    %14 = vsyncpa [#allocation3], 0
    %15 = vsyncpa [#allocation6], 0
    %16 = vsyncpa [#allocation4], 0
    // Predicated region
    $region2: #{_lambda_.11} parent=1 // pred_check
      _
    $region3: #{_lambda_.11} parent=1 // pred_check_branch
      %18 = sbr.rel (0) target = $region5
    $region4: #{_lambda_.11} parent=1 // pred_region
      _
    $region5: #{_lambda_.11} parent=1 // pred_fallthru
      _
    // Predicated region
    $region6: #{_lambda_.11} parent=1 // pred_check
      _
    $region7: #{_lambda_.11} parent=1 // pred_check_branch
      %20 = sbr.rel (0) target = $region9
    $region8: #{_lambda_.11} parent=1 // pred_region
      _
    $region9: #{_lambda_.11} parent=1 // pred_fallthru
      _
    // Predicated region
    $region10: #{_lambda_.11} parent=1 // pred_check
      _
    $region11: #{_lambda_.11} parent=1 // pred_check_branch
      %22 = sbr.rel (0) target = $region13
    $region12: #{_lambda_.11} parent=1 // pred_region
      _
    $region13: #{_lambda_.11} parent=1 // pred_fallthru
      _
    // Predicated region
    $region14: #{_lambda_.11} parent=1 // pred_check
      _
    $region15: #{_lambda_.11} parent=1 // pred_check_branch
      %24 = sbr.rel (0) target = $region17
    $region16: #{_lambda_.11} parent=1 // pred_region
      %26 = vsyncadd [#allocation3], 0
      %s27 = sshll.u32 %s3, 4
      %s28 = int_to_ptr.hbm [resolvable:$true] %s27
      %s29 = sshll.u32 [#allocation2], 4
      %s30 = int_to_ptr.vmem [resolvable:$true] %s29
      %35 = dma.hbm_to_vmem [thread:$0]  %s28, 512, %s30, [#allocation3], 128, 128, 8
    $region17: #{_lambda_.11} parent=1 // pred_fallthru
      _
    // Predicated region
    $region18: #{_lambda_.11} parent=1 // pred_check
      _
    $region19: #{_lambda_.11} parent=1 // pred_check_branch
      %37 = sbr.rel (0) target = $region21
    $region20: #{_lambda_.11} parent=1 // pred_region
      _
    $region21: #{_lambda_.11} parent=1 // pred_fallthru
      _
    // Predicated region
    $region22: #{_lambda_.11} parent=1 // pred_check
      _
    $region23: #{_lambda_.11} parent=1 // pred_check_branch
      %39 = sbr.rel (0) target = $region25
    $region24: #{_lambda_.11} parent=1 // pred_region
      %41 = vsyncadd [#allocation6], 0
      %s42 = sshll.u32 %s5, 4
      %s43 = int_to_ptr.hbm [resolvable:$true] %s42
      %s44 = sshll.u32 [#allocation5], 4
      %s45 = int_to_ptr.vmem [resolvable:$true] %s44
      %50 = dma.hbm_to_vmem [thread:$0]  %s43, 1024, %s45, [#allocation6], 128, 128, 8
    $region25: #{_lambda_.11} parent=1 // pred_fallthru
      _
    // Predicated region
    $region26: #{_lambda_.11} parent=1 // pred_check
      _
    $region27: #{_lambda_.11} parent=1 // pred_check_branch
      %52 = sbr.rel (0) target = $region29
    $region28: #{_lambda_.11} parent=1 // pred_region
      _
    $region29: #{_lambda_.11} parent=1 // pred_fallthru
      _
    // Predicated region
    $region30: #{_lambda_.11} parent=1 // pred_check
      _
    $region31: #{_lambda_.11} parent=1 // pred_check_branch
      %54 = sbr.rel (0) target = $region33
    $region32: #{_lambda_.11} parent=1 // pred_region
      _
    $region33: #{_lambda_.11} parent=1 // pred_fallthru
      _
    // Predicated region
    $region34: #{_lambda_.11} parent=1 // pred_check
      _
    $region35: #{_lambda_.11} parent=1 // pred_check_branch
      %56 = sbr.rel (0) target = $region37
    $region36: #{_lambda_.11} parent=1 // pred_region
      _
    $region37: #{_lambda_.11} parent=1 // pred_fallthru
      _
    // Predicated region
    $region38: #{_lambda_.11} parent=1 // pred_check
      _
    $region39: #{_lambda_.11} parent=1 // pred_check_branch
      %58 = sbr.rel (0) target = $region41
    $region40: #{_lambda_.11} parent=1 // pred_region
      %60 = dma.done [#allocation3], 512
    $region41: #{_lambda_.11} parent=1 // pred_fallthru
      _
    // Predicated region
    $region42: #{_lambda_.11} parent=1 // pred_check
      _
    $region43: #{_lambda_.11} parent=1 // pred_check_branch
      %62 = sbr.rel (0) target = $region45
    $region44: #{_lambda_.11} parent=1 // pred_region
      %64 = dma.done [#allocation6], 1024
    $region45: #{_lambda_.11} parent=1 // pred_fallthru
      _
    %v65 = vld [vmem:[%s0] sm:$0xff]
    %v66 = vld [vmem:[%s0 + $0x8] sm:$0xff]
    %v67 = vld [vmem:[%s1] sm:$0x1]
    %v68 = vld [vmem:[%s2] sm:$0x1]
    %vm69 = vcmask 261120
    %v70 = vsel %vm69, %v65, 0.0
    %71 = vadd.xlane.f32.xlu0 %v70
    %v72 = vpop.xlane.xlu0 %71
    %v73 = vsel %vm69, %v66, 0.0
    %74 = vadd.xlane.f32.xlu0 %v73
    %v75 = vpop.xlane.xlu0 %74
    %v76 = vrcp.pop 32.0
    %v77 = vmul.f32 32.0, %v76
    %v78 = vsub.f32 1.0, %v77
    %v79 = vmul.f32 %v76, %v78
    %v80 = vadd.f32 %v76, %v79
    %vm81 = vweird.f32 %v76
    %v82 = vsel %vm81, %v76, %v80
    %v83 = vmul.f32 %v72, %v82
    %v84 = vmul.f32 %v75, %v82
    %v85 = vsub.f32 %v65, %v83
    %v86 = vsub.f32 %v66, %v84
    %v87 = vmul.f32 %v85, %v85
    %v88 = vmul.f32 %v86, %v86
    %v89 = vsel %vm69, %v87, 0.0
    %90 = vadd.xlane.f32.xlu0 %v89
    %v91 = vpop.xlane.xlu0 %90
    %v92 = vsel %vm69, %v88, 0.0
    %93 = vadd.xlane.f32.xlu0 %v92
    %v94 = vpop.xlane.xlu0 %93
    %v95 = vrcp.pop 31.0
    %v96 = vmul.f32 31.0, %v95
    %v97 = vsub.f32 1.0, %v96
    %v98 = vmul.f32 %v95, %v97
    %v99 = vadd.f32 %v95, %v98
    %vm100 = vweird.f32 %v95
    %v101 = vsel %vm100, %v95, %v99
    %v102 = vmul.f32 %v91, %v101
    %v103 = vmul.f32 %v94, %v101
    %v104 = vrsqrt.pop %v102
    %v105 = vmul.f32 %v104, %v102
    %v106 = vmul.f32 %v105, %v104
    %v107 = vmul.f32 0.5, %v106
    %v108 = vsub.f32 1.5, %v107
    %v109 = vmul.f32 %v104, %v108
    %v110 = vmul.f32 %v102, %v109
    %vm111 = vcmp.eq.f32.partialorder %v102, inf
    %v112 = vsel %vm111, %v102, %v110
    %vm113 = vcmp.eq.f32.partialorder %v102, 0.0
    %v114 = vand.u32 %v102, 2147483648
    %v115 = vsel %vm113, %v114, %v112
    %v116 = vrsqrt.pop %v103
    %v117 = vmul.f32 %v116, %v103
    %v118 = vmul.f32 %v117, %v116
    %v119 = vmul.f32 0.5, %v118
    %v120 = vsub.f32 1.5, %v119
    %v121 = vmul.f32 %v116, %v120
    %v122 = vmul.f32 %v103, %v121
    %vm123 = vcmp.eq.f32.partialorder %v103, inf
    %v124 = vsel %vm123, %v103, %v122
    %vm125 = vcmp.eq.f32.partialorder %v103, 0.0
    %v126 = vand.u32 %v103, 2147483648
    %v127 = vsel %vm125, %v126, %v124
    %v128 = vadd.f32 %v115, 1e-06
    %v129 = vadd.f32 %v127, 1e-06
    %v130 = vrcp.pop %v128
    %v131 = vmul.f32 %v128, %v130
    %v132 = vsub.f32 1.0, %v131
    %v133 = vmul.f32 %v130, %v132
    %v134 = vadd.f32 %v130, %v133
    %vm135 = vweird.f32 %v128
    %vm136 = vweird.f32 %v130
    %vm137 = vmor %vm135, %vm136
    %v138 = vsel %vm137, %v130, %v134
    %v139 = vand.u32 2147483647, %v128
    %vm140 = vcmp.eq.f32.partialorder %v139, 8.507059e+37
    %v141 = vand.u32 %v128, 2147483648
    %v142 = vor.u32 1.1754944e-38, %v141
    %v143 = vsel %vm140, %v142, %v138
    %v144 = vrcp.pop %v129
    %v145 = vmul.f32 %v129, %v144
    %v146 = vsub.f32 1.0, %v145
    %v147 = vmul.f32 %v144, %v146
    %v148 = vadd.f32 %v144, %v147
    %vm149 = vweird.f32 %v129
    %vm150 = vweird.f32 %v144
    %vm151 = vmor %vm149, %vm150
    %v152 = vsel %vm151, %v144, %v148
    %v153 = vand.u32 2147483647, %v129
    %vm154 = vcmp.eq.f32.partialorder %v153, 8.507059e+37
    %v155 = vand.u32 %v129, 2147483648
    %v156 = vor.u32 1.1754944e-38, %v155
    %v157 = vsel %vm154, %v156, %v152
    %v158 = vmul.f32 %v85, %v143
    %v159 = vmul.f32 %v86, %v157
    %v161 = vperm.slane %v67, 0
    %v163 = vmul.f32 %v161, %v158
    %v164 = vmul.f32 %v161, %v159
    %v166 = vperm.slane %v68, 0
    %v168 = vadd.f32 %v163, %v166
    %v169 = vadd.f32 %v164, %v166
    %v170 = vld [vmem:[#allocation2] sm:$0xff]
    %v171 = vld [vmem:[#allocation2 + $0x8] sm:$0xff]
    %v172 = vld [vmem:[#allocation2 + $0x10] sm:$0xff]
    %v173 = vld [vmem:[#allocation2 + $0x18] sm:$0xff]
    %v174 = vld [vmem:[%s4] sm:$0x1]
    %v176 = vperm.slane %v174, 0
    %v179 = vsel %vm69, %v168, 0
    %v182 = vsel %vm69, %v169, 0
    %184 = vmatpush.msra.mxu0 0.0
    %185 = vmatpush.msra.mxu0 0.0
    %186 = vmatpush.msra.mxu0 0.0
    %187 = vmatpush.msra.mxu0 0.0
    %188 = vmatpush.msra.mxu0 0.0
    %189 = vmatpush.msra.mxu0 0.0
    %190 = vmatpush.msra.mxu0 0.0
    %191 = vmatpush.msra.mxu0 0.0
    %192 = vmatpush.msra.mxu0 0.0
    %193 = vmatpush.msra.mxu0 0.0
    %194 = vmatpush.msra.mxu0 0.0
    %195 = vmatpush.msra.mxu0 0.0
    %196 = vmatpush.msra.mxu0 %v173
    %197 = vmatpush.msra.mxu0 %v172
    %198 = vmatpush.msra.mxu0 %v171
    %199 = vmatpush.msra.mxu0 %v170
    %200 = vmatmul.f32.gmra.mxu0 %v179
    %v201 = vpop.f32.mrf.mxu0
    %v202 = vadd.f32 %v176, %v201
    %203 = vmatmul.f32.gmra.mxu0 %v182
    %v204 = vpop.f32.mrf.mxu0
    %v205 = vadd.f32 %v176, %v204
    %206 = vdwg.mxu0
    %v207 = vmax.f32 %v202, 0.0
    %v208 = vmax.f32 %v205, 0.0
    %v209 = vld [vmem:[#allocation5] sm:$0xff]
    %v210 = vld [vmem:[#allocation5 + $0x8] sm:$0xff]
    %v211 = vld [vmem:[#allocation5 + $0x10] sm:$0xff]
    %v212 = vld [vmem:[#allocation5 + $0x18] sm:$0xff]
    %v213 = vld [vmem:[#allocation5 + $0x20] sm:$0xff]
    %v214 = vld [vmem:[#allocation5 + $0x28] sm:$0xff]
    %v215 = vld [vmem:[#allocation5 + $0x30] sm:$0xff]
    %v216 = vld [vmem:[#allocation5 + $0x38] sm:$0xff]
    %v217 = vld [vmem:[%s6] sm:$0x1]
    %v219 = vperm.slane %v217, 0
    %vm221 = vcmask 523264
    %v223 = vsel %vm221, %v207, 0
    %v226 = vsel %vm221, %v208, 0
    %228 = vmatpush.msra.mxu0 0.0
    %229 = vmatpush.msra.mxu0 0.0
    %230 = vmatpush.msra.mxu0 0.0
    %231 = vmatpush.msra.mxu0 0.0
    %232 = vmatpush.msra.mxu0 0.0
    %233 = vmatpush.msra.mxu0 0.0
    %234 = vmatpush.msra.mxu0 0.0
    %235 = vmatpush.msra.mxu0 0.0
    %236 = vmatpush.msra.mxu0 %v216
    %237 = vmatpush.msra.mxu0 %v215
    %238 = vmatpush.msra.mxu0 %v214
    %239 = vmatpush.msra.mxu0 %v213
    %240 = vmatpush.msra.mxu0 %v212
    %241 = vmatpush.msra.mxu0 %v211
    %242 = vmatpush.msra.mxu0 %v210
    %243 = vmatpush.msra.mxu0 %v209
    %244 = vmatmul.f32.gmra.mxu0 %v223
    %v245 = vpop.f32.mrf.mxu0
    %v246 = vadd.f32 %v219, %v245
    %247 = vmatmul.f32.gmra.mxu0 %v226
    %v248 = vpop.f32.mrf.mxu0
    %v249 = vadd.f32 %v219, %v248
    %250 = vdwg.mxu0
    %v251 = vadd.f32 %v246, %v65
    %v252 = vadd.f32 %v249, %v66
    %v253 = vld [vmem:[%s7] sm:$0x1]
    %v254 = vld [vmem:[%s8] sm:$0x1]
    %v255 = vsel %vm69, %v251, 0.0
    %256 = vadd.xlane.f32.xlu0 %v255
    %v257 = vpop.xlane.xlu0 %256
    %v258 = vsel %vm69, %v252, 0.0
    %259 = vadd.xlane.f32.xlu0 %v258
    %v260 = vpop.xlane.xlu0 %259
    %v261 = vmul.f32 %v257, %v82
    %v262 = vmul.f32 %v260, %v82
    %v263 = vsub.f32 %v251, %v261
    %v264 = vsub.f32 %v252, %v262
    %v265 = vmul.f32 %v263, %v263
    %v266 = vmul.f32 %v264, %v264
    %v267 = vsel %vm69, %v265, 0.0
    %268 = vadd.xlane.f32.xlu0 %v267
    %v269 = vpop.xlane.xlu0 %268
    %v270 = vsel %vm69, %v266, 0.0
    %271 = vadd.xlane.f32.xlu0 %v270
    %v272 = vpop.xlane.xlu0 %271
    %v273 = vmul.f32 %v269, %v101
    %v274 = vmul.f32 %v272, %v101
    %v275 = vrsqrt.pop %v273
    %v276 = vmul.f32 %v275, %v273
    %v277 = vmul.f32 %v276, %v275
    %v278 = vmul.f32 0.5, %v277
    %v279 = vsub.f32 1.5, %v278
    %v280 = vmul.f32 %v275, %v279
    %v281 = vmul.f32 %v273, %v280
    %vm282 = vcmp.eq.f32.partialorder %v273, inf
    %v283 = vsel %vm282, %v273, %v281
    %vm284 = vcmp.eq.f32.partialorder %v273, 0.0
    %v285 = vand.u32 %v273, 2147483648
    %v286 = vsel %vm284, %v285, %v283
    %v287 = vrsqrt.pop %v274
    %v288 = vmul.f32 %v287, %v274
    %v289 = vmul.f32 %v288, %v287
    %v290 = vmul.f32 0.5, %v289
    %v291 = vsub.f32 1.5, %v290
    %v292 = vmul.f32 %v287, %v291
    %v293 = vmul.f32 %v274, %v292
    %vm294 = vcmp.eq.f32.partialorder %v274, inf
    %v295 = vsel %vm294, %v274, %v293
    %vm296 = vcmp.eq.f32.partialorder %v274, 0.0
    %v297 = vand.u32 %v274, 2147483648
    %v298 = vsel %vm296, %v297, %v295
    %v299 = vadd.f32 %v286, 1e-06
    %v300 = vadd.f32 %v298, 1e-06
    %v301 = vrcp.pop %v299
    %v302 = vmul.f32 %v299, %v301
    %v303 = vsub.f32 1.0, %v302
    %v304 = vmul.f32 %v301, %v303
    %v305 = vadd.f32 %v301, %v304
    %vm306 = vweird.f32 %v299
    %vm307 = vweird.f32 %v301
    %vm308 = vmor %vm306, %vm307
    %v309 = vsel %vm308, %v301, %v305
    %v310 = vand.u32 2147483647, %v299
    %vm311 = vcmp.eq.f32.partialorder %v310, 8.507059e+37
    %v312 = vand.u32 %v299, 2147483648
    %v313 = vor.u32 1.1754944e-38, %v312
    %v314 = vsel %vm311, %v313, %v309
    %v315 = vrcp.pop %v300
    %v316 = vmul.f32 %v300, %v315
    %v317 = vsub.f32 1.0, %v316
    %v318 = vmul.f32 %v315, %v317
    %v319 = vadd.f32 %v315, %v318
    %vm320 = vweird.f32 %v300
    %vm321 = vweird.f32 %v315
    %vm322 = vmor %vm320, %vm321
    %v323 = vsel %vm322, %v315, %v319
    %v324 = vand.u32 2147483647, %v300
    %vm325 = vcmp.eq.f32.partialorder %v324, 8.507059e+37
    %v326 = vand.u32 %v300, 2147483648
    %v327 = vor.u32 1.1754944e-38, %v326
    %v328 = vsel %vm325, %v327, %v323
    %v329 = vmul.f32 %v263, %v314
    %v330 = vmul.f32 %v264, %v328
    %v332 = vperm.slane %v253, 0
    %v334 = vmul.f32 %v332, %v329
    %v335 = vmul.f32 %v332, %v330
    %v337 = vperm.slane %v254, 0
    %v339 = vadd.f32 %v334, %v337
    %v340 = vadd.f32 %v335, %v337
    %341 = vst.msk [vmem:[#allocation7] sm:$0xff] %vm69, %v339
    %342 = vst.msk [vmem:[#allocation7 + $0x8] sm:$0xff] %vm69, %v340
    // Predicated region
    $region46: #{_lambda_.11} parent=1 // pred_check
      _
    $region47: #{_lambda_.11} parent=1 // pred_check_branch
      %344 = sbr.rel (0) target = $region49
    $region48: #{_lambda_.11} parent=1 // pred_region
      %346 = vsyncadd [#allocation4], 0
      %s347 = sshll.u32 [#allocation7], 4
      %s348 = int_to_ptr.vmem [resolvable:$true] %s347
      %s349 = sshll.u32 %s9, 4
      %s350 = int_to_ptr.hbm [resolvable:$true] %s349
      %355 = dma.vmem_to_hbm [thread:$0]  %s348, 256, %s350, [#allocation4], 128, 128, 8
    $region49: #{_lambda_.11} parent=1 // pred_fallthru
      _
    // Predicated region
    $region50: #{_lambda_.11} parent=1 // pred_check
      _
    $region51: #{_lambda_.11} parent=1 // pred_check_branch
      %357 = sbr.rel (0) target = $region53
    $region52: #{_lambda_.11} parent=1 // pred_region
      %359 = dma.done [#allocation4], 256
    $region53: #{_lambda_.11} parent=1 // pred_fallthru
      _
    %360 = vsyncpa [#allocation3], 1
    %361 = vsyncpa [#allocation6], 1
    %362 = vsyncpa [#allocation4], 1

// kernel: _lambda_.10
$region0: #{_lambda_.10}
  #allocation0 [shape = 'u32[]', space=smem, size = 0x4, offset = 0x4, fixed_abs, tag = 'smem constant byte address 0x4 - core index']
  #allocation1 [shape = 'u32[72,128]{1,0:T(1,128)}', space=vmem, size = 0x9000, scoped, tag = 'internal scratch']
  %s0 = inlined_call_operand.vmem [shape: f32[2,8,96], index: 0, kind: input, shape index: {}]
  %s1 = inlined_call_operand.hbm [shape: f32[4,8,32], index: 1, kind: input, shape index: {}]
  %s2 = inlined_call_operand.vmem [shape: f32[1,32], index: 2, kind: input, shape index: {}]
  %s3 = inlined_call_operand.vmem [shape: f32[2,8,32], index: 3, kind: input, shape index: {}]
  %s4 = inlined_call_operand.vmem [shape: f32[2,8,32], index: 4, kind: output, shape index: {}]
  %s5 = sld [smem:[#allocation0]]
  $region53: #{_lambda_.10} parent=0
    _
  %s7 = ssub.s32 1, %s5
  %s8 = scalar_select 0, %s7, %s5
  $region1: #{_lambda_.10} parent=0
    #allocation2 [shape = 'u8[16384]{0}', space=vmem, size = 0x4000, scoped, tag = 'input window, operand 1, single buffered']
    #allocation3 [shape = 's32[2]{0}', space=sflag, size = 0x8, scoped, tag = 'scoped memory for _lambda_.10']
    %9 = vsyncpa [#allocation3], 0
    loop: start=0, step=1, limit=4
    $region2: #{_lambda_.10} parent=1 // loop_pre_header
      _
    $region3: #{_lambda_.10} parent=1 // loop_header
      %s11 = sphi 0, %s15
      %p12 = scmp.ge.s32.totalorder %s11, 4
      %s21 = sphi 0, %s23
      %s24 = sphi 0, %s21
      %s25 = sphi 0, %s24
      %s41 = sphi 0, %s25
      %s45 = sphi 0, %s45
      %s47 = sphi 0, %s45
      %s48 = sphi 0, %s47
      %s62 = sphi 0, %s48
      %s66 = sphi 0, %s66
      %s68 = sphi 0, %s66
      %s69 = sphi 0, %s68
      %s83 = sphi 0, %s69
      %s89 = sphi 0, %s91
      %s92 = sphi 0, %s89
      %s93 = sphi 0, %s92
      %s109 = sphi 0, %s93
      %s115 = sphi 0, %s117
      %s118 = sphi 0, %s115
      %s119 = sphi 0, %s118
      %s135 = sphi 0, %s119
    $region4: #{_lambda_.10} parent=1 // loop_header_branch
      %14 = sbr.rel (%p12) target = $region8
    $region5: #{_lambda_.10} parent=1 // loop_body
      %s16 = ssub.s32 %s11, 1
      %s17 = ssub.s32 %s11, 2
      %s18 = sadd.s32 %s11, 1
      %s19 = ssub.s32 %s11, %s18
      %p20 = scmp.eq.s32.totalorder %s19, 0
      %s22 = sadd.s32 %s21, 1
      %s23 = scalar_select %p20, %s21, %s22
      %p26 = pneg %p20
      %p27 = scmp.eq.s32.totalorder %s11, 1
      %p28 = por %p26, %p27
      %p29 = scmp.ne.s32.totalorder %s21, %s24
      %p30 = scmp.eq.s32.totalorder %s11, 0
      %p31 = por %p29, %p30
      %p32 = scmp.ne.s32.totalorder %s21, %s24
      %p33 = scmp.eq.s32.totalorder %s16, 1
      %p34 = por %p32, %p33
      %p35 = scmp.ne.s32.totalorder %s24, %s25
      %p36 = scmp.eq.s32.totalorder %s16, 0
      %p37 = por %p35, %p36
      %p38 = scmp.ne.s32.totalorder %s24, %s25
      %p39 = scmp.eq.s32.totalorder %s17, 1
      %p40 = por %p38, %p39
      %p42 = scmp.ne.s32.totalorder %s25, %s41
      %p43 = scmp.eq.s32.totalorder %s17, 0
      %p44 = por %p42, %p43
      %s46 = sadd.s32 %s45, 1
      %p49 = scmp.eq.s32.totalorder %s11, 1
      %p50 = scmp.ne.s32.totalorder %s45, %s47
      %p51 = scmp.eq.s32.totalorder %s11, 0
      %p52 = por %p50, %p51
      %p53 = scmp.ne.s32.totalorder %s45, %s47
      %p54 = scmp.eq.s32.totalorder %s16, 1
      %p55 = por %p53, %p54
      %p56 = scmp.ne.s32.totalorder %s47, %s48
      %p57 = scmp.eq.s32.totalorder %s16, 0
      %p58 = por %p56, %p57
      %p59 = scmp.ne.s32.totalorder %s47, %s48
      %p60 = scmp.eq.s32.totalorder %s17, 1
      %p61 = por %p59, %p60
      %p63 = scmp.ne.s32.totalorder %s48, %s62
      %p64 = scmp.eq.s32.totalorder %s17, 0
      %p65 = por %p63, %p64
      %s67 = sadd.s32 %s66, 1
      %p70 = scmp.eq.s32.totalorder %s11, 1
      %p71 = scmp.ne.s32.totalorder %s66, %s68
      %p72 = scmp.eq.s32.totalorder %s11, 0
      %p73 = por %p71, %p72
      %p74 = scmp.ne.s32.totalorder %s66, %s68
      %p75 = scmp.eq.s32.totalorder %s16, 1
      %p76 = por %p74, %p75
      %p77 = scmp.ne.s32.totalorder %s68, %s69
      %p78 = scmp.eq.s32.totalorder %s16, 0
      %p79 = por %p77, %p78
      %p80 = scmp.ne.s32.totalorder %s68, %s69
      %p81 = scmp.eq.s32.totalorder %s17, 1
      %p82 = por %p80, %p81
      %p84 = scmp.ne.s32.totalorder %s69, %s83
      %p85 = scmp.eq.s32.totalorder %s17, 0
      %p86 = por %p84, %p85
      %s87 = ssub.s32 %s11, %s18
      %p88 = scmp.eq.s32.totalorder %s87, 0
      %s90 = sadd.s32 %s89, 1
      %s91 = scalar_select %p88, %s89, %s90
      %p94 = pneg %p88
      %p95 = scmp.eq.s32.totalorder %s11, 1
      %p96 = por %p94, %p95
      %p97 = scmp.ne.s32.totalorder %s89, %s92
      %p98 = scmp.eq.s32.totalorder %s11, 0
      %p99 = por %p97, %p98
      %p100 = scmp.ne.s32.totalorder %s89, %s92
      %p101 = scmp.eq.s32.totalorder %s16, 1
      %p102 = por %p100, %p101
      %p103 = scmp.ne.s32.totalorder %s92, %s93
      %p104 = scmp.eq.s32.totalorder %s16, 0
      %p105 = por %p103, %p104
      %p106 = scmp.ne.s32.totalorder %s92, %s93
      %p107 = scmp.eq.s32.totalorder %s17, 1
      %p108 = por %p106, %p107
      %p110 = scmp.ne.s32.totalorder %s93, %s109
      %p111 = scmp.eq.s32.totalorder %s17, 0
      %p112 = por %p110, %p111
      %s113 = ssub.s32 %s11, %s18
      %p114 = scmp.eq.s32.totalorder %s113, 0
      %s116 = sadd.s32 %s115, 1
      %s117 = scalar_select %p114, %s115, %s116
      %p120 = pneg %p114
      %p121 = scmp.eq.s32.totalorder %s11, 1
      %p122 = por %p120, %p121
      %p123 = scmp.ne.s32.totalorder %s115, %s118
      %p124 = scmp.eq.s32.totalorder %s11, 0
      %p125 = por %p123, %p124
      %p126 = scmp.ne.s32.totalorder %s115, %s118
      %p127 = scmp.eq.s32.totalorder %s16, 1
      %p128 = por %p126, %p127
      %p129 = scmp.ne.s32.totalorder %s118, %s119
      %p130 = scmp.eq.s32.totalorder %s16, 0
      %p131 = por %p129, %p130
      %p132 = scmp.ne.s32.totalorder %s118, %s119
      %p133 = scmp.eq.s32.totalorder %s17, 1
      %p134 = por %p132, %p133
      %p136 = scmp.ne.s32.totalorder %s119, %s135
      %p137 = scmp.eq.s32.totalorder %s17, 0
      %p138 = por %p136, %p137
      %p139 = scmp.le.s32.totalorder 1, %s11
      %p140 = scmp.lt.s32.totalorder %s11, 3
      %p141 = pnand %p139, %p140
      %p142 = pneg %p141
      // Predicated region
      $region9: #{_lambda_.10} parent=5 // pred_check
        _
      $region10: #{_lambda_.10} parent=5 // pred_check_branch
        %144 = sbr.rel (%p141) target = $region12
      $region11: #{_lambda_.10} parent=5 // pred_region
        %s145 = ssub.s32 %s11, 1
        // Predicated region
        $region13: #{_lambda_.10} parent=11 // pred_check
          %p146 = pneg %p58
        $region14: #{_lambda_.10} parent=11 // pred_check_branch
          %148 = sbr.rel (%p146) target = $region16
        $region15: #{_lambda_.10} parent=11 // pred_region
          %150 = vsyncadd [#allocation3], 0
          %s151 = sshll.u32 %s1, 4
          %s152 = int_to_ptr.hbm [resolvable:$true] %s151
          %s153 = sshll.u32 [#allocation2], 4
          %s154 = int_to_ptr.vmem [resolvable:$true] %s153
          %159 = dma.hbm_to_vmem [thread:$0]  %s152, 512, %s154, [#allocation3], 128, 128, 8
        $region16: #{_lambda_.10} parent=11 // pred_fallthru
          _
        // Predicated region
        $region17: #{_lambda_.10} parent=11 // pred_check
          %p160 = pneg %p79
        $region18: #{_lambda_.10} parent=11 // pred_check_branch
          %162 = sbr.rel (%p160) target = $region20
        $region19: #{_lambda_.10} parent=11 // pred_region
          _
        $region20: #{_lambda_.10} parent=11 // pred_fallthru
          _
      $region12: #{_lambda_.10} parent=5 // pred_fallthru
        _
      %p163 = scmp.lt.s32.totalorder %s11, 2
      // Predicated region
      $region21: #{_lambda_.10} parent=5 // pred_check
        %p164 = pneg %p163
      $region22: #{_lambda_.10} parent=5 // pred_check_branch
        %166 = sbr.rel (%p164) target = $region24
      $region23: #{_lambda_.10} parent=5 // pred_region
        // Predicated region
        $region25: #{_lambda_.10} parent=23 // pred_check
          %p167 = pneg %p31
        $region26: #{_lambda_.10} parent=23 // pred_check_branch
          %169 = sbr.rel (%p167) target = $region28
        $region27: #{_lambda_.10} parent=23 // pred_region
          %p170 = scmp.lt.s32.totalorder %s11, 1
          %s171 = scalar_select %p170, %s11, 1
          %s172 = smul.addr %s171, 8
          %s173 = scalar_lea.vmem %s0, %s172
        $region28: #{_lambda_.10} parent=23 // pred_fallthru
          _
        // Predicated region
        $region29: #{_lambda_.10} parent=23 // pred_check
          %p174 = pneg %p99
        $region30: #{_lambda_.10} parent=23 // pred_check_branch
          %176 = sbr.rel (%p174) target = $region32
        $region31: #{_lambda_.10} parent=23 // pred_region
          %p177 = scmp.lt.s32.totalorder %s11, 1
          %s178 = scalar_select %p177, %s11, 1
          %s179 = smul.addr %s178, 8
          %s180 = scalar_lea.vmem %s3, %s179
        $region32: #{_lambda_.10} parent=23 // pred_fallthru
          _
      $region24: #{_lambda_.10} parent=5 // pred_fallthru
        _
      %p181 = scmp.le.s32.totalorder 1, %s11
      %p182 = scmp.lt.s32.totalorder %s11, 3
      %p183 = pnand %p181, %p182
      %p184 = pneg %p183
      // Predicated region
      $region33: #{_lambda_.10} parent=5 // pred_check
        _
      $region34: #{_lambda_.10} parent=5 // pred_check_branch
        %186 = sbr.rel (%p183) target = $region36
      $region35: #{_lambda_.10} parent=5 // pred_region
        %s187 = ssub.s32 %s11, 1
        // Predicated region
        $region37: #{_lambda_.10} parent=35 // pred_check
          %p188 = pneg %p58
        $region38: #{_lambda_.10} parent=35 // pred_check_branch
          %190 = sbr.rel (%p188) target = $region40
        $region39: #{_lambda_.10} parent=35 // pred_region
          %192 = dma.done [#allocation3], 512
        $region40: #{_lambda_.10} parent=35 // pred_fallthru
          _
        %p193 = scmp.lt.s32.totalorder %s16, 1
        %s194 = scalar_select %p193, %s16, 1
        %s195 = smul.addr %s194, 8
        %s196 = scalar_lea.vmem %s0, %s195
        %p197 = pneg %p37
        %p198 = pneg %p34
        %p199 = pneg %p58
        %p200 = pneg %p55
        %p201 = pneg %p79
        %p202 = pneg %p76
        %p203 = scmp.lt.s32.totalorder %s16, 1
        %s204 = scalar_select %p203, %s16, 1
        %s205 = smul.addr %s204, 8
        %s206 = scalar_lea.vmem %s3, %s205
        %p207 = pneg %p105
        %p208 = pneg %p102
        %p209 = pneg %p131
        %p210 = pneg %p128
        %p211 = scmp.lt.s32.totalorder %s16, 1
        %s212 = scalar_select %p211, %s16, 1
        %s213 = smul.addr %s212, 8
        %s214 = scalar_lea.vmem %s4, %s213
        %p215 = scmp.lt.s32.totalorder %s16, 1
        %s216 = scalar_select %p215, %s16, 1
        %s217 = smul.addr %s216, 8
        %s218 = scalar_lea.vmem %s0, %s217
        %p219 = scmp.lt.s32.totalorder %s16, 1
        %s220 = scalar_select %p219, %s16, 1
        %s221 = smul.addr %s220, 8
        %s222 = scalar_lea.vmem %s3, %s221
        %p223 = scmp.lt.s32.totalorder %s16, 1
        %s224 = scalar_select %p223, %s16, 1
        %s225 = smul.addr %s224, 8
        %s226 = scalar_lea.vmem %s4, %s225
        %v227 = vld [vmem:[%s218] sm:$0xff]
        %229 = vrot.lane.b32.xlu0 %v227, 120
        %v230 = vpop.permute.xlu0 %229
        %232 = vrot.lane.b32.xlu0 %v227, 112
        %v233 = vpop.permute.xlu0 %232
        %235 = vrot.lane.b32.xlu0 %v227, 104
        %v236 = vpop.permute.xlu0 %235
        %238 = vrot.lane.b32.xlu0 %v227, 96
        %v239 = vpop.permute.xlu0 %238
        %241 = vrot.lane.b32.xlu0 %v227, 88
        %v242 = vpop.permute.xlu0 %241
        %244 = vrot.lane.b32.xlu0 %v227, 80
        %v245 = vpop.permute.xlu0 %244
        %247 = vrot.lane.b32.xlu0 %v227, 72
        %v248 = vpop.permute.xlu0 %247
        %250 = vrot.lane.b32.xlu0 %v227, 64
        %v251 = vpop.permute.xlu0 %250
        %253 = vrot.lane.b32.xlu0 %v227, 56
        %v254 = vpop.permute.xlu0 %253
        %256 = vrot.lane.b32.xlu0 %v227, 48
        %v257 = vpop.permute.xlu0 %256
        %259 = vrot.lane.b32.xlu0 %v227, 40
        %v260 = vpop.permute.xlu0 %259
        %v262 = vrot.slane %v233, 4
        %vm263 = vcmask 1047556
        %v264 = vsel %vm263, %v262, %v227
        %v265 = vrot.slane %v227, 4
        %v266 = vsel %vm263, %v233, %v265
        %v268 = vunpack.c.l.s4 1983009808
        %v269 = vunpack.c.0.s8 %v268
        %v270 = vperm.slane %v264, %v269
        %v272 = vunpack.c.l.s4 1983009808
        %v273 = vunpack.c.0.s8 %v272
        %v274 = vperm.slane %v266, %v273
        %v275 = vrot.slane %v236, 4
        %v276 = vsel %vm263, %v275, %v230
        %v277 = vrot.slane %v230, 4
        %v278 = vsel %vm263, %v236, %v277
        %v280 = vunpack.c.l.s4 1983009808
        %v281 = vunpack.c.0.s8 %v280
        %v282 = vperm.slane %v276, %v281
        %v284 = vunpack.c.l.s4 1983009808
        %v285 = vunpack.c.0.s8 %v284
        %v286 = vperm.slane %v278, %v285
        %v287 = vrot.slane %v245, 4
        %v288 = vsel %vm263, %v287, %v239
        %v289 = vrot.slane %v239, 4
        %v290 = vsel %vm263, %v245, %v289
        %v292 = vunpack.c.l.s4 1983009808
        %v293 = vunpack.c.0.s8 %v292
        %v294 = vperm.slane %v288, %v293
        %v296 = vunpack.c.l.s4 1983009808
        %v297 = vunpack.c.0.s8 %v296
        %v298 = vperm.slane %v290, %v297
        %v299 = vrot.slane %v248, 4
        %v300 = vsel %vm263, %v299, %v242
        %v301 = vrot.slane %v242, 4
        %v302 = vsel %vm263, %v248, %v301
        %v304 = vunpack.c.l.s4 1983009808
        %v305 = vunpack.c.0.s8 %v304
        %v306 = vperm.slane %v300, %v305
        %v308 = vunpack.c.l.s4 1983009808
        %v309 = vunpack.c.0.s8 %v308
        %v310 = vperm.slane %v302, %v309
        %v311 = vrot.slane %v282, 4
        %v312 = vsel %vm263, %v311, %v270
        %v313 = vrot.slane %v270, 4
        %v314 = vsel %vm263, %v282, %v313
        %v316 = vunpack.c.l.s4 1934713408
        %v317 = vunpack.c.0.s8 %v316
        %v318 = vperm.slane %v312, %v317
        %v320 = vunpack.c.l.s4 1934713408
        %v321 = vunpack.c.0.s8 %v320
        %v322 = vperm.slane %v314, %v321
        %v323 = vrot.slane %v286, 4
        %v324 = vsel %vm263, %v323, %v274
        %v325 = vrot.slane %v274, 4
        %v326 = vsel %vm263, %v286, %v325
        %v328 = vunpack.c.l.s4 1934713408
        %v329 = vunpack.c.0.s8 %v328
        %v330 = vperm.slane %v324, %v329
        %v332 = vunpack.c.l.s4 1934713408
        %v333 = vunpack.c.0.s8 %v332
        %v334 = vperm.slane %v326, %v333
        %v335 = vrot.slane %v306, 4
        %v336 = vsel %vm263, %v335, %v294
        %v337 = vrot.slane %v294, 4
        %v338 = vsel %vm263, %v306, %v337
        %v340 = vunpack.c.l.s4 1934713408
        %v341 = vunpack.c.0.s8 %v340
        %v342 = vperm.slane %v336, %v341
        %v344 = vunpack.c.l.s4 1934713408
        %v345 = vunpack.c.0.s8 %v344
        %v346 = vperm.slane %v338, %v345
        %v347 = vrot.slane %v310, 4
        %v348 = vsel %vm263, %v347, %v298
        %v349 = vrot.slane %v298, 4
        %v350 = vsel %vm263, %v310, %v349
        %v352 = vunpack.c.l.s4 1934713408
        %v353 = vunpack.c.0.s8 %v352
        %v354 = vperm.slane %v348, %v353
        %v356 = vunpack.c.l.s4 1934713408
        %v357 = vunpack.c.0.s8 %v356
        %v358 = vperm.slane %v350, %v357
        %v359 = vrot.slane %v342, 4
        %v360 = vsel %vm263, %v359, %v318
        %v361 = vrot.slane %v318, 4
        %v362 = vsel %vm263, %v342, %v361
        %v363 = vrot.slane %v346, 4
        %v364 = vsel %vm263, %v363, %v322
        %v365 = vrot.slane %v322, 4
        %v366 = vsel %vm263, %v346, %v365
        %v367 = vrot.slane %v354, 4
        %v368 = vsel %vm263, %v367, %v330
        %v369 = vrot.slane %v330, 4
        %v370 = vsel %vm263, %v354, %v369
        %v371 = vrot.slane %v358, 4
        %v372 = vsel %vm263, %v371, %v334
        %v373 = vrot.slane %v334, 4
        %v374 = vsel %vm263, %v358, %v373
        %v375 = vrot.slane %v257, 4
        %v376 = vsel %vm263, %v375, %v251
        %v377 = vrot.slane %v251, 4
        %v378 = vsel %vm263, %v257, %v377
        %v380 = vunpack.c.l.s4 1983009808
        %v381 = vunpack.c.0.s8 %v380
        %v382 = vperm.slane %v376, %v381
        %v384 = vunpack.c.l.s4 1983009808
        %v385 = vunpack.c.0.s8 %v384
        %v386 = vperm.slane %v378, %v385
        %v387 = vrot.slane %v260, 4
        %v388 = vsel %vm263, %v387, %v254
        %v389 = vrot.slane %v254, 4
        %v390 = vsel %vm263, %v260, %v389
        %v392 = vunpack.c.l.s4 1983009808
        %v393 = vunpack.c.0.s8 %v392
        %v394 = vperm.slane %v388, %v393
        %v396 = vunpack.c.l.s4 1983009808
        %v397 = vunpack.c.0.s8 %v396
        %v398 = vperm.slane %v390, %v397
        %v399 = vrot.slane %v394, 4
        %v400 = vsel %vm263, %v399, %v382
        %v401 = vrot.slane %v382, 4
        %v402 = vsel %vm263, %v394, %v401
        %v404 = vunpack.c.l.s4 1934713408
        %v405 = vunpack.c.0.s8 %v404
        %v406 = vperm.slane %v400, %v405
        %v408 = vunpack.c.l.s4 1934713408
        %v409 = vunpack.c.0.s8 %v408
        %v410 = vperm.slane %v402, %v409
        %v411 = vrot.slane %v398, 4
        %v412 = vsel %vm263, %v411, %v386
        %v413 = vrot.slane %v386, 4
        %v414 = vsel %vm263, %v398, %v413
        %v416 = vunpack.c.l.s4 1934713408
        %v417 = vunpack.c.0.s8 %v416
        %v418 = vperm.slane %v412, %v417
        %v420 = vunpack.c.l.s4 1934713408
        %v421 = vunpack.c.0.s8 %v420
        %v422 = vperm.slane %v414, %v421
        %v423 = vrot.slane %v406, 4
        %v424 = vsel %vm263, 0.0, %v423
        %v425 = vrot.slane %v410, 4
        %v426 = vsel %vm263, 0.0, %v425
        %v427 = vrot.slane %v418, 4
        %v428 = vsel %vm263, 0.0, %v427
        %v429 = vrot.slane %v422, 4
        %v430 = vsel %vm263, 0.0, %v429
        %v431 = vrot.slane %v364, 4
        %v432 = vsel %vm263, %v431, %v360
        %v433 = vrot.slane %v360, 4
        %v434 = vsel %vm263, %v364, %v433
        %v436 = vunpack.c.l.s4 1983009808
        %v437 = vunpack.c.0.s8 %v436
        %v438 = vperm.slane %v432, %v437
        %v440 = vunpack.c.l.s4 1983009808
        %v441 = vunpack.c.0.s8 %v440
        %v442 = vperm.slane %v434, %v441
        %v443 = vrot.slane %v366, 4
        %v444 = vsel %vm263, %v443, %v362
        %v445 = vrot.slane %v362, 4
        %v446 = vsel %vm263, %v366, %v445
        %v448 = vunpack.c.l.s4 1983009808
        %v449 = vunpack.c.0.s8 %v448
        %v450 = vperm.slane %v444, %v449
        %v452 = vunpack.c.l.s4 1983009808
        %v453 = vunpack.c.0.s8 %v452
        %v454 = vperm.slane %v446, %v453
        %v455 = vrot.slane %v372, 4
        %v456 = vsel %vm263, %v455, %v368
        %v457 = vrot.slane %v368, 4
        %v458 = vsel %vm263, %v372, %v457
        %v460 = vunpack.c.l.s4 1983009808
        %v461 = vunpack.c.0.s8 %v460
        %v462 = vperm.slane %v456, %v461
        %v464 = vunpack.c.l.s4 1983009808
        %v465 = vunpack.c.0.s8 %v464
        %v466 = vperm.slane %v458, %v465
        %v467 = vrot.slane %v374, 4
        %v468 = vsel %vm263, %v467, %v370
        %v469 = vrot.slane %v370, 4
        %v470 = vsel %vm263, %v374, %v469
        %v472 = vunpack.c.l.s4 1983009808
        %v473 = vunpack.c.0.s8 %v472
        %v474 = vperm.slane %v468, %v473
        %v476 = vunpack.c.l.s4 1983009808
        %v477 = vunpack.c.0.s8 %v476
        %v478 = vperm.slane %v470, %v477
        %v479 = vrot.slane %v450, 4
        %v480 = vsel %vm263, %v479, %v438
        %v481 = vrot.slane %v438, 4
        %v482 = vsel %vm263, %v450, %v481
        %v484 = vunpack.c.l.s4 1934713408
        %v485 = vunpack.c.0.s8 %v484
        %v486 = vperm.slane %v480, %v485
        %v488 = vunpack.c.l.s4 1934713408
        %v489 = vunpack.c.0.s8 %v488
        %v490 = vperm.slane %v482, %v489
        %v491 = vrot.slane %v454, 4
        %v492 = vsel %vm263, %v491, %v442
        %v493 = vrot.slane %v442, 4
        %v494 = vsel %vm263, %v454, %v493
        %v496 = vunpack.c.l.s4 1934713408
        %v497 = vunpack.c.0.s8 %v496
        %v498 = vperm.slane %v492, %v497
        %v500 = vunpack.c.l.s4 1934713408
        %v501 = vunpack.c.0.s8 %v500
        %v502 = vperm.slane %v494, %v501
        %v503 = vrot.slane %v474, 4
        %v504 = vsel %vm263, %v503, %v462
        %v505 = vrot.slane %v462, 4
        %v506 = vsel %vm263, %v474, %v505
        %v508 = vunpack.c.l.s4 1934713408
        %v509 = vunpack.c.0.s8 %v508
        %v510 = vperm.slane %v504, %v509
        %v512 = vunpack.c.l.s4 1934713408
        %v513 = vunpack.c.0.s8 %v512
        %v514 = vperm.slane %v506, %v513
        %v515 = vrot.slane %v478, 4
        %v516 = vsel %vm263, %v515, %v466
        %v517 = vrot.slane %v466, 4
        %v518 = vsel %vm263, %v478, %v517
        %v520 = vunpack.c.l.s4 1934713408
        %v521 = vunpack.c.0.s8 %v520
        %v522 = vperm.slane %v516, %v521
        %v524 = vunpack.c.l.s4 1934713408
        %v525 = vunpack.c.0.s8 %v524
        %v526 = vperm.slane %v518, %v525
        %v527 = vrot.slane %v510, 4
        %v528 = vsel %vm263, %v527, %v486
        %v529 = vrot.slane %v486, 4
        %v530 = vsel %vm263, %v510, %v529
        %v531 = vrot.slane %v514, 4
        %v532 = vsel %vm263, %v531, %v490
        %v533 = vrot.slane %v490, 4
        %v534 = vsel %vm263, %v514, %v533
        %v535 = vrot.slane %v522, 4
        %v536 = vsel %vm263, %v535, %v498
        %v537 = vrot.slane %v498, 4
        %v538 = vsel %vm263, %v522, %v537
        %v539 = vrot.slane %v526, 4
        %v540 = vsel %vm263, %v539, %v502
        %v541 = vrot.slane %v502, 4
        %v542 = vsel %vm263, %v526, %v541
        %v543 = vsel %vm263, %v425, %v406
        %v545 = vunpack.c.l.s4 1983009808
        %v546 = vunpack.c.0.s8 %v545
        %v547 = vperm.slane %v543, %v546
        %v548 = vrot.slane %v426, 4
        %v549 = vsel %vm263, %v548, %v424
        %v551 = vunpack.c.l.s4 1983009808
        %v552 = vunpack.c.0.s8 %v551
        %v553 = vperm.slane %v549, %v552
        %v554 = vsel %vm263, %v429, %v418
        %v556 = vunpack.c.l.s4 1983009808
        %v557 = vunpack.c.0.s8 %v556
        %v558 = vperm.slane %v554, %v557
        %v559 = vrot.slane %v430, 4
        %v560 = vsel %vm263, %v559, %v428
        %v562 = vunpack.c.l.s4 1983009808
        %v563 = vunpack.c.0.s8 %v562
        %v564 = vperm.slane %v560, %v563
        %v565 = vrot.slane %v553, 4
        %v566 = vsel %vm263, %v565, %v547
        %v567 = vrot.slane %v547, 4
        %v568 = vsel %vm263, %v553, %v567
        %v570 = vunpack.c.l.s4 1934713408
        %v571 = vunpack.c.0.s8 %v570
        %v572 = vperm.slane %v566, %v571
        %v574 = vunpack.c.l.s4 1934713408
        %v575 = vunpack.c.0.s8 %v574
        %v576 = vperm.slane %v568, %v575
        %v577 = vrot.slane %v564, 4
        %v578 = vsel %vm263, %v577, %v558
        %v579 = vrot.slane %v558, 4
        %v580 = vsel %vm263, %v564, %v579
        %v582 = vunpack.c.l.s4 1934713408
        %v583 = vunpack.c.0.s8 %v582
        %v584 = vperm.slane %v578, %v583
        %v586 = vunpack.c.l.s4 1934713408
        %v587 = vunpack.c.0.s8 %v586
        %v588 = vperm.slane %v580, %v587
        %v589 = vrot.slane %v584, 4
        %v590 = vsel %vm263, %v589, %v572
        %v591 = vrot.slane %v572, 4
        %v592 = vsel %vm263, %v584, %v591
        %v593 = vrot.slane %v588, 4
        %v594 = vsel %vm263, %v593, %v576
        %v595 = vrot.slane %v576, 4
        %v596 = vsel %vm263, %v588, %v595
        %vm597 = vcmask 64512
        %v599 = vsel %vm597, %v528, 0
        %v602 = vsel %vm597, %v536, 0
        %604 = vmatpush.xpose.msra.mxu0 0.0
        %605 = vmatpush.xpose.msra.mxu0 0.0
        %606 = vmatpush.xpose.msra.mxu0 0.0
        %607 = vmatpush.xpose.msra.mxu0 0.0
        %608 = vmatpush.xpose.msra.mxu0 0.0
        %609 = vmatpush.xpose.msra.mxu0 0.0
        %610 = vmatpush.xpose.msra.mxu0 0.0
        %611 = vmatpush.xpose.msra.mxu0 0.0
        %612 = vmatpush.xpose.msra.mxu0 0.0
        %613 = vmatpush.xpose.msra.mxu0 0.0
        %614 = vmatpush.xpose.msra.mxu0 0.0
        %615 = vmatpush.xpose.msra.mxu0 0.0
        %616 = vmatpush.xpose.msra.mxu0 0.0
        %617 = vmatpush.xpose.msra.mxu0 0.0
        %618 = vmatpush.xpose.msra.mxu0 0.0
        %619 = vmatpush.xpose.msra.mxu0 %v602
        %620 = vmatmul.f32.gmra.mxu0 %v599
        %v621 = vpop.f32.mrf.mxu0
        %v622 = vadd.f32 0.0, %v621
        %623 = vdwg.mxu0
        %v625 = vsel %vm597, %v530, 0
        %v628 = vsel %vm597, %v538, 0
        %630 = vmatpush.xpose.msra.mxu0 0.0
        %631 = vmatpush.xpose.msra.mxu0 0.0
        %632 = vmatpush.xpose.msra.mxu0 0.0
        %633 = vmatpush.xpose.msra.mxu0 0.0
        %634 = vmatpush.xpose.msra.mxu0 0.0
        %635 = vmatpush.xpose.msra.mxu0 0.0
        %636 = vmatpush.xpose.msra.mxu0 0.0
        %637 = vmatpush.xpose.msra.mxu0 0.0
        %638 = vmatpush.xpose.msra.mxu0 0.0
        %639 = vmatpush.xpose.msra.mxu0 0.0
        %640 = vmatpush.xpose.msra.mxu0 0.0
        %641 = vmatpush.xpose.msra.mxu0 0.0
        %642 = vmatpush.xpose.msra.mxu0 0.0
        %643 = vmatpush.xpose.msra.mxu0 0.0
        %644 = vmatpush.xpose.msra.mxu0 0.0
        %645 = vmatpush.xpose.msra.mxu0 %v628
        %646 = vmatmul.f32.gmra.mxu0 %v625
        %v647 = vpop.f32.mrf.mxu0
        %v648 = vadd.f32 0.0, %v647
        %649 = vdwg.mxu0
        %v651 = vsel %vm597, %v532, 0
        %v654 = vsel %vm597, %v540, 0
        %656 = vmatpush.xpose.msra.mxu0 0.0
        %657 = vmatpush.xpose.msra.mxu0 0.0
        %658 = vmatpush.xpose.msra.mxu0 0.0
        %659 = vmatpush.xpose.msra.mxu0 0.0
        %660 = vmatpush.xpose.msra.mxu0 0.0
        %661 = vmatpush.xpose.msra.mxu0 0.0
        %662 = vmatpush.xpose.msra.mxu0 0.0
        %663 = vmatpush.xpose.msra.mxu0 0.0
        %664 = vmatpush.xpose.msra.mxu0 0.0
        %665 = vmatpush.xpose.msra.mxu0 0.0
        %666 = vmatpush.xpose.msra.mxu0 0.0
        %667 = vmatpush.xpose.msra.mxu0 0.0
        %668 = vmatpush.xpose.msra.mxu0 0.0
        %669 = vmatpush.xpose.msra.mxu0 0.0
        %670 = vmatpush.xpose.msra.mxu0 0.0
        %671 = vmatpush.xpose.msra.mxu0 %v654
        %672 = vmatmul.f32.gmra.mxu0 %v651
        %v673 = vpop.f32.mrf.mxu0
        %v674 = vadd.f32 0.0, %v673
        %675 = vdwg.mxu0
        %v677 = vsel %vm597, %v534, 0
        %v680 = vsel %vm597, %v542, 0
        %682 = vmatpush.xpose.msra.mxu0 0.0
        %683 = vmatpush.xpose.msra.mxu0 0.0
        %684 = vmatpush.xpose.msra.mxu0 0.0
        %685 = vmatpush.xpose.msra.mxu0 0.0
        %686 = vmatpush.xpose.msra.mxu0 0.0
        %687 = vmatpush.xpose.msra.mxu0 0.0
        %688 = vmatpush.xpose.msra.mxu0 0.0
        %689 = vmatpush.xpose.msra.mxu0 0.0
        %690 = vmatpush.xpose.msra.mxu0 0.0
        %691 = vmatpush.xpose.msra.mxu0 0.0
        %692 = vmatpush.xpose.msra.mxu0 0.0
        %693 = vmatpush.xpose.msra.mxu0 0.0
        %694 = vmatpush.xpose.msra.mxu0 0.0
        %695 = vmatpush.xpose.msra.mxu0 0.0
        %696 = vmatpush.xpose.msra.mxu0 0.0
        %697 = vmatpush.xpose.msra.mxu0 %v680
        %698 = vmatmul.f32.gmra.mxu0 %v677
        %v699 = vpop.f32.mrf.mxu0
        %v700 = vadd.f32 0.0, %v699
        %701 = vdwg.mxu0
        %v702 = vmul.f32 %v622, 0.35355338
        %v703 = vmul.f32 %v648, 0.35355338
        %v704 = vmul.f32 %v674, 0.35355338
        %v705 = vmul.f32 %v700, 0.35355338
        %v706 = vsel %vm597, %v702, -inf
        %707 = vmax.xlane.f32.xlu0 %v706
        %v708 = vpop.xlane.xlu0 %707
        %v709 = vsel %vm597, %v703, -inf
        %710 = vmax.xlane.f32.xlu0 %v709
        %v711 = vpop.xlane.xlu0 %710
        %v712 = vsel %vm597, %v704, -inf
        %713 = vmax.xlane.f32.xlu0 %v712
        %v714 = vpop.xlane.xlu0 %713
        %v715 = vsel %vm597, %v705, -inf
        %716 = vmax.xlane.f32.xlu0 %v715
        %v717 = vpop.xlane.xlu0 %716
        %v718 = vsub.f32 %v702, %v708
        %v719 = vsub.f32 %v703, %v711
        %v720 = vsub.f32 %v704, %v714
        %v721 = vsub.f32 %v705, %v717
        %v722 = vmul.f32 %v718, 1.442695
        %v723 = vpow.pop %v722
        %v724 = vmul.f32 %v719, 1.442695
        %v725 = vpow.pop %v724
        %v726 = vmul.f32 %v720, 1.442695
        %v727 = vpow.pop %v726
        %v728 = vmul.f32 %v721, 1.442695
        %v729 = vpow.pop %v728
        %v730 = vsel %vm597, %v723, 0.0
        %731 = vadd.xlane.f32.xlu0 %v730
        %v732 = vpop.xlane.xlu0 %731
        %v733 = vsel %vm597, %v725, 0.0
        %734 = vadd.xlane.f32.xlu0 %v733
        %v735 = vpop.xlane.xlu0 %734
        %v736 = vsel %vm597, %v727, 0.0
        %737 = vadd.xlane.f32.xlu0 %v736
        %v738 = vpop.xlane.xlu0 %737
        %v739 = vsel %vm597, %v729, 0.0
        %740 = vadd.xlane.f32.xlu0 %v739
        %v741 = vpop.xlane.xlu0 %740
        %v742 = vrcp.pop %v732
        %v743 = vmul.f32 %v732, %v742
        %v744 = vsub.f32 1.0, %v743
        %v745 = vmul.f32 %v742, %v744
        %v746 = vadd.f32 %v742, %v745
        %vm747 = vweird.f32 %v732
        %vm748 = vweird.f32 %v742
        %vm749 = vmor %vm747, %vm748
        %v750 = vsel %vm749, %v742, %v746
        %v751 = vand.u32 2147483647, %v732
        %vm752 = vcmp.eq.f32.partialorder %v751, 8.507059e+37
        %v753 = vand.u32 %v732, 2147483648
        %v754 = vor.u32 1.1754944e-38, %v753
        %v755 = vsel %vm752, %v754, %v750
        %v756 = vrcp.pop %v735
        %v757 = vmul.f32 %v735, %v756
        %v758 = vsub.f32 1.0, %v757
        %v759 = vmul.f32 %v756, %v758
        %v760 = vadd.f32 %v756, %v759
        %vm761 = vweird.f32 %v735
        %vm762 = vweird.f32 %v756
        %vm763 = vmor %vm761, %vm762
        %v764 = vsel %vm763, %v756, %v760
        %v765 = vand.u32 2147483647, %v735
        %vm766 = vcmp.eq.f32.partialorder %v765, 8.507059e+37
        %v767 = vand.u32 %v735, 2147483648
        %v768 = vor.u32 1.1754944e-38, %v767
        %v769 = vsel %vm766, %v768, %v764
        %v770 = vrcp.pop %v738
        %v771 = vmul.f32 %v738, %v770
        %v772 = vsub.f32 1.0, %v771
        %v773 = vmul.f32 %v770, %v772
        %v774 = vadd.f32 %v770, %v773
        %vm775 = vweird.f32 %v738
        %vm776 = vweird.f32 %v770
        %vm777 = vmor %vm775, %vm776
        %v778 = vsel %vm777, %v770, %v774
        %v779 = vand.u32 2147483647, %v738
        %vm780 = vcmp.eq.f32.partialorder %v779, 8.507059e+37
        %v781 = vand.u32 %v738, 2147483648
        %v782 = vor.u32 1.1754944e-38, %v781
        %v783 = vsel %vm780, %v782, %v778
        %v784 = vrcp.pop %v741
        %v785 = vmul.f32 %v741, %v784
        %v786 = vsub.f32 1.0, %v785
        %v787 = vmul.f32 %v784, %v786
        %v788 = vadd.f32 %v784, %v787
        %vm789 = vweird.f32 %v741
        %vm790 = vweird.f32 %v784
        %vm791 = vmor %vm789, %vm790
        %v792 = vsel %vm791, %v784, %v788
        %v793 = vand.u32 2147483647, %v741
        %vm794 = vcmp.eq.f32.partialorder %v793, 8.507059e+37
        %v795 = vand.u32 %v741, 2147483648
        %v796 = vor.u32 1.1754944e-38, %v795
        %v797 = vsel %vm794, %v796, %v792
        %v798 = vmul.f32 %v723, %v755
        %v799 = vmul.f32 %v725, %v769
        %v800 = vmul.f32 %v727, %v783
        %v801 = vmul.f32 %v729, %v797
        %v803 = vsel %vm597, %v798, 0
        %805 = vmatpush.msra.mxu0 0.0
        %806 = vmatpush.msra.mxu0 0.0
        %807 = vmatpush.msra.mxu0 0.0
        %808 = vmatpush.msra.mxu0 0.0
        %809 = vmatpush.msra.mxu0 0.0
        %810 = vmatpush.msra.mxu0 0.0
        %811 = vmatpush.msra.mxu0 0.0
        %812 = vmatpush.msra.mxu0 0.0
        %813 = vmatpush.msra.mxu0 0.0
        %814 = vmatpush.msra.mxu0 0.0
        %815 = vmatpush.msra.mxu0 0.0
        %816 = vmatpush.msra.mxu0 0.0
        %817 = vmatpush.msra.mxu0 0.0
        %818 = vmatpush.msra.mxu0 0.0
        %819 = vmatpush.msra.mxu0 0.0
        %820 = vmatpush.msra.mxu0 %v590
        %821 = vmatmul.f32.gmra.mxu0 %v803
        %v822 = vpop.f32.mrf.mxu0
        %v823 = vadd.f32 0.0, %v822
        %824 = vdwg.mxu0
        %v826 = vsel %vm597, %v799, 0
        %828 = vmatpush.msra.mxu0 0.0
        %829 = vmatpush.msra.mxu0 0.0
        %830 = vmatpush.msra.mxu0 0.0
        %831 = vmatpush.msra.mxu0 0.0
        %832 = vmatpush.msra.mxu0 0.0
        %833 = vmatpush.msra.mxu0 0.0
        %834 = vmatpush.msra.mxu0 0.0
        %835 = vmatpush.msra.mxu0 0.0
        %836 = vmatpush.msra.mxu0 0.0
        %837 = vmatpush.msra.mxu0 0.0
        %838 = vmatpush.msra.mxu0 0.0
        %839 = vmatpush.msra.mxu0 0.0
        %840 = vmatpush.msra.mxu0 0.0
        %841 = vmatpush.msra.mxu0 0.0
        %842 = vmatpush.msra.mxu0 0.0
        %843 = vmatpush.msra.mxu0 %v592
        %844 = vmatmul.f32.gmra.mxu0 %v826
        %v845 = vpop.f32.mrf.mxu0
        %v846 = vadd.f32 0.0, %v845
        %847 = vdwg.mxu0
        %v849 = vsel %vm597, %v800, 0
        %851 = vmatpush.msra.mxu0 0.0
        %852 = vmatpush.msra.mxu0 0.0
        %853 = vmatpush.msra.mxu0 0.0
        %854 = vmatpush.msra.mxu0 0.0
        %855 = vmatpush.msra.mxu0 0.0
        %856 = vmatpush.msra.mxu0 0.0
        %857 = vmatpush.msra.mxu0 0.0
        %858 = vmatpush.msra.mxu0 0.0
        %859 = vmatpush.msra.mxu0 0.0
        %860 = vmatpush.msra.mxu0 0.0
        %861 = vmatpush.msra.mxu0 0.0
        %862 = vmatpush.msra.mxu0 0.0
        %863 = vmatpush.msra.mxu0 0.0
        %864 = vmatpush.msra.mxu0 0.0
        %865 = vmatpush.msra.mxu0 0.0
        %866 = vmatpush.msra.mxu0 %v594
        %867 = vmatmul.f32.gmra.mxu0 %v849
        %v868 = vpop.f32.mrf.mxu0
        %v869 = vadd.f32 0.0, %v868
        %870 = vdwg.mxu0
        %v872 = vsel %vm597, %v801, 0
        %874 = vmatpush.msra.mxu0 0.0
        %875 = vmatpush.msra.mxu0 0.0
        %876 = vmatpush.msra.mxu0 0.0
        %877 = vmatpush.msra.mxu0 0.0
        %878 = vmatpush.msra.mxu0 0.0
        %879 = vmatpush.msra.mxu0 0.0
        %880 = vmatpush.msra.mxu0 0.0
        %881 = vmatpush.msra.mxu0 0.0
        %882 = vmatpush.msra.mxu0 0.0
        %883 = vmatpush.msra.mxu0 0.0
        %884 = vmatpush.msra.mxu0 0.0
        %885 = vmatpush.msra.mxu0 0.0
        %886 = vmatpush.msra.mxu0 0.0
        %887 = vmatpush.msra.mxu0 0.0
        %888 = vmatpush.msra.mxu0 0.0
        %889 = vmatpush.msra.mxu0 %v596
        %890 = vmatmul.f32.gmra.mxu0 %v872
        %v891 = vpop.f32.mrf.mxu0
        %v892 = vadd.f32 0.0, %v891
        %893 = vdwg.mxu0
        %v894 = vld [vmem:[#allocation2] sm:$0xff]
        %v895 = vld [vmem:[#allocation2 + $0x8] sm:$0xff]
        %v896 = vld [vmem:[#allocation2 + $0x10] sm:$0xff]
        %v897 = vld [vmem:[#allocation2 + $0x18] sm:$0xff]
        %v899 = vsel %vm597, %v823, 0
        %901 = vmatpush.msra.mxu0 0.0
        %902 = vmatpush.msra.mxu0 0.0
        %903 = vmatpush.msra.mxu0 0.0
        %904 = vmatpush.msra.mxu0 0.0
        %905 = vmatpush.msra.mxu0 0.0
        %906 = vmatpush.msra.mxu0 0.0
        %907 = vmatpush.msra.mxu0 0.0
        %908 = vmatpush.msra.mxu0 0.0
        %909 = vmatpush.msra.mxu0 0.0
        %910 = vmatpush.msra.mxu0 0.0
        %911 = vmatpush.msra.mxu0 0.0
        %912 = vmatpush.msra.mxu0 0.0
        %913 = vmatpush.msra.mxu0 0.0
        %914 = vmatpush.msra.mxu0 0.0
        %915 = vmatpush.msra.mxu0 0.0
        %916 = vmatpush.msra.mxu0 %v894
        %917 = vmatmul.f32.gmra.mxu0 %v899
        %v918 = vpop.f32.mrf.mxu0
        %v919 = vadd.f32 0.0, %v918
        %920 = vdwg.mxu0
        %v922 = vsel %vm597, %v846, 0
        %924 = vmatpush.msra.mxu0 0.0
        %925 = vmatpush.msra.mxu0 0.0
        %926 = vmatpush.msra.mxu0 0.0
        %927 = vmatpush.msra.mxu0 0.0
        %928 = vmatpush.msra.mxu0 0.0
        %929 = vmatpush.msra.mxu0 0.0
        %930 = vmatpush.msra.mxu0 0.0
        %931 = vmatpush.msra.mxu0 0.0
        %932 = vmatpush.msra.mxu0 0.0
        %933 = vmatpush.msra.mxu0 0.0
        %934 = vmatpush.msra.mxu0 0.0
        %935 = vmatpush.msra.mxu0 0.0
        %936 = vmatpush.msra.mxu0 0.0
        %937 = vmatpush.msra.mxu0 0.0
        %938 = vmatpush.msra.mxu0 0.0
        %939 = vmatpush.msra.mxu0 %v895
        %940 = vmatmul.f32.gmra.mxu0 %v922
        %v941 = vpop.f32.mrf.mxu0
        %v942 = vadd.f32 0.0, %v941
        %943 = vdwg.mxu0
        %v945 = vsel %vm597, %v869, 0
        %947 = vmatpush.msra.mxu0 0.0
        %948 = vmatpush.msra.mxu0 0.0
        %949 = vmatpush.msra.mxu0 0.0
        %950 = vmatpush.msra.mxu0 0.0
        %951 = vmatpush.msra.mxu0 0.0
        %952 = vmatpush.msra.mxu0 0.0
        %953 = vmatpush.msra.mxu0 0.0
        %954 = vmatpush.msra.mxu0 0.0
        %955 = vmatpush.msra.mxu0 0.0
        %956 = vmatpush.msra.mxu0 0.0
        %957 = vmatpush.msra.mxu0 0.0
        %958 = vmatpush.msra.mxu0 0.0
        %959 = vmatpush.msra.mxu0 0.0
        %960 = vmatpush.msra.mxu0 0.0
        %961 = vmatpush.msra.mxu0 0.0
        %962 = vmatpush.msra.mxu0 %v896
        %963 = vmatmul.f32.gmra.mxu0 %v945
        %v964 = vpop.f32.mrf.mxu0
        %v965 = vadd.f32 0.0, %v964
        %966 = vdwg.mxu0
        %v968 = vsel %vm597, %v892, 0
        %970 = vmatpush.msra.mxu0 0.0
        %971 = vmatpush.msra.mxu0 0.0
        %972 = vmatpush.msra.mxu0 0.0
        %973 = vmatpush.msra.mxu0 0.0
        %974 = vmatpush.msra.mxu0 0.0
        %975 = vmatpush.msra.mxu0 0.0
        %976 = vmatpush.msra.mxu0 0.0
        %977 = vmatpush.msra.mxu0 0.0
        %978 = vmatpush.msra.mxu0 0.0
        %979 = vmatpush.msra.mxu0 0.0
        %980 = vmatpush.msra.mxu0 0.0
        %981 = vmatpush.msra.mxu0 0.0
        %982 = vmatpush.msra.mxu0 0.0
        %983 = vmatpush.msra.mxu0 0.0
        %984 = vmatpush.msra.mxu0 0.0
        %985 = vmatpush.msra.mxu0 %v897
        %986 = vmatmul.f32.gmra.mxu0 %v968
        %v987 = vpop.f32.mrf.mxu0
        %v988 = vadd.f32 0.0, %v987
        %989 = vdwg.mxu0
        %vm990 = vcmask 261120
        %v991 = vsel %vm990, %v919, 0.0
        %v992 = vsel %vm990, %v942, 0.0
        %v993 = vadd.f32 %v991, %v992
        %v994 = vsel %vm990, %v965, 0.0
        %v995 = vadd.f32 %v993, %v994
        %v996 = vsel %vm990, %v988, 0.0
        %v997 = vadd.f32 %v995, %v996
        %v998 = vld [vmem:[%s2] sm:$0x1]
        %v1000 = vperm.slane %v998, 0
        %v1002 = vadd.f32 %v997, %v1000
        %v1003 = vld [vmem:[%s222] sm:$0xff]
        %v1004 = vadd.f32 %v1002, %v1003
        %1005 = vst.msk [vmem:[%s226] sm:$0xff] %vm990, %v1004
        %p1006 = scmp.lt.s32.totalorder %s16, 1
        %s1007 = scalar_select %p1006, %s16, 1
        %s1008 = smul.addr %s1007, 8
        %s1009 = scalar_lea.vmem %s4, %s1008
        // Predicated region
        $region41: #{_lambda_.10} parent=35 // pred_check
          %p1010 = pneg %p128
        $region42: #{_lambda_.10} parent=35 // pred_check_branch
          %1012 = sbr.rel (%p1010) target = $region44
        $region43: #{_lambda_.10} parent=35 // pred_region
          _
        $region44: #{_lambda_.10} parent=35 // pred_fallthru
          _
      $region36: #{_lambda_.10} parent=5 // pred_fallthru
        _
      %p1013 = scmp.le.s32.totalorder 2, %s11
      // Predicated region
      $region45: #{_lambda_.10} parent=5 // pred_check
        %p1014 = pneg %p1013
      $region46: #{_lambda_.10} parent=5 // pred_check_branch
        %1016 = sbr.rel (%p1014) target = $region48
      $region47: #{_lambda_.10} parent=5 // pred_region
        %s1017 = ssub.s32 %s11, 2
        // Predicated region
        $region49: #{_lambda_.10} parent=47 // pred_check
          %p1018 = pneg %p134
        $region50: #{_lambda_.10} parent=47 // pred_check_branch
          %1020 = sbr.rel (%p1018) target = $region52
        $region51: #{_lambda_.10} parent=47 // pred_region
          %p1021 = scmp.lt.s32.totalorder %s17, 1
          %s1022 = scalar_select %p1021, %s17, 1
          %s1023 = smul.addr %s1022, 8
          %s1024 = scalar_lea.vmem %s4, %s1023
        $region52: #{_lambda_.10} parent=47 // pred_fallthru
          _
      $region48: #{_lambda_.10} parent=5 // pred_fallthru
        _
    $region6: #{_lambda_.10} parent=1 // loop_footer
      %s15 = sadd.s32 1, %s11
    $region7: #{_lambda_.10} parent=1 // loop_footer_branch
      %10 = sbr.rel target = $region3
    $region8: #{_lambda_.10} parent=1 // loop_exit
      _
    %1025 = vsyncpa [#allocation3], 1
    %s1026 = scalar_lea.sflag [#allocation3], 1
    %1027 = vsyncpa %s1026, 1

</llo_original>
